<compile_context>
chip_gen: v7x
topology: tpu7x:2x2x1
jax: 0.10.0
libtpu: 0.0.40
codegen_flags: <defaults>
</compile_context>

<pallas_src>
import functools

import jax
import jax.numpy as jnp
import numpy as np
from jax import lax
from jax.experimental import pallas as pl
from jax.experimental.pallas import tpu as pltpu

IMAGENET_MEAN = jnp.array([0.485, 0.456, 0.406], jnp.float32)
IMAGENET_STD = jnp.array([0.229, 0.224, 0.225], jnp.float32)

_VMEM_LIMIT = 48 * 1024 * 1024  # fits v7x's 64 MiB physical VMEM with headroom


def _round_up(n, m):
  return (n + m - 1) // m * m


# ---------------------------------------------------------------------------
# Kernels
# ---------------------------------------------------------------------------
def _conv_s2_kernel(ph_ref, w_ref, o_ref, *, cinp, cout, wh, length):
  """Stride-2 pad-1 3x3 conv + (folded) bias + ReLU.

  9 accumulated bf16 matmuls; tap t's RHS is a contiguous slice of the 2x2
  phase-split flattened input (no im2col concat buffer).

  ph_ref : (1, 4*cinp, n_flat) bf16   phase-split padded input (+1 sentinel).
  w_ref  : (cout, 9*cinp)      bf16   column = tap*cinp + channel; bias lives
                                      in the center tap of the ones channel.
  o_ref  : (1, cout, length)   bf16   length = Ho*wh, wh = Wo+1; the last
                                      column of each output row is junk that
                                      the caller strips.
  """
  acc = jnp.zeros((cout, length), jnp.float32)
  t = 0
  for dy in range(3):
    py, ay = dy % 2, dy // 2
    for dx in range(3):
      px, ax = dx % 2, dx // 2
      p = (py * 2 + px) * cinp
      s = ay * wh + ax
      acc = acc + jnp.dot(
          w_ref[:, t * cinp:(t + 1) * cinp],
          ph_ref[0, p:p + cinp, s:s + length],
          preferred_element_type=jnp.float32)
      t += 1
  o_ref[0] = jnp.maximum(acc, 0.0).astype(o_ref.dtype)


def _head_kernel(ph_ref, w2_ref, b2_ref, wc_ref, bc_ref, o_ref, *,
                 cmid, wh, length):
  """Fused stride-2 3x3 conv + bias + ReLU -> 1x1 classifier (low-res logits)."""
  acc = jnp.zeros((cmid, length), jnp.float32)
  t = 0
  for dy in range(3):
    py, ay = dy % 2, dy // 2
    for dx in range(3):
      px, ax = dx % 2, dx // 2
      p = (py * 2 + px) * cmid
      s = ay * wh + ax
      acc = acc + jnp.dot(
          w2_ref[:, t * cmid:(t + 1) * cmid],
          ph_ref[0, p:p + cmid, s:s + length],
          preferred_element_type=jnp.float32)
      t += 1
  f2 = jnp.maximum(acc + b2_ref[...], 0.0).astype(jnp.bfloat16)
  lo = jnp.dot(wc_ref[...], f2,
               preferred_element_type=jnp.float32) + bc_ref[...]
  o_ref[0] = lo.astype(o_ref.dtype)


def _upsample_kernel(lo_ref, rx_ref, ry_ref, o_ref, *, h, num_classes):
  """Separable align_corners=False bilinear upsample of the low-res logits.

  lo_ref : (1, K*h, wh) bf16  rows ordered (class, low-res row); the last
                              column of each row is junk (zero row in rx).
  rx_ref : (wh, W) bf16       W-axis interpolation weights (transposed).
  ry_ref : (H, h)  bf16       H-axis interpolation weights.
  o_ref  : (1, K, H, W) f32   full-resolution NCHW logits.
  """
  t = jnp.dot(lo_ref[0], rx_ref[...],
              preferred_element_type=jnp.float32)          # (K*h, W)
  tb = t.astype(jnp.bfloat16)
  for k in range(num_classes):
    o_ref[0, k] = jnp.dot(ry_ref[...], tb[k * h:(k + 1) * h, :],
                          preferred_element_type=jnp.float32)


# ---------------------------------------------------------------------------
# pallas_call wrappers
# ---------------------------------------------------------------------------
def _conv1_call(ph, wm, *, cinp, cout, wh, length):
  B, cph, n_flat = ph.shape
  kern = functools.partial(_conv_s2_kernel, cinp=cinp, cout=cout, wh=wh,
                           length=length)
  return pl.pallas_call(
      kern,
      out_shape=jax.ShapeDtypeStruct((B, cout, length), jnp.bfloat16),
      grid=(B,),
      in_specs=[
          pl.BlockSpec((1, cph, n_flat), lambda b: (b, 0, 0)),
          pl.BlockSpec((cout, 9 * cinp), lambda b: (0, 0)),
      ],
      out_specs=pl.BlockSpec((1, cout, length), lambda b: (b, 0, 0)),
      compiler_params=pltpu.CompilerParams(
          dimension_semantics=("parallel",), vmem_limit_bytes=_VMEM_LIMIT),
  )(ph, wm)


def _head_call(ph, w2m, b2, wcm, bc, *, cmid, num_classes, wh, length):
  B, cph, n_flat = ph.shape
  kern = functools.partial(_head_kernel, cmid=cmid, wh=wh, length=length)
  return pl.pallas_call(
      kern,
      out_shape=jax.ShapeDtypeStruct((B, num_classes, length), jnp.bfloat16),
      grid=(B,),
      in_specs=[
          pl.BlockSpec((1, cph, n_flat), lambda b: (b, 0, 0)),
          pl.BlockSpec((cmid, 9 * cmid), lambda b: (0, 0)),
          pl.BlockSpec((cmid, 1), lambda b: (0, 0)),
          pl.BlockSpec((num_classes, cmid), lambda b: (0, 0)),
          pl.BlockSpec((num_classes, 1), lambda b: (0, 0)),
      ],
      out_specs=pl.BlockSpec((1, num_classes, length), lambda b: (b, 0, 0)),
      compiler_params=pltpu.CompilerParams(
          dimension_semantics=("parallel",), vmem_limit_bytes=_VMEM_LIMIT),
  )(ph, w2m, b2, wcm, bc)


def _upsample_call(lo_rows, rxT, ry, *, num_classes, h, H, W):
  B, kh, wh = lo_rows.shape
  kern = functools.partial(_upsample_kernel, h=h, num_classes=num_classes)
  return pl.pallas_call(
      kern,
      out_shape=jax.ShapeDtypeStruct((B, num_classes, H, W), jnp.float32),
      grid=(B,),
      in_specs=[
          pl.BlockSpec((1, kh, wh), lambda b: (b, 0, 0)),
          pl.BlockSpec((wh, W), lambda b: (0, 0)),
          pl.BlockSpec((H, h), lambda b: (0, 0)),
      ],
      out_specs=pl.BlockSpec((1, num_classes, H, W), lambda b: (b, 0, 0, 0)),
      compiler_params=pltpu.CompilerParams(
          dimension_semantics=("parallel",), vmem_limit_bytes=_VMEM_LIMIT),
  )(lo_rows, rxT, ry)


# ---------------------------------------------------------------------------
# Host-side prep (layout plumbing only; the heavy math is in the kernels)
# ---------------------------------------------------------------------------
def _phases_flat(x, cpad):
  """x: (B, C, Hp, Wp), Hp/Wp even -> (B, 4*cpad, (Hp/2)*(Wp/2)+1), same dtype.

  Phase (py, px), channel c sits at row (py*2+px)*cpad + c; spatial is
  flattened row-major per phase (+1 zero sentinel so every in-kernel tap slice
  of length Ho*(Wp/2) stays in bounds).
  """
  B, C, Hp, Wp = x.shape
  if cpad > C:
    x = jnp.pad(x, ((0, 0), (0, cpad - C), (0, 0), (0, 0)))
  r = x.reshape(B, cpad, Hp // 2, 2, Wp // 2, 2)
  r = jnp.transpose(r, (0, 3, 5, 1, 2, 4))          # (B, py, px, C, r, s)
  r = r.reshape(B, 4 * cpad, (Hp // 2) * (Wp // 2))
  return jnp.pad(r, ((0, 0), (0, 0), (0, 1)))


def _fold_conv_weight(w, cpad, bias=None, bias_channel=None):
  """(3, 3, cin, cout) -> (cout, 9*cpad) bf16, column = tap*cpad + channel.

  If `bias` is given it is folded into the center tap at `bias_channel`
  (that channel must be fed a constant 1.0 by the input layout).
  """
  kh, kw, cin, cout = w.shape
  wp = jnp.zeros((kh, kw, cpad, cout), jnp.float32).at[:, :, :cin, :].set(w)
  if bias is not None:
    wp = wp.at[1, 1, bias_channel, :].set(bias)
  return wp.reshape(kh * kw * cpad, cout).T.astype(jnp.bfloat16)


def _bilinear_matrix(out_size, in_size):
  """PyTorch align_corners=False bilinear weights, shape (out_size, in_size)."""
  M = np.zeros((out_size, in_size), np.float32)
  if in_size == 1:
    M[:, 0] = 1.0
    return M
  scale = in_size / out_size
  for i in range(out_size):
    real = max((i + 0.5) * scale - 0.5, 0.0)
    i0 = min(int(np.floor(real)), in_size - 1)
    i1 = min(i0 + 1, in_size - 1)
    lam = real - i0
    M[i, i0] += 1.0 - lam
    M[i, i1] += lam
  return M


def _upsample_mats(H, W, h, w, wh):
  """Separable interpolation matrices Ry (H, h) and RxT (wh, W); junk row 0."""
  ry = _bilinear_matrix(H, h)
  rxT = np.zeros((wh, W), np.float32)
  rxT[:w, :] = _bilinear_matrix(W, w).T
  return jnp.asarray(ry, jnp.bfloat16), jnp.asarray(rxT, jnp.bfloat16)


# ---------------------------------------------------------------------------
# Parameters + forward
# ---------------------------------------------------------------------------
def init_params(key, cin=3, cmid=32, num_classes=8):
  k1, k2, k3, k4, k5, k6 = jax.random.split(key, 6)
  w1 = jax.random.normal(k1, (3, 3, cin, cmid), jnp.float32) * 0.1
  b1 = jax.random.normal(k2, (cmid,), jnp.float32) * 0.01
  w2 = jax.random.normal(k3, (3, 3, cmid, cmid), jnp.float32) * 0.05
  b2 = jax.random.normal(k4, (cmid,), jnp.float32) * 0.01
  wc = jax.random.normal(k5, (cmid, num_classes), jnp.float32) * 0.1
  bc = jax.random.normal(k6, (num_classes,), jnp.float32) * 0.01
  cin_p = _round_up(cin + 1, 8)          # +1 for the constant-ones bias channel
  params = dict(                         # arrays only: safe to pass under jit
      w1m=_fold_conv_weight(w1, cin_p, bias=b1, bias_channel=cin),
      w2m=_fold_conv_weight(w2, cmid),
      b2=b2.reshape(cmid, 1),
      wcm=wc.T.astype(jnp.bfloat16),
      bc=bc.reshape(num_classes, 1),
  )
  raw = dict(w1=w1, b1=b1, w2=w2, b2=b2, wc=wc, bc=bc)
  return params, raw


def segmentation_forward(x_nchw, params):
  """x_nchw: (B, 3, H, W) in [0, 1]  ->  logits (B, num_classes, H, W) f32."""
  B, cin, H, W = x_nchw.shape
  assert H % 4 == 0 and W % 4 == 0
  w1m, w2m, b2 = params["w1m"], params["w2m"], params["b2"]
  wcm, bc = params["wcm"], params["bc"]
  cmid = w1m.shape[0]
  cin_p = w1m.shape[1] // 9
  K = wcm.shape[0]

  # ImageNet normalization + constant-ones bias channel (cheap 4-channel XLA
  # pass), then pad + 2x2 phase split, carried in bf16.
  mean = IMAGENET_MEAN.reshape(1, 3, 1, 1)
  std = IMAGENET_STD.reshape(1, 3, 1, 1)
  xn = (x_nchw.astype(jnp.float32) - mean) / std
  xa = jnp.concatenate([xn, jnp.ones((B, 1, H, W), jnp.float32)], axis=1)
  xp = jnp.pad(xa.astype(jnp.bfloat16), ((0, 0), (0, 0), (1, 1), (1, 1)))
  ph1 = _phases_flat(xp, cin_p)                      # (B, 4*cin_p, n1) bf16

  # Layer 1: stride-2 3x3 conv + ReLU (bias folded via the ones channel).
  ho1, wo1 = H // 2, W // 2
  wh1, len1 = wo1 + 1, ho1 * (wo1 + 1)
  f1_fj = _conv1_call(ph1, w1m, cinp=cin_p, cout=cmid, wh=wh1, length=len1)

  # Strip junk cols, pad, phase-split for layer 2 (one bf16 XLA relayout).
  f1 = f1_fj.reshape(B, cmid, ho1, wh1)[:, :, :, :wo1]
  f1p = jnp.pad(f1, ((0, 0), (0, 0), (1, 1), (1, 1)))
  ph2 = _phases_flat(f1p, cmid)                      # (B, 4*cmid, n2) bf16

  # Layer 2 + 1x1 classifier fused -> low-res logits (B, K, len2) bf16.
  ho2, wo2 = ho1 // 2, wo1 // 2
  wh2, len2 = wo2 + 1, ho2 * (wo2 + 1)
  lo = _head_call(ph2, w2m, b2, wcm, bc,
                  cmid=cmid, num_classes=K, wh=wh2, length=len2)

  # Separable align_corners=False bilinear upsample back to (H, W).
  ry, rxT = _upsample_mats(H, W, ho2, wo2, wh2)      # tiny bf16 constants
  lo_rows = lo.reshape(B, K * ho2, wh2)              # free metadata reshape
  return _upsample_call(lo_rows, rxT, ry, num_classes=K, h=ho2, H=H, W=W)


# ---------------------------------------------------------------------------
# Pure-JAX reference (bf16-matched) for self-checking
# ---------------------------------------------------------------------------
def reference_forward(x, raw):
  B, cin, H, W = x.shape
  mean = IMAGENET_MEAN.reshape(1, 3, 1, 1)
  std = IMAGENET_STD.reshape(1, 3, 1, 1)
  xn = ((x.astype(jnp.float32) - mean) / std).astype(jnp.bfloat16)
  dn = ("NCHW", "HWIO", "NCHW")
  f1 = lax.conv_general_dilated(
      xn, raw["w1"].astype(jnp.bfloat16), (2, 2), ((1, 1), (1, 1)),
      dimension_numbers=dn, preferred_element_type=jnp.float32)
  f1 = jnp.maximum(f1 + raw["b1"].reshape(1, -1, 1, 1), 0.0).astype(jnp.bfloat16)
  f2 = lax.conv_general_dilated(
      f1, raw["w2"].astype(jnp.bfloat16), (2, 2), ((1, 1), (1, 1)),
      dimension_numbers=dn, preferred_element_type=jnp.float32)
  f2 = jnp.maximum(f2 + raw["b2"].reshape(1, -1, 1, 1), 0.0).astype(jnp.bfloat16)
  lo = jnp.einsum("ck,bcyx->bkyx", raw["wc"].astype(jnp.bfloat16), f2,
                  preferred_element_type=jnp.float32)
  lo = (lo + raw["bc"].reshape(1, -1, 1, 1)).astype(jnp.bfloat16)
  h, w = H // 4, W // 4
  ry, rxT = _upsample_mats(H, W, h, w, w + 1)
  t = jnp.einsum("bkyx,xX->bkyX", lo, rxT[:w, :],
                 preferred_element_type=jnp.float32).astype(jnp.bfloat16)
  return jnp.einsum("Hy,bkyX->bkHX", ry, t,
                    preferred_element_type=jnp.float32)


if __name__ == "__main__":
  B, C, H, W = 2, 3, 16, 16
  num_classes = 8

  key = jax.random.PRNGKey(0)
  k_x, k_p = jax.random.split(key)
  x = jax.random.uniform(k_x, (B, C, H, W), jnp.float32)   # image in [0, 1]
  params, raw = init_params(k_p, cin=C, cmid=32, num_classes=num_classes)

  fwd = jax.jit(segmentation_forward)
  out = jax.block_until_ready(fwd(x, params))

  assert out.shape == (B, num_classes, H, W), out.shape
  assert out.dtype == jnp.float32
  assert bool(jnp.all(jnp.isfinite(out)))

  ref = jax.block_until_ready(jax.jit(reference_forward)(x, raw))
  np.testing.assert_allclose(np.asarray(out), np.asarray(ref),
                             rtol=3e-2, atol=3e-2)
  print("KERNEL_OK")
</pallas_src>

<mosaic_0001>
module attributes {stable_mosaic.version = 11 : i64} {
  func.func @_conv_s2_kernel(%arg0: i32, %arg1: memref<1x32x82xbf16, #tpu.memory_space<vmem>>, %arg2: memref<32x72xbf16, #tpu.memory_space<vmem>>, %arg3: memref<1x32x72xbf16, #tpu.memory_space<vmem>>) attributes {dimension_semantics = [#tpu.dimension_semantics<parallel>], iteration_bounds = array<i64: 2>, scalar_prefetch = 0 : i64, scratch_operands = 0 : i64, tpu.core_type = #tpu.core_type<tc>, window_params = [{transform_indices = @transform_0, window_bounds = array<i64: 1, 32, 82>}, {pipeline_mode = #tpu.pipeline_mode<synchronous>, transform_indices = @transform_1, window_bounds = array<i64: 32, 72>}, {transform_indices = @transform_2, window_bounds = array<i64: 1, 32, 72>}]} {
    %cst = arith.constant 0.000000e+00 : f32
    %0 = vector.broadcast %cst : f32 to vector<32x72xf32>
    %c0 = arith.constant 0 : index
    %c0_0 = arith.constant 0 : index
    %1 = vector.load %arg2[%c0, %c0_0] : memref<32x72xbf16, #tpu.memory_space<vmem>>, vector<32x8xbf16>
    %c0_1 = arith.constant 0 : index
    %c0_2 = arith.constant 0 : index
    %c0_3 = arith.constant 0 : index
    %2 = vector.load %arg1[%c0_1, %c0_2, %c0_3] : memref<1x32x82xbf16, #tpu.memory_space<vmem>>, vector<1x8x72xbf16>
    %3 = vector.shape_cast %2 : vector<1x8x72xbf16> to vector<8x72xbf16>
    %cst_4 = arith.constant dense<0.000000e+00> : vector<32x72xf32>
    %4 = tpu.matmul %1, %3, %cst_4 {dimension_numbers = #tpu.dot_dimension_numbers<[1], [0], [0], [1], [0, 0, 1, 1], [], []>} : vector<32x8xbf16>, vector<8x72xbf16>, vector<32x72xf32> -> vector<32x72xf32>
    %5 = arith.addf %0, %4 : vector<32x72xf32>
    %c0_5 = arith.constant 0 : index
    %c8 = arith.constant 8 : index
    %6 = vector.load %arg2[%c0_5, %c8] : memref<32x72xbf16, #tpu.memory_space<vmem>>, vector<32x8xbf16>
    %c0_6 = arith.constant 0 : index
    %c8_7 = arith.constant 8 : index
    %c0_8 = arith.constant 0 : index
    %7 = vector.load %arg1[%c0_6, %c8_7, %c0_8] : memref<1x32x82xbf16, #tpu.memory_space<vmem>>, vector<1x8x72xbf16>
    %8 = vector.shape_cast %7 : vector<1x8x72xbf16> to vector<8x72xbf16>
    %cst_9 = arith.constant dense<0.000000e+00> : vector<32x72xf32>
    %9 = tpu.matmul %6, %8, %cst_9 {dimension_numbers = #tpu.dot_dimension_numbers<[1], [0], [0], [1], [0, 0, 1, 1], [], []>} : vector<32x8xbf16>, vector<8x72xbf16>, vector<32x72xf32> -> vector<32x72xf32>
    %10 = arith.addf %5, %9 : vector<32x72xf32>
    %c0_10 = arith.constant 0 : index
    %c16 = arith.constant 16 : index
    %11 = vector.load %arg2[%c0_10, %c16] : memref<32x72xbf16, #tpu.memory_space<vmem>>, vector<32x8xbf16>
    %c0_11 = arith.constant 0 : index
    %c0_12 = arith.constant 0 : index
    %c1 = arith.constant 1 : index
    %12 = vector.load %arg1[%c0_11, %c0_12, %c1] : memref<1x32x82xbf16, #tpu.memory_space<vmem>>, vector<1x8x72xbf16>
    %13 = vector.shape_cast %12 : vector<1x8x72xbf16> to vector<8x72xbf16>
    %cst_13 = arith.constant dense<0.000000e+00> : vector<32x72xf32>
    %14 = tpu.matmul %11, %13, %cst_13 {dimension_numbers = #tpu.dot_dimension_numbers<[1], [0], [0], [1], [0, 0, 1, 1], [], []>} : vector<32x8xbf16>, vector<8x72xbf16>, vector<32x72xf32> -> vector<32x72xf32>
    %15 = arith.addf %10, %14 : vector<32x72xf32>
    %c0_14 = arith.constant 0 : index
    %c24 = arith.constant 24 : index
    %16 = vector.load %arg2[%c0_14, %c24] : memref<32x72xbf16, #tpu.memory_space<vmem>>, vector<32x8xbf16>
    %c0_15 = arith.constant 0 : index
    %c16_16 = arith.constant 16 : index
    %c0_17 = arith.constant 0 : index
    %17 = vector.load %arg1[%c0_15, %c16_16, %c0_17] : memref<1x32x82xbf16, #tpu.memory_space<vmem>>, vector<1x8x72xbf16>
    %18 = vector.shape_cast %17 : vector<1x8x72xbf16> to vector<8x72xbf16>
    %cst_18 = arith.constant dense<0.000000e+00> : vector<32x72xf32>
    %19 = tpu.matmul %16, %18, %cst_18 {dimension_numbers = #tpu.dot_dimension_numbers<[1], [0], [0], [1], [0, 0, 1, 1], [], []>} : vector<32x8xbf16>, vector<8x72xbf16>, vector<32x72xf32> -> vector<32x72xf32>
    %20 = arith.addf %15, %19 : vector<32x72xf32>
    %c0_19 = arith.constant 0 : index
    %c32 = arith.constant 32 : index
    %21 = vector.load %arg2[%c0_19, %c32] : memref<32x72xbf16, #tpu.memory_space<vmem>>, vector<32x8xbf16>
    %c0_20 = arith.constant 0 : index
    %c24_21 = arith.constant 24 : index
    %c0_22 = arith.constant 0 : index
    %22 = vector.load %arg1[%c0_20, %c24_21, %c0_22] : memref<1x32x82xbf16, #tpu.memory_space<vmem>>, vector<1x8x72xbf16>
    %23 = vector.shape_cast %22 : vector<1x8x72xbf16> to vector<8x72xbf16>
    %cst_23 = arith.constant dense<0.000000e+00> : vector<32x72xf32>
    %24 = tpu.matmul %21, %23, %cst_23 {dimension_numbers = #tpu.dot_dimension_numbers<[1], [0], [0], [1], [0, 0, 1, 1], [], []>} : vector<32x8xbf16>, vector<8x72xbf16>, vector<32x72xf32> -> vector<32x72xf32>
    %25 = arith.addf %20, %24 : vector<32x72xf32>
    %c0_24 = arith.constant 0 : index
    %c40 = arith.constant 40 : index
    %26 = vector.load %arg2[%c0_24, %c40] : memref<32x72xbf16, #tpu.memory_space<vmem>>, vector<32x8xbf16>
    %c0_25 = arith.constant 0 : index
    %c16_26 = arith.constant 16 : index
    %c1_27 = arith.constant 1 : index
    %27 = vector.load %arg1[%c0_25, %c16_26, %c1_27] : memref<1x32x82xbf16, #tpu.memory_space<vmem>>, vector<1x8x72xbf16>
    %28 = vector.shape_cast %27 : vector<1x8x72xbf16> to vector<8x72xbf16>
    %cst_28 = arith.constant dense<0.000000e+00> : vector<32x72xf32>
    %29 = tpu.matmul %26, %28, %cst_28 {dimension_numbers = #tpu.dot_dimension_numbers<[1], [0], [0], [1], [0, 0, 1, 1], [], []>} : vector<32x8xbf16>, vector<8x72xbf16>, vector<32x72xf32> -> vector<32x72xf32>
    %30 = arith.addf %25, %29 : vector<32x72xf32>
    %c0_29 = arith.constant 0 : index
    %c48 = arith.constant 48 : index
    %31 = vector.load %arg2[%c0_29, %c48] : memref<32x72xbf16, #tpu.memory_space<vmem>>, vector<32x8xbf16>
    %c0_30 = arith.constant 0 : index
    %c0_31 = arith.constant 0 : index
    %c9 = arith.constant 9 : index
    %32 = vector.load %arg1[%c0_30, %c0_31, %c9] : memref<1x32x82xbf16, #tpu.memory_space<vmem>>, vector<1x8x72xbf16>
    %33 = vector.shape_cast %32 : vector<1x8x72xbf16> to vector<8x72xbf16>
    %cst_32 = arith.constant dense<0.000000e+00> : vector<32x72xf32>
    %34 = tpu.matmul %31, %33, %cst_32 {dimension_numbers = #tpu.dot_dimension_numbers<[1], [0], [0], [1], [0, 0, 1, 1], [], []>} : vector<32x8xbf16>, vector<8x72xbf16>, vector<32x72xf32> -> vector<32x72xf32>
    %35 = arith.addf %30, %34 : vector<32x72xf32>
    %c0_33 = arith.constant 0 : index
    %c56 = arith.constant 56 : index
    %36 = vector.load %arg2[%c0_33, %c56] : memref<32x72xbf16, #tpu.memory_space<vmem>>, vector<32x8xbf16>
    %c0_34 = arith.constant 0 : index
    %c8_35 = arith.constant 8 : index
    %c9_36 = arith.constant 9 : index
    %37 = vector.load %arg1[%c0_34, %c8_35, %c9_36] : memref<1x32x82xbf16, #tpu.memory_space<vmem>>, vector<1x8x72xbf16>
    %38 = vector.shape_cast %37 : vector<1x8x72xbf16> to vector<8x72xbf16>
    %cst_37 = arith.constant dense<0.000000e+00> : vector<32x72xf32>
    %39 = tpu.matmul %36, %38, %cst_37 {dimension_numbers = #tpu.dot_dimension_numbers<[1], [0], [0], [1], [0, 0, 1, 1], [], []>} : vector<32x8xbf16>, vector<8x72xbf16>, vector<32x72xf32> -> vector<32x72xf32>
    %40 = arith.addf %35, %39 : vector<32x72xf32>
    %c0_38 = arith.constant 0 : index
    %c64 = arith.constant 64 : index
    %41 = vector.load %arg2[%c0_38, %c64] : memref<32x72xbf16, #tpu.memory_space<vmem>>, vector<32x8xbf16>
    %c0_39 = arith.constant 0 : index
    %c0_40 = arith.constant 0 : index
    %c10 = arith.constant 10 : index
    %42 = vector.load %arg1[%c0_39, %c0_40, %c10] : memref<1x32x82xbf16, #tpu.memory_space<vmem>>, vector<1x8x72xbf16>
    %43 = vector.shape_cast %42 : vector<1x8x72xbf16> to vector<8x72xbf16>
    %cst_41 = arith.constant dense<0.000000e+00> : vector<32x72xf32>
    %44 = tpu.matmul %41, %43, %cst_41 {dimension_numbers = #tpu.dot_dimension_numbers<[1], [0], [0], [1], [0, 0, 1, 1], [], []>} : vector<32x8xbf16>, vector<8x72xbf16>, vector<32x72xf32> -> vector<32x72xf32>
    %45 = arith.addf %40, %44 : vector<32x72xf32>
    %cst_42 = arith.constant 0.000000e+00 : f32
    %46 = vector.broadcast %cst_42 : f32 to vector<32x72xf32>
    %47 = arith.maximumf %45, %46 : vector<32x72xf32>
    %48 = arith.truncf %47 : vector<32x72xf32> to vector<32x72xbf16>
    %c0_43 = arith.constant 0 : index
    %c0_44 = arith.constant 0 : index
    %c0_45 = arith.constant 0 : index
    %49 = vector.load %arg3[%c0_43, %c0_44, %c0_45] : memref<1x32x72xbf16, #tpu.memory_space<vmem>>, vector<1x32x72xbf16>
    %50 = vector.shape_cast %49 : vector<1x32x72xbf16> to vector<32x72xbf16>
    %51 = vector.shape_cast %48 : vector<32x72xbf16> to vector<1x32x72xbf16>
    tpu.vector_store %arg3[%c0_43, %c0_44, %c0_45], %51 {strides = array<i32>} : memref<1x32x72xbf16, #tpu.memory_space<vmem>>, vector<1x32x72xbf16>,
    return
  }
  func.func @transform_0(%arg0: i32) -> (i32, i32, i32) {
    %c0_i32 = arith.constant 0 : i32
    %c0_i32_0 = arith.constant 0 : i32
    %c0_i32_1 = arith.constant 0 : i32
    return %arg0, %c0_i32, %c0_i32_0 : i32, i32, i32
  }
  func.func @transform_1(%arg0: i32) -> (i32, i32) {
    %c0_i32 = arith.constant 0 : i32
    %c0_i32_0 = arith.constant 0 : i32
    %c0_i32_1 = arith.constant 0 : i32
    return %c0_i32, %c0_i32_0 : i32, i32
  }
  func.func @transform_2(%arg0: i32) -> (i32, i32, i32) {
    %c0_i32 = arith.constant 0 : i32
    %c0_i32_0 = arith.constant 0 : i32
    %c0_i32_1 = arith.constant 0 : i32
    return %arg0, %c0_i32, %c0_i32_0 : i32, i32, i32
  }
}

module attributes {stable_mosaic.version = 11 : i64} {
  func.func @_head_kernel(%arg0: i32, %arg1: memref<1x128x26xbf16, #tpu.memory_space<vmem>>, %arg2: memref<32x288xbf16, #tpu.memory_space<vmem>>, %arg3: memref<32x1xf32, #tpu.memory_space<vmem>>, %arg4: memref<8x32xbf16, #tpu.memory_space<vmem>>, %arg5: memref<8x1xf32, #tpu.memory_space<vmem>>, %arg6: memref<1x8x20xbf16, #tpu.memory_space<vmem>>) attributes {dimension_semantics = [#tpu.dimension_semantics<parallel>], iteration_bounds = array<i64: 2>, scalar_prefetch = 0 : i64, scratch_operands = 0 : i64, tpu.core_type = #tpu.core_type<tc>, window_params = [{transform_indices = @transform_0, window_bounds = array<i64: 1, 128, 26>}, {pipeline_mode = #tpu.pipeline_mode<synchronous>, transform_indices = @transform_1, window_bounds = array<i64: 32, 288>}, {pipeline_mode = #tpu.pipeline_mode<synchronous>, transform_indices = @transform_2, window_bounds = array<i64: 32, 1>}, {pipeline_mode = #tpu.pipeline_mode<synchronous>, transform_indices = @transform_3, window_bounds = array<i64: 8, 32>}, {pipeline_mode = #tpu.pipeline_mode<synchronous>, transform_indices = @transform_4, window_bounds = array<i64: 8, 1>}, {transform_indices = @transform_5, window_bounds = array<i64: 1, 8, 20>}]} {
    %cst = arith.constant 0.000000e+00 : f32
    %0 = vector.broadcast %cst : f32 to vector<32x20xf32>
    %c0 = arith.constant 0 : index
    %c0_0 = arith.constant 0 : index
    %1 = vector.load %arg2[%c0, %c0_0] : memref<32x288xbf16, #tpu.memory_space<vmem>>, vector<32x32xbf16>
    %c0_1 = arith.constant 0 : index
    %c0_2 = arith.constant 0 : index
    %c0_3 = arith.constant 0 : index
    %2 = vector.load %arg1[%c0_1, %c0_2, %c0_3] : memref<1x128x26xbf16, #tpu.memory_space<vmem>>, vector<1x32x20xbf16>
    %3 = vector.shape_cast %2 : vector<1x32x20xbf16> to vector<32x20xbf16>
    %cst_4 = arith.constant dense<0.000000e+00> : vector<32x20xf32>
    %4 = tpu.matmul %1, %3, %cst_4 {dimension_numbers = #tpu.dot_dimension_numbers<[1], [0], [0], [1], [0, 0, 1, 1], [], []>} : vector<32x32xbf16>, vector<32x20xbf16>, vector<32x20xf32> -> vector<32x20xf32>
    %5 = arith.addf %0, %4 : vector<32x20xf32>
    %c0_5 = arith.constant 0 : index
    %c32 = arith.constant 32 : index
    %6 = vector.load %arg2[%c0_5, %c32] : memref<32x288xbf16, #tpu.memory_space<vmem>>, vector<32x32xbf16>
    %c0_6 = arith.constant 0 : index
    %c32_7 = arith.constant 32 : index
    %c0_8 = arith.constant 0 : index
    %7 = vector.load %arg1[%c0_6, %c32_7, %c0_8] : memref<1x128x26xbf16, #tpu.memory_space<vmem>>, vector<1x32x20xbf16>
    %8 = vector.shape_cast %7 : vector<1x32x20xbf16> to vector<32x20xbf16>
    %cst_9 = arith.constant dense<0.000000e+00> : vector<32x20xf32>
    %9 = tpu.matmul %6, %8, %cst_9 {dimension_numbers = #tpu.dot_dimension_numbers<[1], [0], [0], [1], [0, 0, 1, 1], [], []>} : vector<32x32xbf16>, vector<32x20xbf16>, vector<32x20xf32> -> vector<32x20xf32>
    %10 = arith.addf %5, %9 : vector<32x20xf32>
    %c0_10 = arith.constant 0 : index
    %c64 = arith.constant 64 : index
    %11 = vector.load %arg2[%c0_10, %c64] : memref<32x288xbf16, #tpu.memory_space<vmem>>, vector<32x32xbf16>
    %c0_11 = arith.constant 0 : index
    %c0_12 = arith.constant 0 : index
    %c1 = arith.constant 1 : index
    %12 = vector.load %arg1[%c0_11, %c0_12, %c1] : memref<1x128x26xbf16, #tpu.memory_space<vmem>>, vector<1x32x20xbf16>
    %13 = vector.shape_cast %12 : vector<1x32x20xbf16> to vector<32x20xbf16>
    %cst_13 = arith.constant dense<0.000000e+00> : vector<32x20xf32>
    %14 = tpu.matmul %11, %13, %cst_13 {dimension_numbers = #tpu.dot_dimension_numbers<[1], [0], [0], [1], [0, 0, 1, 1], [], []>} : vector<32x32xbf16>, vector<32x20xbf16>, vector<32x20xf32> -> vector<32x20xf32>
    %15 = arith.addf %10, %14 : vector<32x20xf32>
    %c0_14 = arith.constant 0 : index
    %c96 = arith.constant 96 : index
    %16 = vector.load %arg2[%c0_14, %c96] : memref<32x288xbf16, #tpu.memory_space<vmem>>, vector<32x32xbf16>
    %c0_15 = arith.constant 0 : index
    %c64_16 = arith.constant 64 : index
    %c0_17 = arith.constant 0 : index
    %17 = vector.load %arg1[%c0_15, %c64_16, %c0_17] : memref<1x128x26xbf16, #tpu.memory_space<vmem>>, vector<1x32x20xbf16>
    %18 = vector.shape_cast %17 : vector<1x32x20xbf16> to vector<32x20xbf16>
    %cst_18 = arith.constant dense<0.000000e+00> : vector<32x20xf32>
    %19 = tpu.matmul %16, %18, %cst_18 {dimension_numbers = #tpu.dot_dimension_numbers<[1], [0], [0], [1], [0, 0, 1, 1], [], []>} : vector<32x32xbf16>, vector<32x20xbf16>, vector<32x20xf32> -> vector<32x20xf32>
    %20 = arith.addf %15, %19 : vector<32x20xf32>
    %c0_19 = arith.constant 0 : index
    %c128 = arith.constant 128 : index
    %21 = vector.load %arg2[%c0_19, %c128] : memref<32x288xbf16, #tpu.memory_space<vmem>>, vector<32x32xbf16>
    %c0_20 = arith.constant 0 : index
    %c96_21 = arith.constant 96 : index
    %c0_22 = arith.constant 0 : index
    %22 = vector.load %arg1[%c0_20, %c96_21, %c0_22] : memref<1x128x26xbf16, #tpu.memory_space<vmem>>, vector<1x32x20xbf16>
    %23 = vector.shape_cast %22 : vector<1x32x20xbf16> to vector<32x20xbf16>
    %cst_23 = arith.constant dense<0.000000e+00> : vector<32x20xf32>
    %24 = tpu.matmul %21, %23, %cst_23 {dimension_numbers = #tpu.dot_dimension_numbers<[1], [0], [0], [1], [0, 0, 1, 1], [], []>} : vector<32x32xbf16>, vector<32x20xbf16>, vector<32x20xf32> -> vector<32x20xf32>
    %25 = arith.addf %20, %24 : vector<32x20xf32>
    %c0_24 = arith.constant 0 : index
    %c160 = arith.constant 160 : index
    %26 = vector.load %arg2[%c0_24, %c160] : memref<32x288xbf16, #tpu.memory_space<vmem>>, vector<32x32xbf16>
    %c0_25 = arith.constant 0 : index
    %c64_26 = arith.constant 64 : index
    %c1_27 = arith.constant 1 : index
    %27 = vector.load %arg1[%c0_25, %c64_26, %c1_27] : memref<1x128x26xbf16, #tpu.memory_space<vmem>>, vector<1x32x20xbf16>
    %28 = vector.shape_cast %27 : vector<1x32x20xbf16> to vector<32x20xbf16>
    %cst_28 = arith.constant dense<0.000000e+00> : vector<32x20xf32>
    %29 = tpu.matmul %26, %28, %cst_28 {dimension_numbers = #tpu.dot_dimension_numbers<[1], [0], [0], [1], [0, 0, 1, 1], [], []>} : vector<32x32xbf16>, vector<32x20xbf16>, vector<32x20xf32> -> vector<32x20xf32>
    %30 = arith.addf %25, %29 : vector<32x20xf32>
    %c0_29 = arith.constant 0 : index
    %c192 = arith.constant 192 : index
    %31 = vector.load %arg2[%c0_29, %c192] : memref<32x288xbf16, #tpu.memory_space<vmem>>, vector<32x32xbf16>
    %c0_30 = arith.constant 0 : index
    %c0_31 = arith.constant 0 : index
    %c5 = arith.constant 5 : index
    %32 = vector.load %arg1[%c0_30, %c0_31, %c5] : memref<1x128x26xbf16, #tpu.memory_space<vmem>>, vector<1x32x20xbf16>
    %33 = vector.shape_cast %32 : vector<1x32x20xbf16> to vector<32x20xbf16>
    %cst_32 = arith.constant dense<0.000000e+00> : vector<32x20xf32>
    %34 = tpu.matmul %31, %33, %cst_32 {dimension_numbers = #tpu.dot_dimension_numbers<[1], [0], [0], [1], [0, 0, 1, 1], [], []>} : vector<32x32xbf16>, vector<32x20xbf16>, vector<32x20xf32> -> vector<32x20xf32>
    %35 = arith.addf %30, %34 : vector<32x20xf32>
    %c0_33 = arith.constant 0 : index
    %c224 = arith.constant 224 : index
    %36 = vector.load %arg2[%c0_33, %c224] : memref<32x288xbf16, #tpu.memory_space<vmem>>, vector<32x32xbf16>
    %c0_34 = arith.constant 0 : index
    %c32_35 = arith.constant 32 : index
    %c5_36 = arith.constant 5 : index
    %37 = vector.load %arg1[%c0_34, %c32_35, %c5_36] : memref<1x128x26xbf16, #tpu.memory_space<vmem>>, vector<1x32x20xbf16>
    %38 = vector.shape_cast %37 : vector<1x32x20xbf16> to vector<32x20xbf16>
    %cst_37 = arith.constant dense<0.000000e+00> : vector<32x20xf32>
    %39 = tpu.matmul %36, %38, %cst_37 {dimension_numbers = #tpu.dot_dimension_numbers<[1], [0], [0], [1], [0, 0, 1, 1], [], []>} : vector<32x32xbf16>, vector<32x20xbf16>, vector<32x20xf32> -> vector<32x20xf32>
    %40 = arith.addf %35, %39 : vector<32x20xf32>
    %c0_38 = arith.constant 0 : index
    %c256 = arith.constant 256 : index
    %41 = vector.load %arg2[%c0_38, %c256] : memref<32x288xbf16, #tpu.memory_space<vmem>>, vector<32x32xbf16>
    %c0_39 = arith.constant 0 : index
    %c0_40 = arith.constant 0 : index
    %c6 = arith.constant 6 : index
    %42 = vector.load %arg1[%c0_39, %c0_40, %c6] : memref<1x128x26xbf16, #tpu.memory_space<vmem>>, vector<1x32x20xbf16>
    %43 = vector.shape_cast %42 : vector<1x32x20xbf16> to vector<32x20xbf16>
    %cst_41 = arith.constant dense<0.000000e+00> : vector<32x20xf32>
    %44 = tpu.matmul %41, %43, %cst_41 {dimension_numbers = #tpu.dot_dimension_numbers<[1], [0], [0], [1], [0, 0, 1, 1], [], []>} : vector<32x32xbf16>, vector<32x20xbf16>, vector<32x20xf32> -> vector<32x20xf32>
    %45 = arith.addf %40, %44 : vector<32x20xf32>
    %c0_42 = arith.constant 0 : index
    %c0_43 = arith.constant 0 : index
    %46 = vector.load %arg3[%c0_42, %c0_43] : memref<32x1xf32, #tpu.memory_space<vmem>>, vector<32x1xf32>
    %47 = vector.broadcast %46 : vector<32x1xf32> to vector<32x20xf32>
    %48 = arith.addf %45, %47 : vector<32x20xf32>
    %cst_44 = arith.constant 0.000000e+00 : f32
    %49 = vector.broadcast %cst_44 : f32 to vector<32x20xf32>
    %50 = arith.maximumf %48, %49 : vector<32x20xf32>
    %51 = arith.truncf %50 : vector<32x20xf32> to vector<32x20xbf16>
    %c0_45 = arith.constant 0 : index
    %c0_46 = arith.constant 0 : index
    %52 = vector.load %arg4[%c0_45, %c0_46] : memref<8x32xbf16, #tpu.memory_space<vmem>>, vector<8x32xbf16>
    %cst_47 = arith.constant dense<0.000000e+00> : vector<8x20xf32>
    %53 = tpu.matmul %52, %51, %cst_47 {dimension_numbers = #tpu.dot_dimension_numbers<[1], [0], [0], [1], [0, 0, 1, 1], [], []>} : vector<8x32xbf16>, vector<32x20xbf16>, vector<8x20xf32> -> vector<8x20xf32>
    %c0_48 = arith.constant 0 : index
    %c0_49 = arith.constant 0 : index
    %54 = vector.load %arg5[%c0_48, %c0_49] : memref<8x1xf32, #tpu.memory_space<vmem>>, vector<8x1xf32>
    %55 = vector.broadcast %54 : vector<8x1xf32> to vector<8x20xf32>
    %56 = arith.addf %53, %55 : vector<8x20xf32>
    %57 = arith.truncf %56 : vector<8x20xf32> to vector<8x20xbf16>
    %c0_50 = arith.constant 0 : index
    %c0_51 = arith.constant 0 : index
    %c0_52 = arith.constant 0 : index
    %58 = vector.load %arg6[%c0_50, %c0_51, %c0_52] : memref<1x8x20xbf16, #tpu.memory_space<vmem>>, vector<1x8x20xbf16>
    %59 = vector.shape_cast %58 : vector<1x8x20xbf16> to vector<8x20xbf16>
    %60 = vector.shape_cast %57 : vector<8x20xbf16> to vector<1x8x20xbf16>
    tpu.vector_store %arg6[%c0_50, %c0_51, %c0_52], %60 {strides = array<i32>} : memref<1x8x20xbf16, #tpu.memory_space<vmem>>, vector<1x8x20xbf16>,
    return
  }
  func.func @transform_0(%arg0: i32) -> (i32, i32, i32) {
    %c0_i32 = arith.constant 0 : i32
    %c0_i32_0 = arith.constant 0 : i32
    %c0_i32_1 = arith.constant 0 : i32
    return %arg0, %c0_i32, %c0_i32_0 : i32, i32, i32
  }
  func.func @transform_1(%arg0: i32) -> (i32, i32) {
    %c0_i32 = arith.constant 0 : i32
    %c0_i32_0 = arith.constant 0 : i32
    %c0_i32_1 = arith.constant 0 : i32
    return %c0_i32, %c0_i32_0 : i32, i32
  }
  func.func @transform_2(%arg0: i32) -> (i32, i32) {
    %c0_i32 = arith.constant 0 : i32
    %c0_i32_0 = arith.constant 0 : i32
    %c0_i32_1 = arith.constant 0 : i32
    return %c0_i32, %c0_i32_0 : i32, i32
  }
  func.func @transform_3(%arg0: i32) -> (i32, i32) {
    %c0_i32 = arith.constant 0 : i32
    %c0_i32_0 = arith.constant 0 : i32
    %c0_i32_1 = arith.constant 0 : i32
    return %c0_i32, %c0_i32_0 : i32, i32
  }
  func.func @transform_4(%arg0: i32) -> (i32, i32) {
    %c0_i32 = arith.constant 0 : i32
    %c0_i32_0 = arith.constant 0 : i32
    %c0_i32_1 = arith.constant 0 : i32
    return %c0_i32, %c0_i32_0 : i32, i32
  }
  func.func @transform_5(%arg0: i32) -> (i32, i32, i32) {
    %c0_i32 = arith.constant 0 : i32
    %c0_i32_0 = arith.constant 0 : i32
    %c0_i32_1 = arith.constant 0 : i32
    return %arg0, %c0_i32, %c0_i32_0 : i32, i32, i32
  }
}

module attributes {stable_mosaic.version = 11 : i64} {
  func.func @_upsample_kernel(%arg0: i32, %arg1: memref<1x32x5xbf16, #tpu.memory_space<vmem>>, %arg2: memref<5x16xbf16, #tpu.memory_space<vmem>>, %arg3: memref<16x4xbf16, #tpu.memory_space<vmem>>, %arg4: memref<1x8x16x16xf32, #tpu.memory_space<vmem>>) attributes {dimension_semantics = [#tpu.dimension_semantics<parallel>], iteration_bounds = array<i64: 2>, scalar_prefetch = 0 : i64, scratch_operands = 0 : i64, tpu.core_type = #tpu.core_type<tc>, window_params = [{transform_indices = @transform_0, window_bounds = array<i64: 1, 32, 5>}, {pipeline_mode = #tpu.pipeline_mode<synchronous>, transform_indices = @transform_1, window_bounds = array<i64: 5, 16>}, {pipeline_mode = #tpu.pipeline_mode<synchronous>, transform_indices = @transform_2, window_bounds = array<i64: 16, 4>}, {transform_indices = @transform_3, window_bounds = array<i64: 1, 8, 16, 16>}]} {
    %c0 = arith.constant 0 : index
    %c0_0 = arith.constant 0 : index
    %c0_1 = arith.constant 0 : index
    %0 = vector.load %arg1[%c0, %c0_0, %c0_1] : memref<1x32x5xbf16, #tpu.memory_space<vmem>>, vector<1x32x5xbf16>
    %1 = vector.shape_cast %0 : vector<1x32x5xbf16> to vector<32x5xbf16>
    %c0_2 = arith.constant 0 : index
    %c0_3 = arith.constant 0 : index
    %2 = vector.load %arg2[%c0_2, %c0_3] : memref<5x16xbf16, #tpu.memory_space<vmem>>, vector<5x16xbf16>
    %cst = arith.constant dense<0.000000e+00> : vector<32x16xf32>
    %3 = tpu.matmul %1, %2, %cst {dimension_numbers = #tpu.dot_dimension_numbers<[1], [0], [0], [1], [0, 0, 1, 1], [], []>} : vector<32x5xbf16>, vector<5x16xbf16>, vector<32x16xf32> -> vector<32x16xf32>
    %4 = arith.truncf %3 : vector<32x16xf32> to vector<32x16xbf16>
    %c0_4 = arith.constant 0 : index
    %c0_5 = arith.constant 0 : index
    %5 = vector.load %arg3[%c0_4, %c0_5] : memref<16x4xbf16, #tpu.memory_space<vmem>>, vector<16x4xbf16>
    %6 = vector.extract_strided_slice %4 {offsets = [0, 0], sizes = [4, 16], strides = [1, 1]} : vector<32x16xbf16> to vector<4x16xbf16>
    %cst_6 = arith.constant dense<0.000000e+00> : vector<16x16xf32>
    %7 = tpu.matmul %5, %6, %cst_6 {dimension_numbers = #tpu.dot_dimension_numbers<[1], [0], [0], [1], [0, 0, 1, 1], [], []>} : vector<16x4xbf16>, vector<4x16xbf16>, vector<16x16xf32> -> vector<16x16xf32>
    %c0_7 = arith.constant 0 : index
    %c0_8 = arith.constant 0 : index
    %c0_9 = arith.constant 0 : index
    %c0_10 = arith.constant 0 : index
    %8 = vector.load %arg4[%c0_7, %c0_8, %c0_9, %c0_10] : memref<1x8x16x16xf32, #tpu.memory_space<vmem>>, vector<1x1x16x16xf32>
    %9 = vector.shape_cast %8 : vector<1x1x16x16xf32> to vector<16x16xf32>
    %10 = vector.shape_cast %7 : vector<16x16xf32> to vector<1x1x16x16xf32>
    tpu.vector_store %arg4[%c0_7, %c0_8, %c0_9, %c0_10], %10 {strides = array<i32>} : memref<1x8x16x16xf32, #tpu.memory_space<vmem>>, vector<1x1x16x16xf32>,
    %c0_11 = arith.constant 0 : index
    %c0_12 = arith.constant 0 : index
    %11 = vector.load %arg3[%c0_11, %c0_12] : memref<16x4xbf16, #tpu.memory_space<vmem>>, vector<16x4xbf16>
    %12 = vector.extract_strided_slice %4 {offsets = [4, 0], sizes = [4, 16], strides = [1, 1]} : vector<32x16xbf16> to vector<4x16xbf16>
    %cst_13 = arith.constant dense<0.000000e+00> : vector<16x16xf32>
    %13 = tpu.matmul %11, %12, %cst_13 {dimension_numbers = #tpu.dot_dimension_numbers<[1], [0], [0], [1], [0, 0, 1, 1], [], []>} : vector<16x4xbf16>, vector<4x16xbf16>, vector<16x16xf32> -> vector<16x16xf32>
    %c0_14 = arith.constant 0 : index
    %c1 = arith.constant 1 : index
    %c0_15 = arith.constant 0 : index
    %c0_16 = arith.constant 0 : index
    %14 = vector.load %arg4[%c0_14, %c1, %c0_15, %c0_16] : memref<1x8x16x16xf32, #tpu.memory_space<vmem>>, vector<1x1x16x16xf32>
    %15 = vector.shape_cast %14 : vector<1x1x16x16xf32> to vector<16x16xf32>
    %16 = vector.shape_cast %13 : vector<16x16xf32> to vector<1x1x16x16xf32>
    tpu.vector_store %arg4[%c0_14, %c1, %c0_15, %c0_16], %16 {strides = array<i32>} : memref<1x8x16x16xf32, #tpu.memory_space<vmem>>, vector<1x1x16x16xf32>,
    %c0_17 = arith.constant 0 : index
    %c0_18 = arith.constant 0 : index
    %17 = vector.load %arg3[%c0_17, %c0_18] : memref<16x4xbf16, #tpu.memory_space<vmem>>, vector<16x4xbf16>
    %18 = vector.extract_strided_slice %4 {offsets = [8, 0], sizes = [4, 16], strides = [1, 1]} : vector<32x16xbf16> to vector<4x16xbf16>
    %cst_19 = arith.constant dense<0.000000e+00> : vector<16x16xf32>
    %19 = tpu.matmul %17, %18, %cst_19 {dimension_numbers = #tpu.dot_dimension_numbers<[1], [0], [0], [1], [0, 0, 1, 1], [], []>} : vector<16x4xbf16>, vector<4x16xbf16>, vector<16x16xf32> -> vector<16x16xf32>
    %c0_20 = arith.constant 0 : index
    %c2 = arith.constant 2 : index
    %c0_21 = arith.constant 0 : index
    %c0_22 = arith.constant 0 : index
    %20 = vector.load %arg4[%c0_20, %c2, %c0_21, %c0_22] : memref<1x8x16x16xf32, #tpu.memory_space<vmem>>, vector<1x1x16x16xf32>
    %21 = vector.shape_cast %20 : vector<1x1x16x16xf32> to vector<16x16xf32>
    %22 = vector.shape_cast %19 : vector<16x16xf32> to vector<1x1x16x16xf32>
    tpu.vector_store %arg4[%c0_20, %c2, %c0_21, %c0_22], %22 {strides = array<i32>} : memref<1x8x16x16xf32, #tpu.memory_space<vmem>>, vector<1x1x16x16xf32>,
    %c0_23 = arith.constant 0 : index
    %c0_24 = arith.constant 0 : index
    %23 = vector.load %arg3[%c0_23, %c0_24] : memref<16x4xbf16, #tpu.memory_space<vmem>>, vector<16x4xbf16>
    %24 = vector.extract_strided_slice %4 {offsets = [12, 0], sizes = [4, 16], strides = [1, 1]} : vector<32x16xbf16> to vector<4x16xbf16>
    %cst_25 = arith.constant dense<0.000000e+00> : vector<16x16xf32>
    %25 = tpu.matmul %23, %24, %cst_25 {dimension_numbers = #tpu.dot_dimension_numbers<[1], [0], [0], [1], [0, 0, 1, 1], [], []>} : vector<16x4xbf16>, vector<4x16xbf16>, vector<16x16xf32> -> vector<16x16xf32>
    %c0_26 = arith.constant 0 : index
    %c3 = arith.constant 3 : index
    %c0_27 = arith.constant 0 : index
    %c0_28 = arith.constant 0 : index
    %26 = vector.load %arg4[%c0_26, %c3, %c0_27, %c0_28] : memref<1x8x16x16xf32, #tpu.memory_space<vmem>>, vector<1x1x16x16xf32>
    %27 = vector.shape_cast %26 : vector<1x1x16x16xf32> to vector<16x16xf32>
    %28 = vector.shape_cast %25 : vector<16x16xf32> to vector<1x1x16x16xf32>
    tpu.vector_store %arg4[%c0_26, %c3, %c0_27, %c0_28], %28 {strides = array<i32>} : memref<1x8x16x16xf32, #tpu.memory_space<vmem>>, vector<1x1x16x16xf32>,
    %c0_29 = arith.constant 0 : index
    %c0_30 = arith.constant 0 : index
    %29 = vector.load %arg3[%c0_29, %c0_30] : memref<16x4xbf16, #tpu.memory_space<vmem>>, vector<16x4xbf16>
    %30 = vector.extract_strided_slice %4 {offsets = [16, 0], sizes = [4, 16], strides = [1, 1]} : vector<32x16xbf16> to vector<4x16xbf16>
    %cst_31 = arith.constant dense<0.000000e+00> : vector<16x16xf32>
    %31 = tpu.matmul %29, %30, %cst_31 {dimension_numbers = #tpu.dot_dimension_numbers<[1], [0], [0], [1], [0, 0, 1, 1], [], []>} : vector<16x4xbf16>, vector<4x16xbf16>, vector<16x16xf32> -> vector<16x16xf32>
    %c0_32 = arith.constant 0 : index
    %c4 = arith.constant 4 : index
    %c0_33 = arith.constant 0 : index
    %c0_34 = arith.constant 0 : index
    %32 = vector.load %arg4[%c0_32, %c4, %c0_33, %c0_34] : memref<1x8x16x16xf32, #tpu.memory_space<vmem>>, vector<1x1x16x16xf32>
    %33 = vector.shape_cast %32 : vector<1x1x16x16xf32> to vector<16x16xf32>
    %34 = vector.shape_cast %31 : vector<16x16xf32> to vector<1x1x16x16xf32>
    tpu.vector_store %arg4[%c0_32, %c4, %c0_33, %c0_34], %34 {strides = array<i32>} : memref<1x8x16x16xf32, #tpu.memory_space<vmem>>, vector<1x1x16x16xf32>,
    %c0_35 = arith.constant 0 : index
    %c0_36 = arith.constant 0 : index
    %35 = vector.load %arg3[%c0_35, %c0_36] : memref<16x4xbf16, #tpu.memory_space<vmem>>, vector<16x4xbf16>
    %36 = vector.extract_strided_slice %4 {offsets = [20, 0], sizes = [4, 16], strides = [1, 1]} : vector<32x16xbf16> to vector<4x16xbf16>
    %cst_37 = arith.constant dense<0.000000e+00> : vector<16x16xf32>
    %37 = tpu.matmul %35, %36, %cst_37 {dimension_numbers = #tpu.dot_dimension_numbers<[1], [0], [0], [1], [0, 0, 1, 1], [], []>} : vector<16x4xbf16>, vector<4x16xbf16>, vector<16x16xf32> -> vector<16x16xf32>
    %c0_38 = arith.constant 0 : index
    %c5 = arith.constant 5 : index
    %c0_39 = arith.constant 0 : index
    %c0_40 = arith.constant 0 : index
    %38 = vector.load %arg4[%c0_38, %c5, %c0_39, %c0_40] : memref<1x8x16x16xf32, #tpu.memory_space<vmem>>, vector<1x1x16x16xf32>
    %39 = vector.shape_cast %38 : vector<1x1x16x16xf32> to vector<16x16xf32>
    %40 = vector.shape_cast %37 : vector<16x16xf32> to vector<1x1x16x16xf32>
    tpu.vector_store %arg4[%c0_38, %c5, %c0_39, %c0_40], %40 {strides = array<i32>} : memref<1x8x16x16xf32, #tpu.memory_space<vmem>>, vector<1x1x16x16xf32>,
    %c0_41 = arith.constant 0 : index
    %c0_42 = arith.constant 0 : index
    %41 = vector.load %arg3[%c0_41, %c0_42] : memref<16x4xbf16, #tpu.memory_space<vmem>>, vector<16x4xbf16>
    %42 = vector.extract_strided_slice %4 {offsets = [24, 0], sizes = [4, 16], strides = [1, 1]} : vector<32x16xbf16> to vector<4x16xbf16>
    %cst_43 = arith.constant dense<0.000000e+00> : vector<16x16xf32>
    %43 = tpu.matmul %41, %42, %cst_43 {dimension_numbers = #tpu.dot_dimension_numbers<[1], [0], [0], [1], [0, 0, 1, 1], [], []>} : vector<16x4xbf16>, vector<4x16xbf16>, vector<16x16xf32> -> vector<16x16xf32>
    %c0_44 = arith.constant 0 : index
    %c6 = arith.constant 6 : index
    %c0_45 = arith.constant 0 : index
    %c0_46 = arith.constant 0 : index
    %44 = vector.load %arg4[%c0_44, %c6, %c0_45, %c0_46] : memref<1x8x16x16xf32, #tpu.memory_space<vmem>>, vector<1x1x16x16xf32>
    %45 = vector.shape_cast %44 : vector<1x1x16x16xf32> to vector<16x16xf32>
    %46 = vector.shape_cast %43 : vector<16x16xf32> to vector<1x1x16x16xf32>
    tpu.vector_store %arg4[%c0_44, %c6, %c0_45, %c0_46], %46 {strides = array<i32>} : memref<1x8x16x16xf32, #tpu.memory_space<vmem>>, vector<1x1x16x16xf32>,
    %c0_47 = arith.constant 0 : index
    %c0_48 = arith.constant 0 : index
    %47 = vector.load %arg3[%c0_47, %c0_48] : memref<16x4xbf16, #tpu.memory_space<vmem>>, vector<16x4xbf16>
    %48 = vector.extract_strided_slice %4 {offsets = [28, 0], sizes = [4, 16], strides = [1, 1]} : vector<32x16xbf16> to vector<4x16xbf16>
    %cst_49 = arith.constant dense<0.000000e+00> : vector<16x16xf32>
    %49 = tpu.matmul %47, %48, %cst_49 {dimension_numbers = #tpu.dot_dimension_numbers<[1], [0], [0], [1], [0, 0, 1, 1], [], []>} : vector<16x4xbf16>, vector<4x16xbf16>, vector<16x16xf32> -> vector<16x16xf32>
    %c0_50 = arith.constant 0 : index
    %c7 = arith.constant 7 : index
    %c0_51 = arith.constant 0 : index
    %c0_52 = arith.constant 0 : index
    %50 = vector.load %arg4[%c0_50, %c7, %c0_51, %c0_52] : memref<1x8x16x16xf32, #tpu.memory_space<vmem>>, vector<1x1x16x16xf32>
    %51 = vector.shape_cast %50 : vector<1x1x16x16xf32> to vector<16x16xf32>
    %52 = vector.shape_cast %49 : vector<16x16xf32> to vector<1x1x16x16xf32>
    tpu.vector_store %arg4[%c0_50, %c7, %c0_51, %c0_52], %52 {strides = array<i32>} : memref<1x8x16x16xf32, #tpu.memory_space<vmem>>, vector<1x1x16x16xf32>,
    return
  }
  func.func @transform_0(%arg0: i32) -> (i32, i32, i32) {
    %c0_i32 = arith.constant 0 : i32
    %c0_i32_0 = arith.constant 0 : i32
    %c0_i32_1 = arith.constant 0 : i32
    return %arg0, %c0_i32, %c0_i32_0 : i32, i32, i32
  }
  func.func @transform_1(%arg0: i32) -> (i32, i32) {
    %c0_i32 = arith.constant 0 : i32
    %c0_i32_0 = arith.constant 0 : i32
    %c0_i32_1 = arith.constant 0 : i32
    return %c0_i32, %c0_i32_0 : i32, i32
  }
  func.func @transform_2(%arg0: i32) -> (i32, i32) {
    %c0_i32 = arith.constant 0 : i32
    %c0_i32_0 = arith.constant 0 : i32
    %c0_i32_1 = arith.constant 0 : i32
    return %c0_i32, %c0_i32_0 : i32, i32
  }
  func.func @transform_3(%arg0: i32) -> (i32, i32, i32, i32) {
    %c0_i32 = arith.constant 0 : i32
    %c0_i32_0 = arith.constant 0 : i32
    %c0_i32_1 = arith.constant 0 : i32
    %c0_i32_2 = arith.constant 0 : i32
    return %arg0, %c0_i32, %c0_i32_0, %c0_i32_1 : i32, i32, i32, i32
  }
}

</mosaic_0001>

<llo_original>
// kernel: segmentation_forward.3
$region0: #{segmentation_forward.3}
  #allocation0 [shape = 'u32[]', space=smem, size = 0x4, offset = 0x4, fixed_abs, tag = 'smem constant byte address 0x4 - core index']
  #allocation1 [shape = 'u32[144,128]{1,0:T(1,128)}', space=vmem, size = 0x12000, scoped, tag = 'internal scratch']
  %s0 = inlined_call_operand.vmem [shape: bf16[2,32,82], index: 0, kind: input, shape index: {}]
  %s1 = inlined_call_operand.vmem [shape: bf16[32,72], index: 1, kind: input, shape index: {}]
  %s2 = inlined_call_operand.vmem [shape: bf16[2,32,72], index: 2, kind: output, shape index: {}]
  %s3 = sld [smem:[#allocation0]]
  $region41: #{segmentation_forward.3} parent=0
    _
  %s5 = ssub.s32 1, %s3
  %s6 = scalar_select 0, %s5, %s3
  loop: start=0, step=1, limit=4
  $region2: #{segmentation_forward.3} parent=0 // loop_pre_header
    _
  $region3: #{segmentation_forward.3} parent=0 // loop_header
    %s8 = sphi 0, %s12
    %p9 = scmp.ge.s32.totalorder %s8, 4
    %s18 = sphi 0, %s20
    %s21 = sphi 0, %s18
    %s22 = sphi 0, %s21
    %s38 = sphi 0, %s22
    %s42 = sphi 0, %s42
    %s44 = sphi 0, %s42
    %s45 = sphi 0, %s44
    %s59 = sphi 0, %s45
    %s65 = sphi 0, %s67
    %s68 = sphi 0, %s65
    %s69 = sphi 0, %s68
    %s85 = sphi 0, %s69
  $region4: #{segmentation_forward.3} parent=0 // loop_header_branch
    %11 = sbr.rel (%p9) target = $region8
  $region5: #{segmentation_forward.3} parent=0 // loop_body
    %s13 = ssub.s32 %s8, 1
    %s14 = ssub.s32 %s8, 2
    %s15 = sadd.s32 %s8, 1
    %s16 = ssub.s32 %s8, %s15
    %p17 = scmp.eq.s32.totalorder %s16, 0
    %s19 = sadd.s32 %s18, 1
    %s20 = scalar_select %p17, %s18, %s19
    %p23 = pneg %p17
    %p24 = scmp.eq.s32.totalorder %s8, 1
    %p25 = por %p23, %p24
    %p26 = scmp.ne.s32.totalorder %s18, %s21
    %p27 = scmp.eq.s32.totalorder %s8, 0
    %p28 = por %p26, %p27
    %p29 = scmp.ne.s32.totalorder %s18, %s21
    %p30 = scmp.eq.s32.totalorder %s13, 1
    %p31 = por %p29, %p30
    %p32 = scmp.ne.s32.totalorder %s21, %s22
    %p33 = scmp.eq.s32.totalorder %s13, 0
    %p34 = por %p32, %p33
    %p35 = scmp.ne.s32.totalorder %s21, %s22
    %p36 = scmp.eq.s32.totalorder %s14, 1
    %p37 = por %p35, %p36
    %p39 = scmp.ne.s32.totalorder %s22, %s38
    %p40 = scmp.eq.s32.totalorder %s14, 0
    %p41 = por %p39, %p40
    %s43 = sadd.s32 %s42, 1
    %p46 = scmp.eq.s32.totalorder %s8, 1
    %p47 = scmp.ne.s32.totalorder %s42, %s44
    %p48 = scmp.eq.s32.totalorder %s8, 0
    %p49 = por %p47, %p48
    %p50 = scmp.ne.s32.totalorder %s42, %s44
    %p51 = scmp.eq.s32.totalorder %s13, 1
    %p52 = por %p50, %p51
    %p53 = scmp.ne.s32.totalorder %s44, %s45
    %p54 = scmp.eq.s32.totalorder %s13, 0
    %p55 = por %p53, %p54
    %p56 = scmp.ne.s32.totalorder %s44, %s45
    %p57 = scmp.eq.s32.totalorder %s14, 1
    %p58 = por %p56, %p57
    %p60 = scmp.ne.s32.totalorder %s45, %s59
    %p61 = scmp.eq.s32.totalorder %s14, 0
    %p62 = por %p60, %p61
    %s63 = ssub.s32 %s8, %s15
    %p64 = scmp.eq.s32.totalorder %s63, 0
    %s66 = sadd.s32 %s65, 1
    %s67 = scalar_select %p64, %s65, %s66
    %p70 = pneg %p64
    %p71 = scmp.eq.s32.totalorder %s8, 1
    %p72 = por %p70, %p71
    %p73 = scmp.ne.s32.totalorder %s65, %s68
    %p74 = scmp.eq.s32.totalorder %s8, 0
    %p75 = por %p73, %p74
    %p76 = scmp.ne.s32.totalorder %s65, %s68
    %p77 = scmp.eq.s32.totalorder %s13, 1
    %p78 = por %p76, %p77
    %p79 = scmp.ne.s32.totalorder %s68, %s69
    %p80 = scmp.eq.s32.totalorder %s13, 0
    %p81 = por %p79, %p80
    %p82 = scmp.ne.s32.totalorder %s68, %s69
    %p83 = scmp.eq.s32.totalorder %s14, 1
    %p84 = por %p82, %p83
    %p86 = scmp.ne.s32.totalorder %s69, %s85
    %p87 = scmp.eq.s32.totalorder %s14, 0
    %p88 = por %p86, %p87
    %p89 = scmp.le.s32.totalorder 1, %s8
    %p90 = scmp.lt.s32.totalorder %s8, 3
    %p91 = pnand %p89, %p90
    %p92 = pneg %p91
    // Predicated region
    $region9: #{segmentation_forward.3} parent=5 // pred_check
      _
    $region10: #{segmentation_forward.3} parent=5 // pred_check_branch
      %94 = sbr.rel (%p91) target = $region12
    $region11: #{segmentation_forward.3} parent=5 // pred_region
      %s95 = ssub.s32 %s8, 1
      // Predicated region
      $region13: #{segmentation_forward.3} parent=11 // pred_check
        %p96 = pneg %p55
      $region14: #{segmentation_forward.3} parent=11 // pred_check_branch
        %98 = sbr.rel (%p96) target = $region16
      $region15: #{segmentation_forward.3} parent=11 // pred_region
        _
      $region16: #{segmentation_forward.3} parent=11 // pred_fallthru
        _
    $region12: #{segmentation_forward.3} parent=5 // pred_fallthru
      _
    %p99 = scmp.lt.s32.totalorder %s8, 2
    // Predicated region
    $region17: #{segmentation_forward.3} parent=5 // pred_check
      %p100 = pneg %p99
    $region18: #{segmentation_forward.3} parent=5 // pred_check_branch
      %102 = sbr.rel (%p100) target = $region20
    $region19: #{segmentation_forward.3} parent=5 // pred_region
      // Predicated region
      $region21: #{segmentation_forward.3} parent=19 // pred_check
        %p103 = pneg %p28
      $region22: #{segmentation_forward.3} parent=19 // pred_check_branch
        %105 = sbr.rel (%p103) target = $region24
      $region23: #{segmentation_forward.3} parent=19 // pred_region
        %p106 = scmp.lt.s32.totalorder %s8, 1
        %s107 = scalar_select %p106, %s8, 1
        %s108 = smul.addr %s107, 4
        %s109 = smul.addr %s108, 4
        %s110 = scalar_lea.vmem %s0, %s109
      $region24: #{segmentation_forward.3} parent=19 // pred_fallthru
        _
    $region20: #{segmentation_forward.3} parent=5 // pred_fallthru
      _
    %p111 = scmp.le.s32.totalorder 1, %s8
    %p112 = scmp.lt.s32.totalorder %s8, 3
    %p113 = pnand %p111, %p112
    %p114 = pneg %p113
    // Predicated region
    $region25: #{segmentation_forward.3} parent=5 // pred_check
      _
    $region26: #{segmentation_forward.3} parent=5 // pred_check_branch
      %116 = sbr.rel (%p113) target = $region28
    $region27: #{segmentation_forward.3} parent=5 // pred_region
      %s117 = ssub.s32 %s8, 1
      %p118 = scmp.lt.s32.totalorder %s13, 1
      %s119 = scalar_select %p118, %s13, 1
      %s120 = smul.addr %s119, 4
      %s121 = smul.addr %s120, 4
      %s122 = scalar_lea.vmem %s0, %s121
      %p123 = pneg %p34
      %p124 = pneg %p31
      %p125 = pneg %p55
      %p126 = pneg %p52
      %p127 = pneg %p81
      %p128 = pneg %p78
      %p129 = scmp.lt.s32.totalorder %s13, 1
      %s130 = scalar_select %p129, %s13, 1
      %s131 = smul.addr %s130, 4
      %s132 = smul.addr %s131, 4
      %s133 = scalar_lea.vmem %s2, %s132
      %p134 = scmp.lt.s32.totalorder %s13, 1
      %s135 = scalar_select %p134, %s13, 1
      %s136 = smul.addr %s135, 4
      %s137 = smul.addr %s136, 4
      %s138 = scalar_lea.vmem %s0, %s137
      %p139 = scmp.lt.s32.totalorder %s13, 1
      %s140 = scalar_select %p139, %s13, 1
      %s141 = smul.addr %s140, 4
      %s142 = smul.addr %s141, 4
      %s143 = scalar_lea.vmem %s2, %s142
      %v145 = vld [vmem:[%s1] sm:$0xf]
      %v146 = vld [vmem:[%s1 + $0x4] sm:$0xf]
      %v147 = vld [vmem:[%s1 + $0x8] sm:$0xf]
      %v148 = vld [vmem:[%s1 + $0xc] sm:$0xf]
      %v149 = vld [vmem:[%s138] sm:$0xf]
      %v150 = vld [vmem:[%s138 + $0x4] sm:$0xf]
      %v155 = vunpack.c.l.b16 %v145
      %v156 = vunpack.c.l.b16 %v146
      %v157 = vunpack.c.l.b16 %v147
      %v158 = vunpack.c.l.b16 %v148
      %v159 = vpack.c.b16 %v156, %v155
      %v160 = vpack.c.b16 %v158, %v157
      %161 = vrot.lane.b32.xlu0 %v159, 120
      %v162 = vpop.permute.xlu0 %161
      %163 = vrot.lane.b32.xlu0 %v160, 120
      %v164 = vpop.permute.xlu0 %163
      %vm165 = vcmask 64512
      %v167 = vsel %vm165, %v162, 0
      %v170 = vsel %vm165, %v164, 0
      %vm172 = vcmask 1043456
      %v174 = vsel %vm172, %v150, 0
      %176 = vmatprep.subr.bf16.mxu0 0
      %177 = vmatpush1.bf16.msra.mxu0 %v174
      %178 = vmatprep.subr.bf16.mxu0 0
      %179 = vmatpush1.bf16.msra.mxu0 0
      %180 = vmatprep.subr.bf16.mxu0 0
      %181 = vmatpush1.bf16.msra.mxu0 0
      %182 = vmatprep.subr.bf16.mxu0 0
      %183 = vmatpush1.bf16.msra.mxu0 0
      %184 = vmatprep.subr.bf16.mxu0 0
      %185 = vmatpush1.bf16.msra.mxu0 0
      %186 = vmatprep.subr.bf16.mxu0 0
      %187 = vmatpush1.bf16.msra.mxu0 0
      %188 = vmatprep.subr.bf16.mxu0 0
      %189 = vmatpush1.bf16.msra.mxu0 0
      %190 = vmatprep.subr.bf16.mxu0 0
      %191 = vmatpush1.bf16.msra.mxu0 0
      %192 = vmatprep.subr.bf16.mxu0 0
      %193 = vmatpush1.bf16.msra.mxu0 0
      %194 = vmatprep.subr.bf16.mxu0 0
      %195 = vmatpush1.bf16.msra.mxu0 0
      %196 = vmatprep.subr.bf16.mxu0 0
      %197 = vmatpush1.bf16.msra.mxu0 0
      %198 = vmatprep.subr.bf16.mxu0 0
      %199 = vmatpush1.bf16.msra.mxu0 0
      %200 = vmatprep.subr.bf16.mxu0 0
      %201 = vmatpush1.bf16.msra.mxu0 0
      %202 = vmatprep.subr.bf16.mxu0 0
      %203 = vmatpush1.bf16.msra.mxu0 0
      %204 = vmatprep.subr.bf16.mxu0 0
      %205 = vmatpush1.bf16.msra.mxu0 0
      %206 = vmatprep.subr.bf16.mxu0 0
      %207 = vmatpush1.bf16.msra.mxu0 0
      %208 = vmatprep.mubr.bf16.mxu0 0
      %209 = vmatmul.mubr.bf16.gmra.mrb[0].mxu0 %v167
      %v210 = vpop.f32.mrb[0].mxu0
      %v211 = vadd.f32 0.0, %v210
      %v212 = vpop.f32.mrb[0].mxu0
      %v213 = vpop.f32.mrb[0].mxu0
      %v214 = vadd.f32 0.0, %v213
      %v215 = vpop.f32.mrb[0].mxu0
      %216 = vmatprep.mubr.bf16.mxu0 0
      %217 = vmatmul.mubr.bf16.gmra.mrb[0].mxu0 %v170
      %v218 = vpop.f32.mrb[0].mxu0
      %v219 = vadd.f32 0.0, %v218
      %v220 = vpop.f32.mrb[0].mxu0
      %v221 = vpop.f32.mrb[0].mxu0
      %v222 = vadd.f32 0.0, %v221
      %v223 = vpop.f32.mrb[0].mxu0
      %224 = vdwg.mxu0
      %v226 = vsel %vm165, %v159, 0
      %v229 = vsel %vm165, %v160, 0
      %v232 = vsel %vm172, %v149, 0
      %234 = vmatprep.subr.bf16.mxu0 0
      %235 = vmatpush1.bf16.msra.mxu0 %v232
      %236 = vmatprep.subr.bf16.mxu0 0
      %237 = vmatpush1.bf16.msra.mxu0 0
      %238 = vmatprep.subr.bf16.mxu0 0
      %239 = vmatpush1.bf16.msra.mxu0 0
      %240 = vmatprep.subr.bf16.mxu0 0
      %241 = vmatpush1.bf16.msra.mxu0 0
      %242 = vmatprep.subr.bf16.mxu0 0
      %243 = vmatpush1.bf16.msra.mxu0 0
      %244 = vmatprep.subr.bf16.mxu0 0
      %245 = vmatpush1.bf16.msra.mxu0 0
      %246 = vmatprep.subr.bf16.mxu0 0
      %247 = vmatpush1.bf16.msra.mxu0 0
      %248 = vmatprep.subr.bf16.mxu0 0
      %249 = vmatpush1.bf16.msra.mxu0 0
      %250 = vmatprep.subr.bf16.mxu0 0
      %251 = vmatpush1.bf16.msra.mxu0 0
      %252 = vmatprep.subr.bf16.mxu0 0
      %253 = vmatpush1.bf16.msra.mxu0 0
      %254 = vmatprep.subr.bf16.mxu0 0
      %255 = vmatpush1.bf16.msra.mxu0 0
      %256 = vmatprep.subr.bf16.mxu0 0
      %257 = vmatpush1.bf16.msra.mxu0 0
      %258 = vmatprep.subr.bf16.mxu0 0
      %259 = vmatpush1.bf16.msra.mxu0 0
      %260 = vmatprep.subr.bf16.mxu0 0
      %261 = vmatpush1.bf16.msra.mxu0 0
      %262 = vmatprep.subr.bf16.mxu0 0
      %263 = vmatpush1.bf16.msra.mxu0 0
      %264 = vmatprep.subr.bf16.mxu0 0
      %265 = vmatpush1.bf16.msra.mxu0 0
      %266 = vmatprep.mubr.bf16.mxu0 0
      %267 = vmatmul.mubr.bf16.gmra.mrb[0].mxu0 %v226
      %v268 = vpop.f32.mrb[0].mxu0
      %v269 = vadd.f32 %v211, %v268
      %v270 = vpop.f32.mrb[0].mxu0
      %v271 = vpop.f32.mrb[0].mxu0
      %v272 = vadd.f32 %v214, %v271
      %v273 = vpop.f32.mrb[0].mxu0
      %274 = vmatprep.mubr.bf16.mxu0 0
      %275 = vmatmul.mubr.bf16.gmra.mrb[0].mxu0 %v229
      %v276 = vpop.f32.mrb[0].mxu0
      %v277 = vadd.f32 %v219, %v276
      %v278 = vpop.f32.mrb[0].mxu0
      %v279 = vpop.f32.mrb[0].mxu0
      %v280 = vadd.f32 %v222, %v279
      %v281 = vpop.f32.mrb[0].mxu0
      %282 = vdwg.mxu0
      %283 = vrot.lane.b32.xlu0 %v159, 112
      %v284 = vpop.permute.xlu0 %283
      %285 = vrot.lane.b32.xlu0 %v160, 112
      %v286 = vpop.permute.xlu0 %285
      %v288 = vunpack.c.l.b16 %v149
      %v289 = vpack.c.b16 %v288, %v288
      %290 = vrot.lane.b32.xlu0 %v289, 127
      %v291 = vpop.permute.xlu0 %290
      %v293 = vsel %vm165, %v284, 0
      %v296 = vsel %vm165, %v286, 0
      %v299 = vsel %vm172, %v291, 0
      %301 = vmatprep.subr.bf16.mxu0 0
      %302 = vmatpush1.bf16.msra.mxu0 %v299
      %303 = vmatprep.subr.bf16.mxu0 0
      %304 = vmatpush1.bf16.msra.mxu0 0
      %305 = vmatprep.subr.bf16.mxu0 0
      %306 = vmatpush1.bf16.msra.mxu0 0
      %307 = vmatprep.subr.bf16.mxu0 0
      %308 = vmatpush1.bf16.msra.mxu0 0
      %309 = vmatprep.subr.bf16.mxu0 0
      %310 = vmatpush1.bf16.msra.mxu0 0
      %311 = vmatprep.subr.bf16.mxu0 0
      %312 = vmatpush1.bf16.msra.mxu0 0
      %313 = vmatprep.subr.bf16.mxu0 0
      %314 = vmatpush1.bf16.msra.mxu0 0
      %315 = vmatprep.subr.bf16.mxu0 0
      %316 = vmatpush1.bf16.msra.mxu0 0
      %317 = vmatprep.subr.bf16.mxu0 0
      %318 = vmatpush1.bf16.msra.mxu0 0
      %319 = vmatprep.subr.bf16.mxu0 0
      %320 = vmatpush1.bf16.msra.mxu0 0
      %321 = vmatprep.subr.bf16.mxu0 0
      %322 = vmatpush1.bf16.msra.mxu0 0
      %323 = vmatprep.subr.bf16.mxu0 0
      %324 = vmatpush1.bf16.msra.mxu0 0
      %325 = vmatprep.subr.bf16.mxu0 0
      %326 = vmatpush1.bf16.msra.mxu0 0
      %327 = vmatprep.subr.bf16.mxu0 0
      %328 = vmatpush1.bf16.msra.mxu0 0
      %329 = vmatprep.subr.bf16.mxu0 0
      %330 = vmatpush1.bf16.msra.mxu0 0
      %331 = vmatprep.subr.bf16.mxu0 0
      %332 = vmatpush1.bf16.msra.mxu0 0
      %333 = vmatprep.mubr.bf16.mxu0 0
      %334 = vmatmul.mubr.bf16.gmra.mrb[0].mxu0 %v293
      %v335 = vpop.f32.mrb[0].mxu0
      %v336 = vadd.f32 0.0, %v335
      %v337 = vpop.f32.mrb[0].mxu0
      %v338 = vpop.f32.mrb[0].mxu0
      %v339 = vadd.f32 0.0, %v338
      %v340 = vpop.f32.mrb[0].mxu0
      %341 = vmatprep.mubr.bf16.mxu0 0
      %342 = vmatmul.mubr.bf16.gmra.mrb[0].mxu0 %v296
      %v343 = vpop.f32.mrb[0].mxu0
      %v344 = vadd.f32 0.0, %v343
      %v345 = vpop.f32.mrb[0].mxu0
      %v346 = vpop.f32.mrb[0].mxu0
      %v347 = vadd.f32 0.0, %v346
      %v348 = vpop.f32.mrb[0].mxu0
      %349 = vdwg.mxu0
      %v350 = vadd.f32 %v269, %v336
      %v351 = vadd.f32 %v272, %v339
      %v352 = vadd.f32 %v277, %v344
      %v353 = vadd.f32 %v280, %v347
      %v354 = vld [vmem:[%s138 + $0x8] sm:$0xf]
      %355 = vrot.lane.b32.xlu0 %v159, 104
      %v356 = vpop.permute.xlu0 %355
      %357 = vrot.lane.b32.xlu0 %v160, 104
      %v358 = vpop.permute.xlu0 %357
      %v360 = vsel %vm165, %v356, 0
      %v363 = vsel %vm165, %v358, 0
      %v366 = vsel %vm172, %v354, 0
      %368 = vmatprep.subr.bf16.mxu0 0
      %369 = vmatpush1.bf16.msra.mxu0 %v366
      %370 = vmatprep.subr.bf16.mxu0 0
      %371 = vmatpush1.bf16.msra.mxu0 0
      %372 = vmatprep.subr.bf16.mxu0 0
      %373 = vmatpush1.bf16.msra.mxu0 0
      %374 = vmatprep.subr.bf16.mxu0 0
      %375 = vmatpush1.bf16.msra.mxu0 0
      %376 = vmatprep.subr.bf16.mxu0 0
      %377 = vmatpush1.bf16.msra.mxu0 0
      %378 = vmatprep.subr.bf16.mxu0 0
      %379 = vmatpush1.bf16.msra.mxu0 0
      %380 = vmatprep.subr.bf16.mxu0 0
      %381 = vmatpush1.bf16.msra.mxu0 0
      %382 = vmatprep.subr.bf16.mxu0 0
      %383 = vmatpush1.bf16.msra.mxu0 0
      %384 = vmatprep.subr.bf16.mxu0 0
      %385 = vmatpush1.bf16.msra.mxu0 0
      %386 = vmatprep.subr.bf16.mxu0 0
      %387 = vmatpush1.bf16.msra.mxu0 0
      %388 = vmatprep.subr.bf16.mxu0 0
      %389 = vmatpush1.bf16.msra.mxu0 0
      %390 = vmatprep.subr.bf16.mxu0 0
      %391 = vmatpush1.bf16.msra.mxu0 0
      %392 = vmatprep.subr.bf16.mxu0 0
      %393 = vmatpush1.bf16.msra.mxu0 0
      %394 = vmatprep.subr.bf16.mxu0 0
      %395 = vmatpush1.bf16.msra.mxu0 0
      %396 = vmatprep.subr.bf16.mxu0 0
      %397 = vmatpush1.bf16.msra.mxu0 0
      %398 = vmatprep.subr.bf16.mxu0 0
      %399 = vmatpush1.bf16.msra.mxu0 0
      %400 = vmatprep.mubr.bf16.mxu0 0
      %401 = vmatmul.mubr.bf16.gmra.mrb[0].mxu0 %v360
      %v402 = vpop.f32.mrb[0].mxu0
      %v403 = vadd.f32 0.0, %v402
      %v404 = vpop.f32.mrb[0].mxu0
      %v405 = vpop.f32.mrb[0].mxu0
      %v406 = vadd.f32 0.0, %v405
      %v407 = vpop.f32.mrb[0].mxu0
      %408 = vmatprep.mubr.bf16.mxu0 0
      %409 = vmatmul.mubr.bf16.gmra.mrb[0].mxu0 %v363
      %v410 = vpop.f32.mrb[0].mxu0
      %v411 = vadd.f32 0.0, %v410
      %v412 = vpop.f32.mrb[0].mxu0
      %v413 = vpop.f32.mrb[0].mxu0
      %v414 = vadd.f32 0.0, %v413
      %v415 = vpop.f32.mrb[0].mxu0
      %416 = vdwg.mxu0
      %v417 = vadd.f32 %v350, %v403
      %v418 = vadd.f32 %v351, %v406
      %v419 = vadd.f32 %v352, %v411
      %v420 = vadd.f32 %v353, %v414
      %v421 = vld [vmem:[%s138 + $0xc] sm:$0xf]
      %422 = vrot.lane.b32.xlu0 %v159, 96
      %v423 = vpop.permute.xlu0 %422
      %424 = vrot.lane.b32.xlu0 %v160, 96
      %v425 = vpop.permute.xlu0 %424
      %v427 = vsel %vm165, %v423, 0
      %v430 = vsel %vm165, %v425, 0
      %v433 = vsel %vm172, %v421, 0
      %435 = vmatprep.subr.bf16.mxu0 0
      %436 = vmatpush1.bf16.msra.mxu0 %v433
      %437 = vmatprep.subr.bf16.mxu0 0
      %438 = vmatpush1.bf16.msra.mxu0 0
      %439 = vmatprep.subr.bf16.mxu0 0
      %440 = vmatpush1.bf16.msra.mxu0 0
      %441 = vmatprep.subr.bf16.mxu0 0
      %442 = vmatpush1.bf16.msra.mxu0 0
      %443 = vmatprep.subr.bf16.mxu0 0
      %444 = vmatpush1.bf16.msra.mxu0 0
      %445 = vmatprep.subr.bf16.mxu0 0
      %446 = vmatpush1.bf16.msra.mxu0 0
      %447 = vmatprep.subr.bf16.mxu0 0
      %448 = vmatpush1.bf16.msra.mxu0 0
      %449 = vmatprep.subr.bf16.mxu0 0
      %450 = vmatpush1.bf16.msra.mxu0 0
      %451 = vmatprep.subr.bf16.mxu0 0
      %452 = vmatpush1.bf16.msra.mxu0 0
      %453 = vmatprep.subr.bf16.mxu0 0
      %454 = vmatpush1.bf16.msra.mxu0 0
      %455 = vmatprep.subr.bf16.mxu0 0
      %456 = vmatpush1.bf16.msra.mxu0 0
      %457 = vmatprep.subr.bf16.mxu0 0
      %458 = vmatpush1.bf16.msra.mxu0 0
      %459 = vmatprep.subr.bf16.mxu0 0
      %460 = vmatpush1.bf16.msra.mxu0 0
      %461 = vmatprep.subr.bf16.mxu0 0
      %462 = vmatpush1.bf16.msra.mxu0 0
      %463 = vmatprep.subr.bf16.mxu0 0
      %464 = vmatpush1.bf16.msra.mxu0 0
      %465 = vmatprep.subr.bf16.mxu0 0
      %466 = vmatpush1.bf16.msra.mxu0 0
      %467 = vmatprep.mubr.bf16.mxu0 0
      %468 = vmatmul.mubr.bf16.gmra.mrb[0].mxu0 %v427
      %v469 = vpop.f32.mrb[0].mxu0
      %v470 = vadd.f32 0.0, %v469
      %v471 = vpop.f32.mrb[0].mxu0
      %v472 = vpop.f32.mrb[0].mxu0
      %v473 = vadd.f32 0.0, %v472
      %v474 = vpop.f32.mrb[0].mxu0
      %475 = vmatprep.mubr.bf16.mxu0 0
      %476 = vmatmul.mubr.bf16.gmra.mrb[0].mxu0 %v430
      %v477 = vpop.f32.mrb[0].mxu0
      %v478 = vadd.f32 0.0, %v477
      %v479 = vpop.f32.mrb[0].mxu0
      %v480 = vpop.f32.mrb[0].mxu0
      %v481 = vadd.f32 0.0, %v480
      %v482 = vpop.f32.mrb[0].mxu0
      %483 = vdwg.mxu0
      %v484 = vadd.f32 %v417, %v470
      %v485 = vadd.f32 %v418, %v473
      %v486 = vadd.f32 %v419, %v478
      %v487 = vadd.f32 %v420, %v481
      %488 = vrot.lane.b32.xlu0 %v159, 88
      %v489 = vpop.permute.xlu0 %488
      %490 = vrot.lane.b32.xlu0 %v160, 88
      %v491 = vpop.permute.xlu0 %490
      %v493 = vunpack.c.l.b16 %v354
      %v494 = vpack.c.b16 %v493, %v493
      %495 = vrot.lane.b32.xlu0 %v494, 127
      %v496 = vpop.permute.xlu0 %495
      %v498 = vsel %vm165, %v489, 0
      %v501 = vsel %vm165, %v491, 0
      %v504 = vsel %vm172, %v496, 0
      %506 = vmatprep.subr.bf16.mxu0 0
      %507 = vmatpush1.bf16.msra.mxu0 %v504
      %508 = vmatprep.subr.bf16.mxu0 0
      %509 = vmatpush1.bf16.msra.mxu0 0
      %510 = vmatprep.subr.bf16.mxu0 0
      %511 = vmatpush1.bf16.msra.mxu0 0
      %512 = vmatprep.subr.bf16.mxu0 0
      %513 = vmatpush1.bf16.msra.mxu0 0
      %514 = vmatprep.subr.bf16.mxu0 0
      %515 = vmatpush1.bf16.msra.mxu0 0
      %516 = vmatprep.subr.bf16.mxu0 0
      %517 = vmatpush1.bf16.msra.mxu0 0
      %518 = vmatprep.subr.bf16.mxu0 0
      %519 = vmatpush1.bf16.msra.mxu0 0
      %520 = vmatprep.subr.bf16.mxu0 0
      %521 = vmatpush1.bf16.msra.mxu0 0
      %522 = vmatprep.subr.bf16.mxu0 0
      %523 = vmatpush1.bf16.msra.mxu0 0
      %524 = vmatprep.subr.bf16.mxu0 0
      %525 = vmatpush1.bf16.msra.mxu0 0
      %526 = vmatprep.subr.bf16.mxu0 0
      %527 = vmatpush1.bf16.msra.mxu0 0
      %528 = vmatprep.subr.bf16.mxu0 0
      %529 = vmatpush1.bf16.msra.mxu0 0
      %530 = vmatprep.subr.bf16.mxu0 0
      %531 = vmatpush1.bf16.msra.mxu0 0
      %532 = vmatprep.subr.bf16.mxu0 0
      %533 = vmatpush1.bf16.msra.mxu0 0
      %534 = vmatprep.subr.bf16.mxu0 0
      %535 = vmatpush1.bf16.msra.mxu0 0
      %536 = vmatprep.subr.bf16.mxu0 0
      %537 = vmatpush1.bf16.msra.mxu0 0
      %538 = vmatprep.mubr.bf16.mxu0 0
      %539 = vmatmul.mubr.bf16.gmra.mrb[0].mxu0 %v498
      %v540 = vpop.f32.mrb[0].mxu0
      %v541 = vadd.f32 0.0, %v540
      %v542 = vpop.f32.mrb[0].mxu0
      %v543 = vpop.f32.mrb[0].mxu0
      %v544 = vadd.f32 0.0, %v543
      %v545 = vpop.f32.mrb[0].mxu0
      %546 = vmatprep.mubr.bf16.mxu0 0
      %547 = vmatmul.mubr.bf16.gmra.mrb[0].mxu0 %v501
      %v548 = vpop.f32.mrb[0].mxu0
      %v549 = vadd.f32 0.0, %v548
      %v550 = vpop.f32.mrb[0].mxu0
      %v551 = vpop.f32.mrb[0].mxu0
      %v552 = vadd.f32 0.0, %v551
      %v553 = vpop.f32.mrb[0].mxu0
      %554 = vdwg.mxu0
      %v555 = vadd.f32 %v484, %v541
      %v556 = vadd.f32 %v485, %v544
      %v557 = vadd.f32 %v486, %v549
      %v558 = vadd.f32 %v487, %v552
      %559 = vrot.lane.b32.xlu0 %v159, 80
      %v560 = vpop.permute.xlu0 %559
      %561 = vrot.lane.b32.xlu0 %v160, 80
      %v562 = vpop.permute.xlu0 %561
      %563 = vrot.lane.b32.xlu0 %v289, 119
      %v564 = vpop.permute.xlu0 %563
      %v566 = vsel %vm165, %v560, 0
      %v569 = vsel %vm165, %v562, 0
      %v572 = vsel %vm172, %v564, 0
      %574 = vmatprep.subr.bf16.mxu0 0
      %575 = vmatpush1.bf16.msra.mxu0 %v572
      %576 = vmatprep.subr.bf16.mxu0 0
      %577 = vmatpush1.bf16.msra.mxu0 0
      %578 = vmatprep.subr.bf16.mxu0 0
      %579 = vmatpush1.bf16.msra.mxu0 0
      %580 = vmatprep.subr.bf16.mxu0 0
      %581 = vmatpush1.bf16.msra.mxu0 0
      %582 = vmatprep.subr.bf16.mxu0 0
      %583 = vmatpush1.bf16.msra.mxu0 0
      %584 = vmatprep.subr.bf16.mxu0 0
      %585 = vmatpush1.bf16.msra.mxu0 0
      %586 = vmatprep.subr.bf16.mxu0 0
      %587 = vmatpush1.bf16.msra.mxu0 0
      %588 = vmatprep.subr.bf16.mxu0 0
      %589 = vmatpush1.bf16.msra.mxu0 0
      %590 = vmatprep.subr.bf16.mxu0 0
      %591 = vmatpush1.bf16.msra.mxu0 0
      %592 = vmatprep.subr.bf16.mxu0 0
      %593 = vmatpush1.bf16.msra.mxu0 0
      %594 = vmatprep.subr.bf16.mxu0 0
      %595 = vmatpush1.bf16.msra.mxu0 0
      %596 = vmatprep.subr.bf16.mxu0 0
      %597 = vmatpush1.bf16.msra.mxu0 0
      %598 = vmatprep.subr.bf16.mxu0 0
      %599 = vmatpush1.bf16.msra.mxu0 0
      %600 = vmatprep.subr.bf16.mxu0 0
      %601 = vmatpush1.bf16.msra.mxu0 0
      %602 = vmatprep.subr.bf16.mxu0 0
      %603 = vmatpush1.bf16.msra.mxu0 0
      %604 = vmatprep.subr.bf16.mxu0 0
      %605 = vmatpush1.bf16.msra.mxu0 0
      %606 = vmatprep.mubr.bf16.mxu0 0
      %607 = vmatmul.mubr.bf16.gmra.mrb[0].mxu0 %v566
      %v608 = vpop.f32.mrb[0].mxu0
      %v609 = vadd.f32 0.0, %v608
      %v610 = vpop.f32.mrb[0].mxu0
      %v611 = vpop.f32.mrb[0].mxu0
      %v612 = vadd.f32 0.0, %v611
      %v613 = vpop.f32.mrb[0].mxu0
      %614 = vmatprep.mubr.bf16.mxu0 0
      %615 = vmatmul.mubr.bf16.gmra.mrb[0].mxu0 %v569
      %v616 = vpop.f32.mrb[0].mxu0
      %v617 = vadd.f32 0.0, %v616
      %v618 = vpop.f32.mrb[0].mxu0
      %v619 = vpop.f32.mrb[0].mxu0
      %v620 = vadd.f32 0.0, %v619
      %v621 = vpop.f32.mrb[0].mxu0
      %622 = vdwg.mxu0
      %v623 = vadd.f32 %v555, %v609
      %v624 = vadd.f32 %v556, %v612
      %v625 = vadd.f32 %v557, %v617
      %v626 = vadd.f32 %v558, %v620
      %627 = vrot.lane.b32.xlu0 %v159, 72
      %v628 = vpop.permute.xlu0 %627
      %629 = vrot.lane.b32.xlu0 %v160, 72
      %v630 = vpop.permute.xlu0 %629
      %v632 = vunpack.c.l.b16 %v150
      %v633 = vpack.c.b16 %v632, %v632
      %634 = vrot.lane.b32.xlu0 %v633, 119
      %v635 = vpop.permute.xlu0 %634
      %v637 = vsel %vm165, %v628, 0
      %v640 = vsel %vm165, %v630, 0
      %v643 = vsel %vm172, %v635, 0
      %645 = vmatprep.subr.bf16.mxu0 0
      %646 = vmatpush1.bf16.msra.mxu0 %v643
      %647 = vmatprep.subr.bf16.mxu0 0
      %648 = vmatpush1.bf16.msra.mxu0 0
      %649 = vmatprep.subr.bf16.mxu0 0
      %650 = vmatpush1.bf16.msra.mxu0 0
      %651 = vmatprep.subr.bf16.mxu0 0
      %652 = vmatpush1.bf16.msra.mxu0 0
      %653 = vmatprep.subr.bf16.mxu0 0
      %654 = vmatpush1.bf16.msra.mxu0 0
      %655 = vmatprep.subr.bf16.mxu0 0
      %656 = vmatpush1.bf16.msra.mxu0 0
      %657 = vmatprep.subr.bf16.mxu0 0
      %658 = vmatpush1.bf16.msra.mxu0 0
      %659 = vmatprep.subr.bf16.mxu0 0
      %660 = vmatpush1.bf16.msra.mxu0 0
      %661 = vmatprep.subr.bf16.mxu0 0
      %662 = vmatpush1.bf16.msra.mxu0 0
      %663 = vmatprep.subr.bf16.mxu0 0
      %664 = vmatpush1.bf16.msra.mxu0 0
      %665 = vmatprep.subr.bf16.mxu0 0
      %666 = vmatpush1.bf16.msra.mxu0 0
      %667 = vmatprep.subr.bf16.mxu0 0
      %668 = vmatpush1.bf16.msra.mxu0 0
      %669 = vmatprep.subr.bf16.mxu0 0
      %670 = vmatpush1.bf16.msra.mxu0 0
      %671 = vmatprep.subr.bf16.mxu0 0
      %672 = vmatpush1.bf16.msra.mxu0 0
      %673 = vmatprep.subr.bf16.mxu0 0
      %674 = vmatpush1.bf16.msra.mxu0 0
      %675 = vmatprep.subr.bf16.mxu0 0
      %676 = vmatpush1.bf16.msra.mxu0 0
      %677 = vmatprep.mubr.bf16.mxu0 0
      %678 = vmatmul.mubr.bf16.gmra.mrb[0].mxu0 %v637
      %v679 = vpop.f32.mrb[0].mxu0
      %v680 = vadd.f32 0.0, %v679
      %v681 = vpop.f32.mrb[0].mxu0
      %v682 = vpop.f32.mrb[0].mxu0
      %v683 = vadd.f32 0.0, %v682
      %v684 = vpop.f32.mrb[0].mxu0
      %685 = vmatprep.mubr.bf16.mxu0 0
      %686 = vmatmul.mubr.bf16.gmra.mrb[0].mxu0 %v640
      %v687 = vpop.f32.mrb[0].mxu0
      %v688 = vadd.f32 0.0, %v687
      %v689 = vpop.f32.mrb[0].mxu0
      %v690 = vpop.f32.mrb[0].mxu0
      %v691 = vadd.f32 0.0, %v690
      %v692 = vpop.f32.mrb[0].mxu0
      %693 = vdwg.mxu0
      %v694 = vadd.f32 %v623, %v680
      %v695 = vadd.f32 %v624, %v683
      %v696 = vadd.f32 %v625, %v688
      %v697 = vadd.f32 %v626, %v691
      %698 = vrot.lane.b32.xlu0 %v159, 64
      %v699 = vpop.permute.xlu0 %698
      %700 = vrot.lane.b32.xlu0 %v160, 64
      %v701 = vpop.permute.xlu0 %700
      %702 = vrot.lane.b32.xlu0 %v289, 118
      %v703 = vpop.permute.xlu0 %702
      %v705 = vsel %vm165, %v699, 0
      %v708 = vsel %vm165, %v701, 0
      %v711 = vsel %vm172, %v703, 0
      %713 = vmatprep.subr.bf16.mxu0 0
      %714 = vmatpush1.bf16.msra.mxu0 %v711
      %715 = vmatprep.subr.bf16.mxu0 0
      %716 = vmatpush1.bf16.msra.mxu0 0
      %717 = vmatprep.subr.bf16.mxu0 0
      %718 = vmatpush1.bf16.msra.mxu0 0
      %719 = vmatprep.subr.bf16.mxu0 0
      %720 = vmatpush1.bf16.msra.mxu0 0
      %721 = vmatprep.subr.bf16.mxu0 0
      %722 = vmatpush1.bf16.msra.mxu0 0
      %723 = vmatprep.subr.bf16.mxu0 0
      %724 = vmatpush1.bf16.msra.mxu0 0
      %725 = vmatprep.subr.bf16.mxu0 0
      %726 = vmatpush1.bf16.msra.mxu0 0
      %727 = vmatprep.subr.bf16.mxu0 0
      %728 = vmatpush1.bf16.msra.mxu0 0
      %729 = vmatprep.subr.bf16.mxu0 0
      %730 = vmatpush1.bf16.msra.mxu0 0
      %731 = vmatprep.subr.bf16.mxu0 0
      %732 = vmatpush1.bf16.msra.mxu0 0
      %733 = vmatprep.subr.bf16.mxu0 0
      %734 = vmatpush1.bf16.msra.mxu0 0
      %735 = vmatprep.subr.bf16.mxu0 0
      %736 = vmatpush1.bf16.msra.mxu0 0
      %737 = vmatprep.subr.bf16.mxu0 0
      %738 = vmatpush1.bf16.msra.mxu0 0
      %739 = vmatprep.subr.bf16.mxu0 0
      %740 = vmatpush1.bf16.msra.mxu0 0
      %741 = vmatprep.subr.bf16.mxu0 0
      %742 = vmatpush1.bf16.msra.mxu0 0
      %743 = vmatprep.subr.bf16.mxu0 0
      %744 = vmatpush1.bf16.msra.mxu0 0
      %745 = vmatprep.mubr.bf16.mxu0 0
      %746 = vmatmul.mubr.bf16.gmra.mrb[0].mxu0 %v705
      %v747 = vpop.f32.mrb[0].mxu0
      %v748 = vadd.f32 0.0, %v747
      %v749 = vpop.f32.mrb[0].mxu0
      %v750 = vpop.f32.mrb[0].mxu0
      %v751 = vadd.f32 0.0, %v750
      %v752 = vpop.f32.mrb[0].mxu0
      %753 = vmatprep.mubr.bf16.mxu0 0
      %754 = vmatmul.mubr.bf16.gmra.mrb[0].mxu0 %v708
      %v755 = vpop.f32.mrb[0].mxu0
      %v756 = vadd.f32 0.0, %v755
      %v757 = vpop.f32.mrb[0].mxu0
      %v758 = vpop.f32.mrb[0].mxu0
      %v759 = vadd.f32 0.0, %v758
      %v760 = vpop.f32.mrb[0].mxu0
      %761 = vdwg.mxu0
      %v762 = vadd.f32 %v694, %v748
      %v763 = vadd.f32 %v695, %v751
      %v764 = vadd.f32 %v696, %v756
      %v765 = vadd.f32 %v697, %v759
      %v766 = vmax.f32 %v762, 0.0
      %v767 = vmax.f32 %v763, 0.0
      %v768 = vmax.f32 %v764, 0.0
      %v769 = vmax.f32 %v765, 0.0
      %v770 = vpack.c.bf16 %v767, %v766
      %v771 = vpack.c.bf16 %v769, %v768
      %v774 = vunpack.c.l.b16 %v770
      %v775 = vunpack.c.h.b16 %v770
      %v776 = vunpack.c.l.b16 %v771
      %v777 = vunpack.c.h.b16 %v771
      %v778 = vpack.c.b16 %v774, %v774
      %v779 = vpack.c.b16 %v775, %v775
      %v780 = vpack.c.b16 %v776, %v776
      %v781 = vpack.c.b16 %v777, %v777
      %vm786 = vcmask 584704
      %787 = vst.msk [vmem:[%s143] sm:$0xf] %vm786, %v778
      %788 = vst.msk [vmem:[%s143 + $0x4] sm:$0xf] %vm786, %v779
      %789 = vst.msk [vmem:[%s143 + $0x8] sm:$0xf] %vm786, %v780
      %790 = vst.msk [vmem:[%s143 + $0xc] sm:$0xf] %vm786, %v781
      %p791 = scmp.lt.s32.totalorder %s13, 1
      %s792 = scalar_select %p791, %s13, 1
      %s793 = smul.addr %s792, 4
      %s794 = smul.addr %s793, 4
      %s795 = scalar_lea.vmem %s2, %s794
      // Predicated region
      $region29: #{segmentation_forward.3} parent=27 // pred_check
        %p796 = pneg %p78
      $region30: #{segmentation_forward.3} parent=27 // pred_check_branch
        %798 = sbr.rel (%p796) target = $region32
      $region31: #{segmentation_forward.3} parent=27 // pred_region
        _
      $region32: #{segmentation_forward.3} parent=27 // pred_fallthru
        _
    $region28: #{segmentation_forward.3} parent=5 // pred_fallthru
      _
    %p799 = scmp.le.s32.totalorder 2, %s8
    // Predicated region
    $region33: #{segmentation_forward.3} parent=5 // pred_check
      %p800 = pneg %p799
    $region34: #{segmentation_forward.3} parent=5 // pred_check_branch
      %802 = sbr.rel (%p800) target = $region36
    $region35: #{segmentation_forward.3} parent=5 // pred_region
      %s803 = ssub.s32 %s8, 2
      // Predicated region
      $region37: #{segmentation_forward.3} parent=35 // pred_check
        %p804 = pneg %p84
      $region38: #{segmentation_forward.3} parent=35 // pred_check_branch
        %806 = sbr.rel (%p804) target = $region40
      $region39: #{segmentation_forward.3} parent=35 // pred_region
        %p807 = scmp.lt.s32.totalorder %s14, 1
        %s808 = scalar_select %p807, %s14, 1
        %s809 = smul.addr %s808, 4
        %s810 = smul.addr %s809, 4
        %s811 = scalar_lea.vmem %s2, %s810
      $region40: #{segmentation_forward.3} parent=35 // pred_fallthru
        _
    $region36: #{segmentation_forward.3} parent=5 // pred_fallthru
      _
  $region6: #{segmentation_forward.3} parent=0 // loop_footer
    %s12 = sadd.s32 1, %s8
  $region7: #{segmentation_forward.3} parent=0 // loop_footer_branch
    %7 = sbr.rel target = $region3
  $region8: #{segmentation_forward.3} parent=0 // loop_exit
    _

// kernel: segmentation_forward.4
$region0: #{segmentation_forward.4}
  #allocation0 [shape = 'u32[]', space=smem, size = 0x4, offset = 0x4, fixed_abs, tag = 'smem constant byte address 0x4 - core index']
  #allocation1 [shape = 'u32[144,128]{1,0:T(1,128)}', space=vmem, size = 0x12000, scoped, tag = 'internal scratch']
  %s0 = inlined_call_operand.vmem [shape: bf16[2,128,26], index: 0, kind: input, shape index: {}]
  %s1 = inlined_call_operand.vmem [shape: bf16[32,288], index: 1, kind: input, shape index: {}]
  %s2 = inlined_call_operand.vmem [shape: f32[32,1], index: 2, kind: input, shape index: {}]
  %s3 = inlined_call_operand.vmem [shape: bf16[8,32], index: 3, kind: input, shape index: {}]
  %s4 = inlined_call_operand.vmem [shape: f32[8,1], index: 4, kind: input, shape index: {}]
  %s5 = inlined_call_operand.vmem [shape: bf16[2,8,20], index: 5, kind: output, shape index: {}]
  %s6 = sld [smem:[#allocation0]]
  $region53: #{segmentation_forward.4} parent=0
    _
  %s8 = ssub.s32 1, %s6
  %s9 = scalar_select 0, %s8, %s6
  loop: start=0, step=1, limit=4
  $region2: #{segmentation_forward.4} parent=0 // loop_pre_header
    _
  $region3: #{segmentation_forward.4} parent=0 // loop_header
    %s11 = sphi 0, %s15
    %p12 = scmp.ge.s32.totalorder %s11, 4
    %s21 = sphi 0, %s23
    %s24 = sphi 0, %s21
    %s25 = sphi 0, %s24
    %s41 = sphi 0, %s25
    %s45 = sphi 0, %s45
    %s47 = sphi 0, %s45
    %s48 = sphi 0, %s47
    %s62 = sphi 0, %s48
    %s66 = sphi 0, %s66
    %s68 = sphi 0, %s66
    %s69 = sphi 0, %s68
    %s83 = sphi 0, %s69
    %s87 = sphi 0, %s87
    %s89 = sphi 0, %s87
    %s90 = sphi 0, %s89
    %s104 = sphi 0, %s90
    %s108 = sphi 0, %s108
    %s110 = sphi 0, %s108
    %s111 = sphi 0, %s110
    %s125 = sphi 0, %s111
    %s131 = sphi 0, %s133
    %s134 = sphi 0, %s131
    %s135 = sphi 0, %s134
    %s151 = sphi 0, %s135
  $region4: #{segmentation_forward.4} parent=0 // loop_header_branch
    %14 = sbr.rel (%p12) target = $region8
  $region5: #{segmentation_forward.4} parent=0 // loop_body
    %s16 = ssub.s32 %s11, 1
    %s17 = ssub.s32 %s11, 2
    %s18 = sadd.s32 %s11, 1
    %s19 = ssub.s32 %s11, %s18
    %p20 = scmp.eq.s32.totalorder %s19, 0
    %s22 = sadd.s32 %s21, 1
    %s23 = scalar_select %p20, %s21, %s22
    %p26 = pneg %p20
    %p27 = scmp.eq.s32.totalorder %s11, 1
    %p28 = por %p26, %p27
    %p29 = scmp.ne.s32.totalorder %s21, %s24
    %p30 = scmp.eq.s32.totalorder %s11, 0
    %p31 = por %p29, %p30
    %p32 = scmp.ne.s32.totalorder %s21, %s24
    %p33 = scmp.eq.s32.totalorder %s16, 1
    %p34 = por %p32, %p33
    %p35 = scmp.ne.s32.totalorder %s24, %s25
    %p36 = scmp.eq.s32.totalorder %s16, 0
    %p37 = por %p35, %p36
    %p38 = scmp.ne.s32.totalorder %s24, %s25
    %p39 = scmp.eq.s32.totalorder %s17, 1
    %p40 = por %p38, %p39
    %p42 = scmp.ne.s32.totalorder %s25, %s41
    %p43 = scmp.eq.s32.totalorder %s17, 0
    %p44 = por %p42, %p43
    %s46 = sadd.s32 %s45, 1
    %p49 = scmp.eq.s32.totalorder %s11, 1
    %p50 = scmp.ne.s32.totalorder %s45, %s47
    %p51 = scmp.eq.s32.totalorder %s11, 0
    %p52 = por %p50, %p51
    %p53 = scmp.ne.s32.totalorder %s45, %s47
    %p54 = scmp.eq.s32.totalorder %s16, 1
    %p55 = por %p53, %p54
    %p56 = scmp.ne.s32.totalorder %s47, %s48
    %p57 = scmp.eq.s32.totalorder %s16, 0
    %p58 = por %p56, %p57
    %p59 = scmp.ne.s32.totalorder %s47, %s48
    %p60 = scmp.eq.s32.totalorder %s17, 1
    %p61 = por %p59, %p60
    %p63 = scmp.ne.s32.totalorder %s48, %s62
    %p64 = scmp.eq.s32.totalorder %s17, 0
    %p65 = por %p63, %p64
    %s67 = sadd.s32 %s66, 1
    %p70 = scmp.eq.s32.totalorder %s11, 1
    %p71 = scmp.ne.s32.totalorder %s66, %s68
    %p72 = scmp.eq.s32.totalorder %s11, 0
    %p73 = por %p71, %p72
    %p74 = scmp.ne.s32.totalorder %s66, %s68
    %p75 = scmp.eq.s32.totalorder %s16, 1
    %p76 = por %p74, %p75
    %p77 = scmp.ne.s32.totalorder %s68, %s69
    %p78 = scmp.eq.s32.totalorder %s16, 0
    %p79 = por %p77, %p78
    %p80 = scmp.ne.s32.totalorder %s68, %s69
    %p81 = scmp.eq.s32.totalorder %s17, 1
    %p82 = por %p80, %p81
    %p84 = scmp.ne.s32.totalorder %s69, %s83
    %p85 = scmp.eq.s32.totalorder %s17, 0
    %p86 = por %p84, %p85
    %s88 = sadd.s32 %s87, 1
    %p91 = scmp.eq.s32.totalorder %s11, 1
    %p92 = scmp.ne.s32.totalorder %s87, %s89
    %p93 = scmp.eq.s32.totalorder %s11, 0
    %p94 = por %p92, %p93
    %p95 = scmp.ne.s32.totalorder %s87, %s89
    %p96 = scmp.eq.s32.totalorder %s16, 1
    %p97 = por %p95, %p96
    %p98 = scmp.ne.s32.totalorder %s89, %s90
    %p99 = scmp.eq.s32.totalorder %s16, 0
    %p100 = por %p98, %p99
    %p101 = scmp.ne.s32.totalorder %s89, %s90
    %p102 = scmp.eq.s32.totalorder %s17, 1
    %p103 = por %p101, %p102
    %p105 = scmp.ne.s32.totalorder %s90, %s104
    %p106 = scmp.eq.s32.totalorder %s17, 0
    %p107 = por %p105, %p106
    %s109 = sadd.s32 %s108, 1
    %p112 = scmp.eq.s32.totalorder %s11, 1
    %p113 = scmp.ne.s32.totalorder %s108, %s110
    %p114 = scmp.eq.s32.totalorder %s11, 0
    %p115 = por %p113, %p114
    %p116 = scmp.ne.s32.totalorder %s108, %s110
    %p117 = scmp.eq.s32.totalorder %s16, 1
    %p118 = por %p116, %p117
    %p119 = scmp.ne.s32.totalorder %s110, %s111
    %p120 = scmp.eq.s32.totalorder %s16, 0
    %p121 = por %p119, %p120
    %p122 = scmp.ne.s32.totalorder %s110, %s111
    %p123 = scmp.eq.s32.totalorder %s17, 1
    %p124 = por %p122, %p123
    %p126 = scmp.ne.s32.totalorder %s111, %s125
    %p127 = scmp.eq.s32.totalorder %s17, 0
    %p128 = por %p126, %p127
    %s129 = ssub.s32 %s11, %s18
    %p130 = scmp.eq.s32.totalorder %s129, 0
    %s132 = sadd.s32 %s131, 1
    %s133 = scalar_select %p130, %s131, %s132
    %p136 = pneg %p130
    %p137 = scmp.eq.s32.totalorder %s11, 1
    %p138 = por %p136, %p137
    %p139 = scmp.ne.s32.totalorder %s131, %s134
    %p140 = scmp.eq.s32.totalorder %s11, 0
    %p141 = por %p139, %p140
    %p142 = scmp.ne.s32.totalorder %s131, %s134
    %p143 = scmp.eq.s32.totalorder %s16, 1
    %p144 = por %p142, %p143
    %p145 = scmp.ne.s32.totalorder %s134, %s135
    %p146 = scmp.eq.s32.totalorder %s16, 0
    %p147 = por %p145, %p146
    %p148 = scmp.ne.s32.totalorder %s134, %s135
    %p149 = scmp.eq.s32.totalorder %s17, 1
    %p150 = por %p148, %p149
    %p152 = scmp.ne.s32.totalorder %s135, %s151
    %p153 = scmp.eq.s32.totalorder %s17, 0
    %p154 = por %p152, %p153
    %p155 = scmp.le.s32.totalorder 1, %s11
    %p156 = scmp.lt.s32.totalorder %s11, 3
    %p157 = pnand %p155, %p156
    %p158 = pneg %p157
    // Predicated region
    $region9: #{segmentation_forward.4} parent=5 // pred_check
      _
    $region10: #{segmentation_forward.4} parent=5 // pred_check_branch
      %160 = sbr.rel (%p157) target = $region12
    $region11: #{segmentation_forward.4} parent=5 // pred_region
      %s161 = ssub.s32 %s11, 1
      // Predicated region
      $region13: #{segmentation_forward.4} parent=11 // pred_check
        %p162 = pneg %p58
      $region14: #{segmentation_forward.4} parent=11 // pred_check_branch
        %164 = sbr.rel (%p162) target = $region16
      $region15: #{segmentation_forward.4} parent=11 // pred_region
        _
      $region16: #{segmentation_forward.4} parent=11 // pred_fallthru
        _
      // Predicated region
      $region17: #{segmentation_forward.4} parent=11 // pred_check
        %p165 = pneg %p79
      $region18: #{segmentation_forward.4} parent=11 // pred_check_branch
        %167 = sbr.rel (%p165) target = $region20
      $region19: #{segmentation_forward.4} parent=11 // pred_region
        _
      $region20: #{segmentation_forward.4} parent=11 // pred_fallthru
        _
      // Predicated region
      $region21: #{segmentation_forward.4} parent=11 // pred_check
        %p168 = pneg %p100
      $region22: #{segmentation_forward.4} parent=11 // pred_check_branch
        %170 = sbr.rel (%p168) target = $region24
      $region23: #{segmentation_forward.4} parent=11 // pred_region
        _
      $region24: #{segmentation_forward.4} parent=11 // pred_fallthru
        _
      // Predicated region
      $region25: #{segmentation_forward.4} parent=11 // pred_check
        %p171 = pneg %p121
      $region26: #{segmentation_forward.4} parent=11 // pred_check_branch
        %173 = sbr.rel (%p171) target = $region28
      $region27: #{segmentation_forward.4} parent=11 // pred_region
        _
      $region28: #{segmentation_forward.4} parent=11 // pred_fallthru
        _
    $region12: #{segmentation_forward.4} parent=5 // pred_fallthru
      _
    %p174 = scmp.lt.s32.totalorder %s11, 2
    // Predicated region
    $region29: #{segmentation_forward.4} parent=5 // pred_check
      %p175 = pneg %p174
    $region30: #{segmentation_forward.4} parent=5 // pred_check_branch
      %177 = sbr.rel (%p175) target = $region32
    $region31: #{segmentation_forward.4} parent=5 // pred_region
      // Predicated region
      $region33: #{segmentation_forward.4} parent=31 // pred_check
        %p178 = pneg %p31
      $region34: #{segmentation_forward.4} parent=31 // pred_check_branch
        %180 = sbr.rel (%p178) target = $region36
      $region35: #{segmentation_forward.4} parent=31 // pred_region
        %p181 = scmp.lt.s32.totalorder %s11, 1
        %s182 = scalar_select %p181, %s11, 1
        %s183 = smul.addr %s182, 16
        %s184 = smul.addr %s183, 4
        %s185 = scalar_lea.vmem %s0, %s184
      $region36: #{segmentation_forward.4} parent=31 // pred_fallthru
        _
    $region32: #{segmentation_forward.4} parent=5 // pred_fallthru
      _
    %p186 = scmp.le.s32.totalorder 1, %s11
    %p187 = scmp.lt.s32.totalorder %s11, 3
    %p188 = pnand %p186, %p187
    %p189 = pneg %p188
    // Predicated region
    $region37: #{segmentation_forward.4} parent=5 // pred_check
      _
    $region38: #{segmentation_forward.4} parent=5 // pred_check_branch
      %191 = sbr.rel (%p188) target = $region40
    $region39: #{segmentation_forward.4} parent=5 // pred_region
      %s192 = ssub.s32 %s11, 1
      %p193 = scmp.lt.s32.totalorder %s16, 1
      %s194 = scalar_select %p193, %s16, 1
      %s195 = smul.addr %s194, 16
      %s196 = smul.addr %s195, 4
      %s197 = scalar_lea.vmem %s0, %s196
      %p198 = pneg %p37
      %p199 = pneg %p34
      %p200 = pneg %p58
      %p201 = pneg %p55
      %p202 = pneg %p79
      %p203 = pneg %p76
      %p204 = pneg %p100
      %p205 = pneg %p97
      %p206 = pneg %p121
      %p207 = pneg %p118
      %p208 = pneg %p147
      %p209 = pneg %p144
      %p210 = scmp.lt.s32.totalorder %s16, 1
      %s211 = scalar_select %p210, %s16, 1
      %s212 = smul.addr %s211, 4
      %s213 = scalar_lea.vmem %s5, %s212
      %p214 = scmp.lt.s32.totalorder %s16, 1
      %s215 = scalar_select %p214, %s16, 1
      %s216 = smul.addr %s215, 16
      %s217 = smul.addr %s216, 4
      %s218 = scalar_lea.vmem %s0, %s217
      %p219 = scmp.lt.s32.totalorder %s16, 1
      %s220 = scalar_select %p219, %s16, 1
      %s221 = smul.addr %s220, 4
      %s222 = scalar_lea.vmem %s5, %s221
      %v224 = vld [vmem:[%s1] sm:$0xf]
      %v225 = vld [vmem:[%s1 + $0xc] sm:$0xf]
      %v226 = vld [vmem:[%s1 + $0x18] sm:$0xf]
      %v227 = vld [vmem:[%s1 + $0x24] sm:$0xf]
      %v228 = vld [vmem:[%s218] sm:$0xf]
      %v229 = vld [vmem:[%s218 + $0x4] sm:$0xf]
      %v230 = vld [vmem:[%s218 + $0x8] sm:$0xf]
      %v231 = vld [vmem:[%s218 + $0xc] sm:$0xf]
      %v232 = vld [vmem:[%s218 + $0x10] sm:$0xf]
      %v233 = vld [vmem:[%s218 + $0x14] sm:$0xf]
      %v234 = vld [vmem:[%s218 + $0x18] sm:$0xf]
      %v235 = vld [vmem:[%s218 + $0x1c] sm:$0xf]
      %v240 = vunpack.c.l.b16 %v224
      %v241 = vunpack.c.l.b16 %v225
      %v242 = vunpack.c.l.b16 %v226
      %v243 = vunpack.c.l.b16 %v227
      %v244 = vpack.c.b16 %v241, %v240
      %v245 = vpack.c.b16 %v243, %v242
      %246 = vrot.lane.b32.xlu0 %v244, 96
      %v247 = vpop.permute.xlu0 %246
      %248 = vrot.lane.b32.xlu0 %v245, 96
      %v249 = vpop.permute.xlu0 %248
      %v254 = vunpack.c.l.b16 %v232
      %v255 = vunpack.c.l.b16 %v233
      %v256 = vunpack.c.l.b16 %v234
      %v257 = vunpack.c.l.b16 %v235
      %v258 = vpack.c.b16 %v255, %v254
      %v259 = vpack.c.b16 %v257, %v256
      %vm262 = vcmask 261120
      %v264 = vsel %vm262, %v247, 0
      %v267 = vsel %vm262, %v249, 0
      %269 = vmatprep.subr.bf16.mxu0 0
      %270 = vmatpush1.bf16.msra.mxu0 %v258
      %271 = vmatprep.subr.bf16.mxu0 0
      %272 = vmatpush1.bf16.msra.mxu0 %v259
      %273 = vmatprep.subr.bf16.mxu0 0
      %274 = vmatpush1.bf16.msra.mxu0 0
      %275 = vmatprep.subr.bf16.mxu0 0
      %276 = vmatpush1.bf16.msra.mxu0 0
      %277 = vmatprep.subr.bf16.mxu0 0
      %278 = vmatpush1.bf16.msra.mxu0 0
      %279 = vmatprep.subr.bf16.mxu0 0
      %280 = vmatpush1.bf16.msra.mxu0 0
      %281 = vmatprep.subr.bf16.mxu0 0
      %282 = vmatpush1.bf16.msra.mxu0 0
      %283 = vmatprep.subr.bf16.mxu0 0
      %284 = vmatpush1.bf16.msra.mxu0 0
      %285 = vmatprep.subr.bf16.mxu0 0
      %286 = vmatpush1.bf16.msra.mxu0 0
      %287 = vmatprep.subr.bf16.mxu0 0
      %288 = vmatpush1.bf16.msra.mxu0 0
      %289 = vmatprep.subr.bf16.mxu0 0
      %290 = vmatpush1.bf16.msra.mxu0 0
      %291 = vmatprep.subr.bf16.mxu0 0
      %292 = vmatpush1.bf16.msra.mxu0 0
      %293 = vmatprep.subr.bf16.mxu0 0
      %294 = vmatpush1.bf16.msra.mxu0 0
      %295 = vmatprep.subr.bf16.mxu0 0
      %296 = vmatpush1.bf16.msra.mxu0 0
      %297 = vmatprep.subr.bf16.mxu0 0
      %298 = vmatpush1.bf16.msra.mxu0 0
      %299 = vmatprep.subr.bf16.mxu0 0
      %300 = vmatpush1.bf16.msra.mxu0 0
      %301 = vmatprep.mubr.bf16.mxu0 0
      %302 = vmatmul.mubr.bf16.gmra.mrb[0].mxu0 %v264
      %v303 = vpop.f32.mrb[0].mxu0
      %v304 = vadd.f32 0.0, %v303
      %v305 = vpop.f32.mrb[0].mxu0
      %v306 = vpop.f32.mrb[0].mxu0
      %v307 = vadd.f32 0.0, %v306
      %v308 = vpop.f32.mrb[0].mxu0
      %309 = vmatprep.mubr.bf16.mxu0 0
      %310 = vmatmul.mubr.bf16.gmra.mrb[0].mxu0 %v267
      %v311 = vpop.f32.mrb[0].mxu0
      %v312 = vadd.f32 0.0, %v311
      %v313 = vpop.f32.mrb[0].mxu0
      %v314 = vpop.f32.mrb[0].mxu0
      %v315 = vadd.f32 0.0, %v314
      %v316 = vpop.f32.mrb[0].mxu0
      %317 = vdwg.mxu0
      %v322 = vunpack.c.l.b16 %v228
      %v323 = vunpack.c.l.b16 %v229
      %v324 = vunpack.c.l.b16 %v230
      %v325 = vunpack.c.l.b16 %v231
      %v326 = vpack.c.b16 %v323, %v322
      %v327 = vpack.c.b16 %v325, %v324
      %v331 = vsel %vm262, %v244, 0
      %v334 = vsel %vm262, %v245, 0
      %336 = vmatprep.subr.bf16.mxu0 0
      %337 = vmatpush1.bf16.msra.mxu0 %v326
      %338 = vmatprep.subr.bf16.mxu0 0
      %339 = vmatpush1.bf16.msra.mxu0 %v327
      %340 = vmatprep.subr.bf16.mxu0 0
      %341 = vmatpush1.bf16.msra.mxu0 0
      %342 = vmatprep.subr.bf16.mxu0 0
      %343 = vmatpush1.bf16.msra.mxu0 0
      %344 = vmatprep.subr.bf16.mxu0 0
      %345 = vmatpush1.bf16.msra.mxu0 0
      %346 = vmatprep.subr.bf16.mxu0 0
      %347 = vmatpush1.bf16.msra.mxu0 0
      %348 = vmatprep.subr.bf16.mxu0 0
      %349 = vmatpush1.bf16.msra.mxu0 0
      %350 = vmatprep.subr.bf16.mxu0 0
      %351 = vmatpush1.bf16.msra.mxu0 0
      %352 = vmatprep.subr.bf16.mxu0 0
      %353 = vmatpush1.bf16.msra.mxu0 0
      %354 = vmatprep.subr.bf16.mxu0 0
      %355 = vmatpush1.bf16.msra.mxu0 0
      %356 = vmatprep.subr.bf16.mxu0 0
      %357 = vmatpush1.bf16.msra.mxu0 0
      %358 = vmatprep.subr.bf16.mxu0 0
      %359 = vmatpush1.bf16.msra.mxu0 0
      %360 = vmatprep.subr.bf16.mxu0 0
      %361 = vmatpush1.bf16.msra.mxu0 0
      %362 = vmatprep.subr.bf16.mxu0 0
      %363 = vmatpush1.bf16.msra.mxu0 0
      %364 = vmatprep.subr.bf16.mxu0 0
      %365 = vmatpush1.bf16.msra.mxu0 0
      %366 = vmatprep.subr.bf16.mxu0 0
      %367 = vmatpush1.bf16.msra.mxu0 0
      %368 = vmatprep.mubr.bf16.mxu0 0
      %369 = vmatmul.mubr.bf16.gmra.mrb[0].mxu0 %v331
      %v370 = vpop.f32.mrb[0].mxu0
      %v371 = vadd.f32 %v304, %v370
      %v372 = vpop.f32.mrb[0].mxu0
      %v373 = vpop.f32.mrb[0].mxu0
      %v374 = vadd.f32 %v307, %v373
      %v375 = vpop.f32.mrb[0].mxu0
      %376 = vmatprep.mubr.bf16.mxu0 0
      %377 = vmatmul.mubr.bf16.gmra.mrb[0].mxu0 %v334
      %v378 = vpop.f32.mrb[0].mxu0
      %v379 = vadd.f32 %v312, %v378
      %v380 = vpop.f32.mrb[0].mxu0
      %v381 = vpop.f32.mrb[0].mxu0
      %v382 = vadd.f32 %v315, %v381
      %v383 = vpop.f32.mrb[0].mxu0
      %384 = vdwg.mxu0
      %385 = vrot.lane.b32.xlu0 %v244, 64
      %v386 = vpop.permute.xlu0 %385
      %387 = vrot.lane.b32.xlu0 %v245, 64
      %v388 = vpop.permute.xlu0 %387
      %389 = vrot.lane.b32.xlu0 %v326, 127
      %v390 = vpop.permute.xlu0 %389
      %391 = vrot.lane.b32.xlu0 %v327, 127
      %v392 = vpop.permute.xlu0 %391
      %v396 = vsel %vm262, %v386, 0
      %v399 = vsel %vm262, %v388, 0
      %401 = vmatprep.subr.bf16.mxu0 0
      %402 = vmatpush1.bf16.msra.mxu0 %v390
      %403 = vmatprep.subr.bf16.mxu0 0
      %404 = vmatpush1.bf16.msra.mxu0 %v392
      %405 = vmatprep.subr.bf16.mxu0 0
      %406 = vmatpush1.bf16.msra.mxu0 0
      %407 = vmatprep.subr.bf16.mxu0 0
      %408 = vmatpush1.bf16.msra.mxu0 0
      %409 = vmatprep.subr.bf16.mxu0 0
      %410 = vmatpush1.bf16.msra.mxu0 0
      %411 = vmatprep.subr.bf16.mxu0 0
      %412 = vmatpush1.bf16.msra.mxu0 0
      %413 = vmatprep.subr.bf16.mxu0 0
      %414 = vmatpush1.bf16.msra.mxu0 0
      %415 = vmatprep.subr.bf16.mxu0 0
      %416 = vmatpush1.bf16.msra.mxu0 0
      %417 = vmatprep.subr.bf16.mxu0 0
      %418 = vmatpush1.bf16.msra.mxu0 0
      %419 = vmatprep.subr.bf16.mxu0 0
      %420 = vmatpush1.bf16.msra.mxu0 0
      %421 = vmatprep.subr.bf16.mxu0 0
      %422 = vmatpush1.bf16.msra.mxu0 0
      %423 = vmatprep.subr.bf16.mxu0 0
      %424 = vmatpush1.bf16.msra.mxu0 0
      %425 = vmatprep.subr.bf16.mxu0 0
      %426 = vmatpush1.bf16.msra.mxu0 0
      %427 = vmatprep.subr.bf16.mxu0 0
      %428 = vmatpush1.bf16.msra.mxu0 0
      %429 = vmatprep.subr.bf16.mxu0 0
      %430 = vmatpush1.bf16.msra.mxu0 0
      %431 = vmatprep.subr.bf16.mxu0 0
      %432 = vmatpush1.bf16.msra.mxu0 0
      %433 = vmatprep.mubr.bf16.mxu0 0
      %434 = vmatmul.mubr.bf16.gmra.mrb[0].mxu0 %v396
      %v435 = vpop.f32.mrb[0].mxu0
      %v436 = vadd.f32 0.0, %v435
      %v437 = vpop.f32.mrb[0].mxu0
      %v438 = vpop.f32.mrb[0].mxu0
      %v439 = vadd.f32 0.0, %v438
      %v440 = vpop.f32.mrb[0].mxu0
      %441 = vmatprep.mubr.bf16.mxu0 0
      %442 = vmatmul.mubr.bf16.gmra.mrb[0].mxu0 %v399
      %v443 = vpop.f32.mrb[0].mxu0
      %v444 = vadd.f32 0.0, %v443
      %v445 = vpop.f32.mrb[0].mxu0
      %v446 = vpop.f32.mrb[0].mxu0
      %v447 = vadd.f32 0.0, %v446
      %v448 = vpop.f32.mrb[0].mxu0
      %449 = vdwg.mxu0
      %v450 = vadd.f32 %v371, %v436
      %v451 = vadd.f32 %v374, %v439
      %v452 = vadd.f32 %v379, %v444
      %v453 = vadd.f32 %v382, %v447
      %v454 = vld [vmem:[%s218 + $0x20] sm:$0xf]
      %v455 = vld [vmem:[%s218 + $0x24] sm:$0xf]
      %v456 = vld [vmem:[%s218 + $0x28] sm:$0xf]
      %v457 = vld [vmem:[%s218 + $0x2c] sm:$0xf]
      %458 = vrot.lane.b32.xlu0 %v244, 32
      %v459 = vpop.permute.xlu0 %458
      %460 = vrot.lane.b32.xlu0 %v245, 32
      %v461 = vpop.permute.xlu0 %460
      %v466 = vunpack.c.l.b16 %v454
      %v467 = vunpack.c.l.b16 %v455
      %v468 = vunpack.c.l.b16 %v456
      %v469 = vunpack.c.l.b16 %v457
      %v470 = vpack.c.b16 %v467, %v466
      %v471 = vpack.c.b16 %v469, %v468
      %v475 = vsel %vm262, %v459, 0
      %v478 = vsel %vm262, %v461, 0
      %480 = vmatprep.subr.bf16.mxu0 0
      %481 = vmatpush1.bf16.msra.mxu0 %v470
      %482 = vmatprep.subr.bf16.mxu0 0
      %483 = vmatpush1.bf16.msra.mxu0 %v471
      %484 = vmatprep.subr.bf16.mxu0 0
      %485 = vmatpush1.bf16.msra.mxu0 0
      %486 = vmatprep.subr.bf16.mxu0 0
      %487 = vmatpush1.bf16.msra.mxu0 0
      %488 = vmatprep.subr.bf16.mxu0 0
      %489 = vmatpush1.bf16.msra.mxu0 0
      %490 = vmatprep.subr.bf16.mxu0 0
      %491 = vmatpush1.bf16.msra.mxu0 0
      %492 = vmatprep.subr.bf16.mxu0 0
      %493 = vmatpush1.bf16.msra.mxu0 0
      %494 = vmatprep.subr.bf16.mxu0 0
      %495 = vmatpush1.bf16.msra.mxu0 0
      %496 = vmatprep.subr.bf16.mxu0 0
      %497 = vmatpush1.bf16.msra.mxu0 0
      %498 = vmatprep.subr.bf16.mxu0 0
      %499 = vmatpush1.bf16.msra.mxu0 0
      %500 = vmatprep.subr.bf16.mxu0 0
      %501 = vmatpush1.bf16.msra.mxu0 0
      %502 = vmatprep.subr.bf16.mxu0 0
      %503 = vmatpush1.bf16.msra.mxu0 0
      %504 = vmatprep.subr.bf16.mxu0 0
      %505 = vmatpush1.bf16.msra.mxu0 0
      %506 = vmatprep.subr.bf16.mxu0 0
      %507 = vmatpush1.bf16.msra.mxu0 0
      %508 = vmatprep.subr.bf16.mxu0 0
      %509 = vmatpush1.bf16.msra.mxu0 0
      %510 = vmatprep.subr.bf16.mxu0 0
      %511 = vmatpush1.bf16.msra.mxu0 0
      %512 = vmatprep.mubr.bf16.mxu0 0
      %513 = vmatmul.mubr.bf16.gmra.mrb[0].mxu0 %v475
      %v514 = vpop.f32.mrb[0].mxu0
      %v515 = vadd.f32 0.0, %v514
      %v516 = vpop.f32.mrb[0].mxu0
      %v517 = vpop.f32.mrb[0].mxu0
      %v518 = vadd.f32 0.0, %v517
      %v519 = vpop.f32.mrb[0].mxu0
      %520 = vmatprep.mubr.bf16.mxu0 0
      %521 = vmatmul.mubr.bf16.gmra.mrb[0].mxu0 %v478
      %v522 = vpop.f32.mrb[0].mxu0
      %v523 = vadd.f32 0.0, %v522
      %v524 = vpop.f32.mrb[0].mxu0
      %v525 = vpop.f32.mrb[0].mxu0
      %v526 = vadd.f32 0.0, %v525
      %v527 = vpop.f32.mrb[0].mxu0
      %528 = vdwg.mxu0
      %v529 = vadd.f32 %v450, %v515
      %v530 = vadd.f32 %v451, %v518
      %v531 = vadd.f32 %v452, %v523
      %v532 = vadd.f32 %v453, %v526
      %v533 = vld [vmem:[%s1 + $0x4] sm:$0xf]
      %v534 = vld [vmem:[%s1 + $0x10] sm:$0xf]
      %v535 = vld [vmem:[%s1 + $0x1c] sm:$0xf]
      %v536 = vld [vmem:[%s1 + $0x28] sm:$0xf]
      %v537 = vld [vmem:[%s218 + $0x30] sm:$0xf]
      %v538 = vld [vmem:[%s218 + $0x34] sm:$0xf]
      %v539 = vld [vmem:[%s218 + $0x38] sm:$0xf]
      %v540 = vld [vmem:[%s218 + $0x3c] sm:$0xf]
      %v545 = vunpack.c.l.b16 %v533
      %v546 = vunpack.c.l.b16 %v534
      %v547 = vunpack.c.l.b16 %v535
      %v548 = vunpack.c.l.b16 %v536
      %v549 = vpack.c.b16 %v546, %v545
      %v550 = vpack.c.b16 %v548, %v547
      %v555 = vunpack.c.l.b16 %v537
      %v556 = vunpack.c.l.b16 %v538
      %v557 = vunpack.c.l.b16 %v539
      %v558 = vunpack.c.l.b16 %v540
      %v559 = vpack.c.b16 %v556, %v555
      %v560 = vpack.c.b16 %v558, %v557
      %v564 = vsel %vm262, %v549, 0
      %v567 = vsel %vm262, %v550, 0
      %569 = vmatprep.subr.bf16.mxu0 0
      %570 = vmatpush1.bf16.msra.mxu0 %v559
      %571 = vmatprep.subr.bf16.mxu0 0
      %572 = vmatpush1.bf16.msra.mxu0 %v560
      %573 = vmatprep.subr.bf16.mxu0 0
      %574 = vmatpush1.bf16.msra.mxu0 0
      %575 = vmatprep.subr.bf16.mxu0 0
      %576 = vmatpush1.bf16.msra.mxu0 0
      %577 = vmatprep.subr.bf16.mxu0 0
      %578 = vmatpush1.bf16.msra.mxu0 0
      %579 = vmatprep.subr.bf16.mxu0 0
      %580 = vmatpush1.bf16.msra.mxu0 0
      %581 = vmatprep.subr.bf16.mxu0 0
      %582 = vmatpush1.bf16.msra.mxu0 0
      %583 = vmatprep.subr.bf16.mxu0 0
      %584 = vmatpush1.bf16.msra.mxu0 0
      %585 = vmatprep.subr.bf16.mxu0 0
      %586 = vmatpush1.bf16.msra.mxu0 0
      %587 = vmatprep.subr.bf16.mxu0 0
      %588 = vmatpush1.bf16.msra.mxu0 0
      %589 = vmatprep.subr.bf16.mxu0 0
      %590 = vmatpush1.bf16.msra.mxu0 0
      %591 = vmatprep.subr.bf16.mxu0 0
      %592 = vmatpush1.bf16.msra.mxu0 0
      %593 = vmatprep.subr.bf16.mxu0 0
      %594 = vmatpush1.bf16.msra.mxu0 0
      %595 = vmatprep.subr.bf16.mxu0 0
      %596 = vmatpush1.bf16.msra.mxu0 0
      %597 = vmatprep.subr.bf16.mxu0 0
      %598 = vmatpush1.bf16.msra.mxu0 0
      %599 = vmatprep.subr.bf16.mxu0 0
      %600 = vmatpush1.bf16.msra.mxu0 0
      %601 = vmatprep.mubr.bf16.mxu0 0
      %602 = vmatmul.mubr.bf16.gmra.mrb[0].mxu0 %v564
      %v603 = vpop.f32.mrb[0].mxu0
      %v604 = vadd.f32 0.0, %v603
      %v605 = vpop.f32.mrb[0].mxu0
      %v606 = vpop.f32.mrb[0].mxu0
      %v607 = vadd.f32 0.0, %v606
      %v608 = vpop.f32.mrb[0].mxu0
      %609 = vmatprep.mubr.bf16.mxu0 0
      %610 = vmatmul.mubr.bf16.gmra.mrb[0].mxu0 %v567
      %v611 = vpop.f32.mrb[0].mxu0
      %v612 = vadd.f32 0.0, %v611
      %v613 = vpop.f32.mrb[0].mxu0
      %v614 = vpop.f32.mrb[0].mxu0
      %v615 = vadd.f32 0.0, %v614
      %v616 = vpop.f32.mrb[0].mxu0
      %617 = vdwg.mxu0
      %v618 = vadd.f32 %v529, %v604
      %v619 = vadd.f32 %v530, %v607
      %v620 = vadd.f32 %v531, %v612
      %v621 = vadd.f32 %v532, %v615
      %622 = vrot.lane.b32.xlu0 %v549, 96
      %v623 = vpop.permute.xlu0 %622
      %624 = vrot.lane.b32.xlu0 %v550, 96
      %v625 = vpop.permute.xlu0 %624
      %626 = vrot.lane.b32.xlu0 %v470, 127
      %v627 = vpop.permute.xlu0 %626
      %628 = vrot.lane.b32.xlu0 %v471, 127
      %v629 = vpop.permute.xlu0 %628
      %v633 = vsel %vm262, %v623, 0
      %v636 = vsel %vm262, %v625, 0
      %638 = vmatprep.subr.bf16.mxu0 0
      %639 = vmatpush1.bf16.msra.mxu0 %v627
      %640 = vmatprep.subr.bf16.mxu0 0
      %641 = vmatpush1.bf16.msra.mxu0 %v629
      %642 = vmatprep.subr.bf16.mxu0 0
      %643 = vmatpush1.bf16.msra.mxu0 0
      %644 = vmatprep.subr.bf16.mxu0 0
      %645 = vmatpush1.bf16.msra.mxu0 0
      %646 = vmatprep.subr.bf16.mxu0 0
      %647 = vmatpush1.bf16.msra.mxu0 0
      %648 = vmatprep.subr.bf16.mxu0 0
      %649 = vmatpush1.bf16.msra.mxu0 0
      %650 = vmatprep.subr.bf16.mxu0 0
      %651 = vmatpush1.bf16.msra.mxu0 0
      %652 = vmatprep.subr.bf16.mxu0 0
      %653 = vmatpush1.bf16.msra.mxu0 0
      %654 = vmatprep.subr.bf16.mxu0 0
      %655 = vmatpush1.bf16.msra.mxu0 0
      %656 = vmatprep.subr.bf16.mxu0 0
      %657 = vmatpush1.bf16.msra.mxu0 0
      %658 = vmatprep.subr.bf16.mxu0 0
      %659 = vmatpush1.bf16.msra.mxu0 0
      %660 = vmatprep.subr.bf16.mxu0 0
      %661 = vmatpush1.bf16.msra.mxu0 0
      %662 = vmatprep.subr.bf16.mxu0 0
      %663 = vmatpush1.bf16.msra.mxu0 0
      %664 = vmatprep.subr.bf16.mxu0 0
      %665 = vmatpush1.bf16.msra.mxu0 0
      %666 = vmatprep.subr.bf16.mxu0 0
      %667 = vmatpush1.bf16.msra.mxu0 0
      %668 = vmatprep.subr.bf16.mxu0 0
      %669 = vmatpush1.bf16.msra.mxu0 0
      %670 = vmatprep.mubr.bf16.mxu0 0
      %671 = vmatmul.mubr.bf16.gmra.mrb[0].mxu0 %v633
      %v672 = vpop.f32.mrb[0].mxu0
      %v673 = vadd.f32 0.0, %v672
      %v674 = vpop.f32.mrb[0].mxu0
      %v675 = vpop.f32.mrb[0].mxu0
      %v676 = vadd.f32 0.0, %v675
      %v677 = vpop.f32.mrb[0].mxu0
      %678 = vmatprep.mubr.bf16.mxu0 0
      %679 = vmatmul.mubr.bf16.gmra.mrb[0].mxu0 %v636
      %v680 = vpop.f32.mrb[0].mxu0
      %v681 = vadd.f32 0.0, %v680
      %v682 = vpop.f32.mrb[0].mxu0
      %v683 = vpop.f32.mrb[0].mxu0
      %v684 = vadd.f32 0.0, %v683
      %v685 = vpop.f32.mrb[0].mxu0
      %686 = vdwg.mxu0
      %v687 = vadd.f32 %v618, %v673
      %v688 = vadd.f32 %v619, %v676
      %v689 = vadd.f32 %v620, %v681
      %v690 = vadd.f32 %v621, %v684
      %691 = vrot.lane.b32.xlu0 %v549, 64
      %v692 = vpop.permute.xlu0 %691
      %693 = vrot.lane.b32.xlu0 %v550, 64
      %v694 = vpop.permute.xlu0 %693
      %695 = vrot.lane.b32.xlu0 %v326, 123
      %v696 = vpop.permute.xlu0 %695
      %697 = vrot.lane.b32.xlu0 %v327, 123
      %v698 = vpop.permute.xlu0 %697
      %v702 = vsel %vm262, %v692, 0
      %v705 = vsel %vm262, %v694, 0
      %707 = vmatprep.subr.bf16.mxu0 0
      %708 = vmatpush1.bf16.msra.mxu0 %v696
      %709 = vmatprep.subr.bf16.mxu0 0
      %710 = vmatpush1.bf16.msra.mxu0 %v698
      %711 = vmatprep.subr.bf16.mxu0 0
      %712 = vmatpush1.bf16.msra.mxu0 0
      %713 = vmatprep.subr.bf16.mxu0 0
      %714 = vmatpush1.bf16.msra.mxu0 0
      %715 = vmatprep.subr.bf16.mxu0 0
      %716 = vmatpush1.bf16.msra.mxu0 0
      %717 = vmatprep.subr.bf16.mxu0 0
      %718 = vmatpush1.bf16.msra.mxu0 0
      %719 = vmatprep.subr.bf16.mxu0 0
      %720 = vmatpush1.bf16.msra.mxu0 0
      %721 = vmatprep.subr.bf16.mxu0 0
      %722 = vmatpush1.bf16.msra.mxu0 0
      %723 = vmatprep.subr.bf16.mxu0 0
      %724 = vmatpush1.bf16.msra.mxu0 0
      %725 = vmatprep.subr.bf16.mxu0 0
      %726 = vmatpush1.bf16.msra.mxu0 0
      %727 = vmatprep.subr.bf16.mxu0 0
      %728 = vmatpush1.bf16.msra.mxu0 0
      %729 = vmatprep.subr.bf16.mxu0 0
      %730 = vmatpush1.bf16.msra.mxu0 0
      %731 = vmatprep.subr.bf16.mxu0 0
      %732 = vmatpush1.bf16.msra.mxu0 0
      %733 = vmatprep.subr.bf16.mxu0 0
      %734 = vmatpush1.bf16.msra.mxu0 0
      %735 = vmatprep.subr.bf16.mxu0 0
      %736 = vmatpush1.bf16.msra.mxu0 0
      %737 = vmatprep.subr.bf16.mxu0 0
      %738 = vmatpush1.bf16.msra.mxu0 0
      %739 = vmatprep.mubr.bf16.mxu0 0
      %740 = vmatmul.mubr.bf16.gmra.mrb[0].mxu0 %v702
      %v741 = vpop.f32.mrb[0].mxu0
      %v742 = vadd.f32 0.0, %v741
      %v743 = vpop.f32.mrb[0].mxu0
      %v744 = vpop.f32.mrb[0].mxu0
      %v745 = vadd.f32 0.0, %v744
      %v746 = vpop.f32.mrb[0].mxu0
      %747 = vmatprep.mubr.bf16.mxu0 0
      %748 = vmatmul.mubr.bf16.gmra.mrb[0].mxu0 %v705
      %v749 = vpop.f32.mrb[0].mxu0
      %v750 = vadd.f32 0.0, %v749
      %v751 = vpop.f32.mrb[0].mxu0
      %v752 = vpop.f32.mrb[0].mxu0
      %v753 = vadd.f32 0.0, %v752
      %v754 = vpop.f32.mrb[0].mxu0
      %755 = vdwg.mxu0
      %v756 = vadd.f32 %v687, %v742
      %v757 = vadd.f32 %v688, %v745
      %v758 = vadd.f32 %v689, %v750
      %v759 = vadd.f32 %v690, %v753
      %760 = vrot.lane.b32.xlu0 %v549, 32
      %v761 = vpop.permute.xlu0 %760
      %762 = vrot.lane.b32.xlu0 %v550, 32
      %v763 = vpop.permute.xlu0 %762
      %764 = vrot.lane.b32.xlu0 %v258, 123
      %v765 = vpop.permute.xlu0 %764
      %766 = vrot.lane.b32.xlu0 %v259, 123
      %v767 = vpop.permute.xlu0 %766
      %v771 = vsel %vm262, %v761, 0
      %v774 = vsel %vm262, %v763, 0
      %776 = vmatprep.subr.bf16.mxu0 0
      %777 = vmatpush1.bf16.msra.mxu0 %v765
      %778 = vmatprep.subr.bf16.mxu0 0
      %779 = vmatpush1.bf16.msra.mxu0 %v767
      %780 = vmatprep.subr.bf16.mxu0 0
      %781 = vmatpush1.bf16.msra.mxu0 0
      %782 = vmatprep.subr.bf16.mxu0 0
      %783 = vmatpush1.bf16.msra.mxu0 0
      %784 = vmatprep.subr.bf16.mxu0 0
      %785 = vmatpush1.bf16.msra.mxu0 0
      %786 = vmatprep.subr.bf16.mxu0 0
      %787 = vmatpush1.bf16.msra.mxu0 0
      %788 = vmatprep.subr.bf16.mxu0 0
      %789 = vmatpush1.bf16.msra.mxu0 0
      %790 = vmatprep.subr.bf16.mxu0 0
      %791 = vmatpush1.bf16.msra.mxu0 0
      %792 = vmatprep.subr.bf16.mxu0 0
      %793 = vmatpush1.bf16.msra.mxu0 0
      %794 = vmatprep.subr.bf16.mxu0 0
      %795 = vmatpush1.bf16.msra.mxu0 0
      %796 = vmatprep.subr.bf16.mxu0 0
      %797 = vmatpush1.bf16.msra.mxu0 0
      %798 = vmatprep.subr.bf16.mxu0 0
      %799 = vmatpush1.bf16.msra.mxu0 0
      %800 = vmatprep.subr.bf16.mxu0 0
      %801 = vmatpush1.bf16.msra.mxu0 0
      %802 = vmatprep.subr.bf16.mxu0 0
      %803 = vmatpush1.bf16.msra.mxu0 0
      %804 = vmatprep.subr.bf16.mxu0 0
      %805 = vmatpush1.bf16.msra.mxu0 0
      %806 = vmatprep.subr.bf16.mxu0 0
      %807 = vmatpush1.bf16.msra.mxu0 0
      %808 = vmatprep.mubr.bf16.mxu0 0
      %809 = vmatmul.mubr.bf16.gmra.mrb[0].mxu0 %v771
      %v810 = vpop.f32.mrb[0].mxu0
      %v811 = vadd.f32 0.0, %v810
      %v812 = vpop.f32.mrb[0].mxu0
      %v813 = vpop.f32.mrb[0].mxu0
      %v814 = vadd.f32 0.0, %v813
      %v815 = vpop.f32.mrb[0].mxu0
      %816 = vmatprep.mubr.bf16.mxu0 0
      %817 = vmatmul.mubr.bf16.gmra.mrb[0].mxu0 %v774
      %v818 = vpop.f32.mrb[0].mxu0
      %v819 = vadd.f32 0.0, %v818
      %v820 = vpop.f32.mrb[0].mxu0
      %v821 = vpop.f32.mrb[0].mxu0
      %v822 = vadd.f32 0.0, %v821
      %v823 = vpop.f32.mrb[0].mxu0
      %824 = vdwg.mxu0
      %v825 = vadd.f32 %v756, %v811
      %v826 = vadd.f32 %v757, %v814
      %v827 = vadd.f32 %v758, %v819
      %v828 = vadd.f32 %v759, %v822
      %v829 = vld [vmem:[%s1 + $0x8] sm:$0xf]
      %v830 = vld [vmem:[%s1 + $0x14] sm:$0xf]
      %v831 = vld [vmem:[%s1 + $0x20] sm:$0xf]
      %v832 = vld [vmem:[%s1 + $0x2c] sm:$0xf]
      %v837 = vunpack.c.l.b16 %v829
      %v838 = vunpack.c.l.b16 %v830
      %v839 = vunpack.c.l.b16 %v831
      %v840 = vunpack.c.l.b16 %v832
      %v841 = vpack.c.b16 %v838, %v837
      %v842 = vpack.c.b16 %v840, %v839
      %843 = vrot.lane.b32.xlu0 %v326, 122
      %v844 = vpop.permute.xlu0 %843
      %845 = vrot.lane.b32.xlu0 %v327, 122
      %v846 = vpop.permute.xlu0 %845
      %v850 = vsel %vm262, %v841, 0
      %v853 = vsel %vm262, %v842, 0
      %855 = vmatprep.subr.bf16.mxu0 0
      %856 = vmatpush1.bf16.msra.mxu0 %v844
      %857 = vmatprep.subr.bf16.mxu0 0
      %858 = vmatpush1.bf16.msra.mxu0 %v846
      %859 = vmatprep.subr.bf16.mxu0 0
      %860 = vmatpush1.bf16.msra.mxu0 0
      %861 = vmatprep.subr.bf16.mxu0 0
      %862 = vmatpush1.bf16.msra.mxu0 0
      %863 = vmatprep.subr.bf16.mxu0 0
      %864 = vmatpush1.bf16.msra.mxu0 0
      %865 = vmatprep.subr.bf16.mxu0 0
      %866 = vmatpush1.bf16.msra.mxu0 0
      %867 = vmatprep.subr.bf16.mxu0 0
      %868 = vmatpush1.bf16.msra.mxu0 0
      %869 = vmatprep.subr.bf16.mxu0 0
      %870 = vmatpush1.bf16.msra.mxu0 0
      %871 = vmatprep.subr.bf16.mxu0 0
      %872 = vmatpush1.bf16.msra.mxu0 0
      %873 = vmatprep.subr.bf16.mxu0 0
      %874 = vmatpush1.bf16.msra.mxu0 0
      %875 = vmatprep.subr.bf16.mxu0 0
      %876 = vmatpush1.bf16.msra.mxu0 0
      %877 = vmatprep.subr.bf16.mxu0 0
      %878 = vmatpush1.bf16.msra.mxu0 0
      %879 = vmatprep.subr.bf16.mxu0 0
      %880 = vmatpush1.bf16.msra.mxu0 0
      %881 = vmatprep.subr.bf16.mxu0 0
      %882 = vmatpush1.bf16.msra.mxu0 0
      %883 = vmatprep.subr.bf16.mxu0 0
      %884 = vmatpush1.bf16.msra.mxu0 0
      %885 = vmatprep.subr.bf16.mxu0 0
      %886 = vmatpush1.bf16.msra.mxu0 0
      %887 = vmatprep.mubr.bf16.mxu0 0
      %888 = vmatmul.mubr.bf16.gmra.mrb[0].mxu0 %v850
      %v889 = vpop.f32.mrb[0].mxu0
      %v890 = vadd.f32 0.0, %v889
      %v891 = vpop.f32.mrb[0].mxu0
      %v892 = vpop.f32.mrb[0].mxu0
      %v893 = vadd.f32 0.0, %v892
      %v894 = vpop.f32.mrb[0].mxu0
      %895 = vmatprep.mubr.bf16.mxu0 0
      %896 = vmatmul.mubr.bf16.gmra.mrb[0].mxu0 %v853
      %v897 = vpop.f32.mrb[0].mxu0
      %v898 = vadd.f32 0.0, %v897
      %v899 = vpop.f32.mrb[0].mxu0
      %v900 = vpop.f32.mrb[0].mxu0
      %v901 = vadd.f32 0.0, %v900
      %v902 = vpop.f32.mrb[0].mxu0
      %903 = vdwg.mxu0
      %v904 = vadd.f32 %v825, %v890
      %v905 = vadd.f32 %v826, %v893
      %v906 = vadd.f32 %v827, %v898
      %v907 = vadd.f32 %v828, %v901
      %v908 = vld [vmem:[%s2] sm:$0xff]
      %v909 = vld [vmem:[%s2 + $0x8] sm:$0xff]
      %v910 = vld [vmem:[%s2 + $0x10] sm:$0xff]
      %v911 = vld [vmem:[%s2 + $0x18] sm:$0xff]
      %913 = vset.pattern.permute.xlu0 0
      %914 = vperm.xlu0 %913, %v908
      %v915 = vpop.permute.xlu0 %914
      %918 = vset.pattern.permute.xlu0 0
      %919 = vperm.xlu0 %918, %v909
      %v920 = vpop.permute.xlu0 %919
      %923 = vset.pattern.permute.xlu0 0
      %924 = vperm.xlu0 %923, %v910
      %v925 = vpop.permute.xlu0 %924
      %928 = vset.pattern.permute.xlu0 0
      %929 = vperm.xlu0 %928, %v911
      %v930 = vpop.permute.xlu0 %929
      %v932 = vadd.f32 %v904, %v915
      %v933 = vadd.f32 %v905, %v920
      %v934 = vadd.f32 %v906, %v925
      %v935 = vadd.f32 %v907, %v930
      %v936 = vmax.f32 %v932, 0.0
      %v937 = vmax.f32 %v933, 0.0
      %v938 = vmax.f32 %v934, 0.0
      %v939 = vmax.f32 %v935, 0.0
      %v940 = vpack.c.bf16 %v937, %v936
      %v941 = vpack.c.bf16 %v939, %v938
      %v942 = vld [vmem:[%s3] sm:$0xf]
      %v943 = vld [vmem:[%s4] sm:$0xff]
      %945 = vset.pattern.permute.xlu0 0
      %946 = vperm.xlu0 %945, %v943
      %v947 = vpop.permute.xlu0 %946
      %v950 = vsel %vm262, %v942, 0
      %952 = vmatprep.subr.bf16.mxu0 0
      %953 = vmatpush1.bf16.msra.mxu0 %v940
      %954 = vmatprep.subr.bf16.mxu0 0
      %955 = vmatpush1.bf16.msra.mxu0 %v941
      %956 = vmatprep.subr.bf16.mxu0 0
      %957 = vmatpush1.bf16.msra.mxu0 0
      %958 = vmatprep.subr.bf16.mxu0 0
      %959 = vmatpush1.bf16.msra.mxu0 0
      %960 = vmatprep.subr.bf16.mxu0 0
      %961 = vmatpush1.bf16.msra.mxu0 0
      %962 = vmatprep.subr.bf16.mxu0 0
      %963 = vmatpush1.bf16.msra.mxu0 0
      %964 = vmatprep.subr.bf16.mxu0 0
      %965 = vmatpush1.bf16.msra.mxu0 0
      %966 = vmatprep.subr.bf16.mxu0 0
      %967 = vmatpush1.bf16.msra.mxu0 0
      %968 = vmatprep.subr.bf16.mxu0 0
      %969 = vmatpush1.bf16.msra.mxu0 0
      %970 = vmatprep.subr.bf16.mxu0 0
      %971 = vmatpush1.bf16.msra.mxu0 0
      %972 = vmatprep.subr.bf16.mxu0 0
      %973 = vmatpush1.bf16.msra.mxu0 0
      %974 = vmatprep.subr.bf16.mxu0 0
      %975 = vmatpush1.bf16.msra.mxu0 0
      %976 = vmatprep.subr.bf16.mxu0 0
      %977 = vmatpush1.bf16.msra.mxu0 0
      %978 = vmatprep.subr.bf16.mxu0 0
      %979 = vmatpush1.bf16.msra.mxu0 0
      %980 = vmatprep.subr.bf16.mxu0 0
      %981 = vmatpush1.bf16.msra.mxu0 0
      %982 = vmatprep.subr.bf16.mxu0 0
      %983 = vmatpush1.bf16.msra.mxu0 0
      %984 = vmatprep.mubr.bf16.mxu0 0
      %985 = vmatmul.mubr.bf16.gmra.mrb[0].mxu0 %v950
      %v986 = vpop.f32.mrb[0].mxu0
      %v987 = vadd.f32 %v947, %v986
      %v988 = vpop.f32.mrb[0].mxu0
      %v989 = vpop.f32.mrb[0].mxu0
      %v990 = vpop.f32.mrb[0].mxu0
      %991 = vdwg.mxu0
      %v992 = vpack.c.bf16 %v987, %v987
      %vm993 = vcmask 158720
      %994 = vst.msk [vmem:[%s222] sm:$0xf] %vm993, %v992
      %p995 = scmp.lt.s32.totalorder %s16, 1
      %s996 = scalar_select %p995, %s16, 1
      %s997 = smul.addr %s996, 4
      %s998 = scalar_lea.vmem %s5, %s997
      // Predicated region
      $region41: #{segmentation_forward.4} parent=39 // pred_check
        %p999 = pneg %p144
      $region42: #{segmentation_forward.4} parent=39 // pred_check_branch
        %1001 = sbr.rel (%p999) target = $region44
      $region43: #{segmentation_forward.4} parent=39 // pred_region
        _
      $region44: #{segmentation_forward.4} parent=39 // pred_fallthru
        _
    $region40: #{segmentation_forward.4} parent=5 // pred_fallthru
      _
    %p1002 = scmp.le.s32.totalorder 2, %s11
    // Predicated region
    $region45: #{segmentation_forward.4} parent=5 // pred_check
      %p1003 = pneg %p1002
    $region46: #{segmentation_forward.4} parent=5 // pred_check_branch
      %1005 = sbr.rel (%p1003) target = $region48
    $region47: #{segmentation_forward.4} parent=5 // pred_region
      %s1006 = ssub.s32 %s11, 2
      // Predicated region
      $region49: #{segmentation_forward.4} parent=47 // pred_check
        %p1007 = pneg %p150
      $region50: #{segmentation_forward.4} parent=47 // pred_check_branch
        %1009 = sbr.rel (%p1007) target = $region52
      $region51: #{segmentation_forward.4} parent=47 // pred_region
        %p1010 = scmp.lt.s32.totalorder %s17, 1
        %s1011 = scalar_select %p1010, %s17, 1
        %s1012 = smul.addr %s1011, 4
        %s1013 = scalar_lea.vmem %s5, %s1012
      $region52: #{segmentation_forward.4} parent=47 // pred_fallthru
        _
    $region48: #{segmentation_forward.4} parent=5 // pred_fallthru
      _
  $region6: #{segmentation_forward.4} parent=0 // loop_footer
    %s15 = sadd.s32 1, %s11
  $region7: #{segmentation_forward.4} parent=0 // loop_footer_branch
    %10 = sbr.rel target = $region3
  $region8: #{segmentation_forward.4} parent=0 // loop_exit
    _

// kernel: segmentation_forward.5
$region0: #{segmentation_forward.5}
  #allocation0 [shape = 'u32[]', space=smem, size = 0x4, offset = 0x4, fixed_abs, tag = 'smem constant byte address 0x4 - core index']
  #allocation1 [shape = 'u32[144,128]{1,0:T(1,128)}', space=vmem, size = 0x12000, scoped, tag = 'internal scratch']
  %s0 = inlined_call_operand.vmem [shape: bf16[2,32,5], index: 0, kind: input, shape index: {}]
  %s1 = inlined_call_operand.vmem [shape: bf16[5,16], index: 1, kind: input, shape index: {}]
  %s2 = inlined_call_operand.vmem [shape: bf16[16,4], index: 2, kind: input, shape index: {}]
  %s3 = inlined_call_operand.hbm [shape: f32[2,8,16,16], index: 3, kind: output, shape index: {}]
  %s4 = sld [smem:[#allocation0]]
  $region45: #{segmentation_forward.5} parent=0
    _
  %s6 = ssub.s32 1, %s4
  %s7 = scalar_select 0, %s6, %s4
  $region1: #{segmentation_forward.5} parent=0
    #allocation2 [shape = 'u8[131072]{0}', space=vmem, size = 0x20000, scoped, tag = 'output window, operand 0']
    #allocation3 [shape = 's32[2]{0}', space=sflag, size = 0x8, scoped, tag = 'scoped memory for segmentation_forward.5']
    %8 = vsyncpa [#allocation3], 0
    %s9 = scalar_lea.sflag [#allocation3], 1
    %10 = vsyncpa %s9, 0
    loop: start=0, step=1, limit=4
    $region2: #{segmentation_forward.5} parent=1 // loop_pre_header
      _
    $region3: #{segmentation_forward.5} parent=1 // loop_header
      %s12 = sphi 0, %s16
      %p13 = scmp.ge.s32.totalorder %s12, 4
      %s22 = sphi 0, %s24
      %s25 = sphi 0, %s22
      %s26 = sphi 0, %s25
      %s42 = sphi 0, %s26
      %s46 = sphi 0, %s46
      %s48 = sphi 0, %s46
      %s49 = sphi 0, %s48
      %s63 = sphi 0, %s49
      %s67 = sphi 0, %s67
      %s69 = sphi 0, %s67
      %s70 = sphi 0, %s69
      %s84 = sphi 0, %s70
      %s90 = sphi 0, %s92
      %s93 = sphi 0, %s90
      %s94 = sphi 0, %s93
      %s110 = sphi 0, %s94
    $region4: #{segmentation_forward.5} parent=1 // loop_header_branch
      %15 = sbr.rel (%p13) target = $region8
    $region5: #{segmentation_forward.5} parent=1 // loop_body
      %s17 = ssub.s32 %s12, 1
      %s18 = ssub.s32 %s12, 2
      %s19 = sadd.s32 %s12, 1
      %s20 = ssub.s32 %s12, %s19
      %p21 = scmp.eq.s32.totalorder %s20, 0
      %s23 = sadd.s32 %s22, 1
      %s24 = scalar_select %p21, %s22, %s23
      %p27 = pneg %p21
      %p28 = scmp.eq.s32.totalorder %s12, 1
      %p29 = por %p27, %p28
      %p30 = scmp.ne.s32.totalorder %s22, %s25
      %p31 = scmp.eq.s32.totalorder %s12, 0
      %p32 = por %p30, %p31
      %p33 = scmp.ne.s32.totalorder %s22, %s25
      %p34 = scmp.eq.s32.totalorder %s17, 1
      %p35 = por %p33, %p34
      %p36 = scmp.ne.s32.totalorder %s25, %s26
      %p37 = scmp.eq.s32.totalorder %s17, 0
      %p38 = por %p36, %p37
      %p39 = scmp.ne.s32.totalorder %s25, %s26
      %p40 = scmp.eq.s32.totalorder %s18, 1
      %p41 = por %p39, %p40
      %p43 = scmp.ne.s32.totalorder %s26, %s42
      %p44 = scmp.eq.s32.totalorder %s18, 0
      %p45 = por %p43, %p44
      %s47 = sadd.s32 %s46, 1
      %p50 = scmp.eq.s32.totalorder %s12, 1
      %p51 = scmp.ne.s32.totalorder %s46, %s48
      %p52 = scmp.eq.s32.totalorder %s12, 0
      %p53 = por %p51, %p52
      %p54 = scmp.ne.s32.totalorder %s46, %s48
      %p55 = scmp.eq.s32.totalorder %s17, 1
      %p56 = por %p54, %p55
      %p57 = scmp.ne.s32.totalorder %s48, %s49
      %p58 = scmp.eq.s32.totalorder %s17, 0
      %p59 = por %p57, %p58
      %p60 = scmp.ne.s32.totalorder %s48, %s49
      %p61 = scmp.eq.s32.totalorder %s18, 1
      %p62 = por %p60, %p61
      %p64 = scmp.ne.s32.totalorder %s49, %s63
      %p65 = scmp.eq.s32.totalorder %s18, 0
      %p66 = por %p64, %p65
      %s68 = sadd.s32 %s67, 1
      %p71 = scmp.eq.s32.totalorder %s12, 1
      %p72 = scmp.ne.s32.totalorder %s67, %s69
      %p73 = scmp.eq.s32.totalorder %s12, 0
      %p74 = por %p72, %p73
      %p75 = scmp.ne.s32.totalorder %s67, %s69
      %p76 = scmp.eq.s32.totalorder %s17, 1
      %p77 = por %p75, %p76
      %p78 = scmp.ne.s32.totalorder %s69, %s70
      %p79 = scmp.eq.s32.totalorder %s17, 0
      %p80 = por %p78, %p79
      %p81 = scmp.ne.s32.totalorder %s69, %s70
      %p82 = scmp.eq.s32.totalorder %s18, 1
      %p83 = por %p81, %p82
      %p85 = scmp.ne.s32.totalorder %s70, %s84
      %p86 = scmp.eq.s32.totalorder %s18, 0
      %p87 = por %p85, %p86
      %s88 = ssub.s32 %s12, %s19
      %p89 = scmp.eq.s32.totalorder %s88, 0
      %s91 = sadd.s32 %s90, 1
      %s92 = scalar_select %p89, %s90, %s91
      %p95 = pneg %p89
      %p96 = scmp.eq.s32.totalorder %s12, 1
      %p97 = por %p95, %p96
      %p98 = scmp.ne.s32.totalorder %s90, %s93
      %p99 = scmp.eq.s32.totalorder %s12, 0
      %p100 = por %p98, %p99
      %p101 = scmp.ne.s32.totalorder %s90, %s93
      %p102 = scmp.eq.s32.totalorder %s17, 1
      %p103 = por %p101, %p102
      %p104 = scmp.ne.s32.totalorder %s93, %s94
      %p105 = scmp.eq.s32.totalorder %s17, 0
      %p106 = por %p104, %p105
      %p107 = scmp.ne.s32.totalorder %s93, %s94
      %p108 = scmp.eq.s32.totalorder %s18, 1
      %p109 = por %p107, %p108
      %p111 = scmp.ne.s32.totalorder %s94, %s110
      %p112 = scmp.eq.s32.totalorder %s18, 0
      %p113 = por %p111, %p112
      %p114 = scmp.le.s32.totalorder 1, %s12
      %p115 = scmp.lt.s32.totalorder %s12, 3
      %p116 = pnand %p114, %p115
      %p117 = pneg %p116
      // Predicated region
      $region9: #{segmentation_forward.5} parent=5 // pred_check
        _
      $region10: #{segmentation_forward.5} parent=5 // pred_check_branch
        %119 = sbr.rel (%p116) target = $region12
      $region11: #{segmentation_forward.5} parent=5 // pred_region
        %s120 = ssub.s32 %s12, 1
        // Predicated region
        $region13: #{segmentation_forward.5} parent=11 // pred_check
          %p121 = pneg %p59
        $region14: #{segmentation_forward.5} parent=11 // pred_check_branch
          %123 = sbr.rel (%p121) target = $region16
        $region15: #{segmentation_forward.5} parent=11 // pred_region
          _
        $region16: #{segmentation_forward.5} parent=11 // pred_fallthru
          _
        // Predicated region
        $region17: #{segmentation_forward.5} parent=11 // pred_check
          %p124 = pneg %p80
        $region18: #{segmentation_forward.5} parent=11 // pred_check_branch
          %126 = sbr.rel (%p124) target = $region20
        $region19: #{segmentation_forward.5} parent=11 // pred_region
          _
        $region20: #{segmentation_forward.5} parent=11 // pred_fallthru
          _
      $region12: #{segmentation_forward.5} parent=5 // pred_fallthru
        _
      %p127 = scmp.lt.s32.totalorder %s12, 2
      // Predicated region
      $region21: #{segmentation_forward.5} parent=5 // pred_check
        %p128 = pneg %p127
      $region22: #{segmentation_forward.5} parent=5 // pred_check_branch
        %130 = sbr.rel (%p128) target = $region24
      $region23: #{segmentation_forward.5} parent=5 // pred_region
        // Predicated region
        $region25: #{segmentation_forward.5} parent=23 // pred_check
          %p131 = pneg %p32
        $region26: #{segmentation_forward.5} parent=23 // pred_check_branch
          %133 = sbr.rel (%p131) target = $region28
        $region27: #{segmentation_forward.5} parent=23 // pred_region
          %p134 = scmp.lt.s32.totalorder %s12, 1
          %s135 = scalar_select %p134, %s12, 1
          %s136 = smul.addr %s135, 4
          %s137 = smul.addr %s136, 4
          %s138 = scalar_lea.vmem %s0, %s137
        $region28: #{segmentation_forward.5} parent=23 // pred_fallthru
          _
      $region24: #{segmentation_forward.5} parent=5 // pred_fallthru
        _
      %p139 = scmp.le.s32.totalorder 1, %s12
      %p140 = scmp.lt.s32.totalorder %s12, 3
      %p141 = pnand %p139, %p140
      %p142 = pneg %p141
      // Predicated region
      $region29: #{segmentation_forward.5} parent=5 // pred_check
        _
      $region30: #{segmentation_forward.5} parent=5 // pred_check_branch
        %144 = sbr.rel (%p141) target = $region32
      $region31: #{segmentation_forward.5} parent=5 // pred_region
        %s145 = ssub.s32 %s12, 1
        %p146 = scmp.lt.s32.totalorder %s17, 1
        %s147 = scalar_select %p146, %s17, 1
        %s148 = smul.addr %s147, 4
        %s149 = smul.addr %s148, 4
        %s150 = scalar_lea.vmem %s0, %s149
        %p151 = pneg %p38
        %p152 = pneg %p35
        %p153 = pneg %p59
        %p154 = pneg %p56
        %p155 = pneg %p80
        %p156 = pneg %p77
        %p157 = pneg %p106
        %p158 = pneg %p103
        %s159 = sand.u32 %s93, 1
        %s160 = scalar_lea.sflag [#allocation3], %s159
        %s161 = sand.u32 %s93, 1
        %s162 = smul.addr %s161, 128
        %s163 = scalar_lea.vmem [#allocation2], %s162
        %p164 = scmp.lt.s32.totalorder %s17, 1
        %s165 = scalar_select %p164, %s17, 1
        %s166 = smul.addr %s165, 4
        %s167 = smul.addr %s166, 4
        %s168 = scalar_lea.vmem %s0, %s167
        %v170 = vld [vmem:[%s168] sm:$0xf]
        %v171 = vld [vmem:[%s168 + $0x4] sm:$0xf]
        %v172 = vld [vmem:[%s168 + $0x8] sm:$0xf]
        %v173 = vld [vmem:[%s168 + $0xc] sm:$0xf]
        %v174 = vld [vmem:[%s1] sm:$0x7]
        %v179 = vunpack.c.l.b16 %v170
        %v180 = vunpack.c.l.b16 %v171
        %v181 = vunpack.c.l.b16 %v172
        %v182 = vunpack.c.l.b16 %v173
        %v183 = vpack.c.b16 %v180, %v179
        %v184 = vpack.c.b16 %v182, %v181
        %vm185 = vcmask 39936
        %v187 = vsel %vm185, %v183, 0
        %v190 = vsel %vm185, %v184, 0
        %vm192 = vcmask 1041408
        %vm193 = vcmask 1042432
        %v194 = vsel %vm192, 4294967295, 65535
        %v195 = vsel %vm193, %v194, 0
        %v197 = vand.u32 %v174, %v195
        %199 = vmatprep.subr.bf16.mxu0 0
        %200 = vmatpush1.bf16.msra.mxu0 %v197
        %201 = vmatprep.subr.bf16.mxu0 0
        %202 = vmatpush1.bf16.msra.mxu0 0
        %203 = vmatprep.subr.bf16.mxu0 0
        %204 = vmatpush1.bf16.msra.mxu0 0
        %205 = vmatprep.subr.bf16.mxu0 0
        %206 = vmatpush1.bf16.msra.mxu0 0
        %207 = vmatprep.subr.bf16.mxu0 0
        %208 = vmatpush1.bf16.msra.mxu0 0
        %209 = vmatprep.subr.bf16.mxu0 0
        %210 = vmatpush1.bf16.msra.mxu0 0
        %211 = vmatprep.subr.bf16.mxu0 0
        %212 = vmatpush1.bf16.msra.mxu0 0
        %213 = vmatprep.subr.bf16.mxu0 0
        %214 = vmatpush1.bf16.msra.mxu0 0
        %215 = vmatprep.subr.bf16.mxu0 0
        %216 = vmatpush1.bf16.msra.mxu0 0
        %217 = vmatprep.subr.bf16.mxu0 0
        %218 = vmatpush1.bf16.msra.mxu0 0
        %219 = vmatprep.subr.bf16.mxu0 0
        %220 = vmatpush1.bf16.msra.mxu0 0
        %221 = vmatprep.subr.bf16.mxu0 0
        %222 = vmatpush1.bf16.msra.mxu0 0
        %223 = vmatprep.subr.bf16.mxu0 0
        %224 = vmatpush1.bf16.msra.mxu0 0
        %225 = vmatprep.subr.bf16.mxu0 0
        %226 = vmatpush1.bf16.msra.mxu0 0
        %227 = vmatprep.subr.bf16.mxu0 0
        %228 = vmatpush1.bf16.msra.mxu0 0
        %229 = vmatprep.subr.bf16.mxu0 0
        %230 = vmatpush1.bf16.msra.mxu0 0
        %231 = vmatprep.mubr.bf16.mxu0 0
        %232 = vmatmul.mubr.bf16.gmra.mrb[0].mxu0 %v187
        %v233 = vpop.f32.mrb[0].mxu0
        %v234 = vadd.f32 0.0, %v233
        %v235 = vpop.f32.mrb[0].mxu0
        %v236 = vpop.f32.mrb[0].mxu0
        %v237 = vadd.f32 0.0, %v236
        %v238 = vpop.f32.mrb[0].mxu0
        %239 = vmatprep.mubr.bf16.mxu0 0
        %240 = vmatmul.mubr.bf16.gmra.mrb[0].mxu0 %v190
        %v241 = vpop.f32.mrb[0].mxu0
        %v242 = vadd.f32 0.0, %v241
        %v243 = vpop.f32.mrb[0].mxu0
        %v244 = vpop.f32.mrb[0].mxu0
        %v245 = vadd.f32 0.0, %v244
        %v246 = vpop.f32.mrb[0].mxu0
        %247 = vdwg.mxu0
        %v248 = vpack.c.bf16 %v237, %v234
        %v249 = vpack.c.bf16 %v245, %v242
        %v250 = vld [vmem:[%s2] sm:$0xf]
        %v251 = vld [vmem:[%s2 + $0x4] sm:$0xf]
        %v254 = vunpack.c.l.b16 %v250
        %v255 = vunpack.c.l.b16 %v251
        %v256 = vpack.c.b16 %v255, %v254
        %vm257 = vcmask 31744
        %v259 = vsel %vm257, %v256, 0
        %v262 = vsel %vm192, %v248, 0
        %264 = vmatprep.subr.bf16.mxu0 0
        %265 = vmatpush1.bf16.msra.mxu0 %v262
        %266 = vmatprep.subr.bf16.mxu0 0
        %267 = vmatpush1.bf16.msra.mxu0 0
        %268 = vmatprep.subr.bf16.mxu0 0
        %269 = vmatpush1.bf16.msra.mxu0 0
        %270 = vmatprep.subr.bf16.mxu0 0
        %271 = vmatpush1.bf16.msra.mxu0 0
        %272 = vmatprep.subr.bf16.mxu0 0
        %273 = vmatpush1.bf16.msra.mxu0 0
        %274 = vmatprep.subr.bf16.mxu0 0
        %275 = vmatpush1.bf16.msra.mxu0 0
        %276 = vmatprep.subr.bf16.mxu0 0
        %277 = vmatpush1.bf16.msra.mxu0 0
        %278 = vmatprep.subr.bf16.mxu0 0
        %279 = vmatpush1.bf16.msra.mxu0 0
        %280 = vmatprep.subr.bf16.mxu0 0
        %281 = vmatpush1.bf16.msra.mxu0 0
        %282 = vmatprep.subr.bf16.mxu0 0
        %283 = vmatpush1.bf16.msra.mxu0 0
        %284 = vmatprep.subr.bf16.mxu0 0
        %285 = vmatpush1.bf16.msra.mxu0 0
        %286 = vmatprep.subr.bf16.mxu0 0
        %287 = vmatpush1.bf16.msra.mxu0 0
        %288 = vmatprep.subr.bf16.mxu0 0
        %289 = vmatpush1.bf16.msra.mxu0 0
        %290 = vmatprep.subr.bf16.mxu0 0
        %291 = vmatpush1.bf16.msra.mxu0 0
        %292 = vmatprep.subr.bf16.mxu0 0
        %293 = vmatpush1.bf16.msra.mxu0 0
        %294 = vmatprep.subr.bf16.mxu0 0
        %295 = vmatpush1.bf16.msra.mxu0 0
        %296 = vmatprep.mubr.bf16.mxu0 0
        %297 = vmatmul.mubr.bf16.gmra.mrb[0].mxu0 %v259
        %v298 = vpop.f32.mrb[0].mxu0
        %v299 = vadd.f32 0.0, %v298
        %v300 = vpop.f32.mrb[0].mxu0
        %v301 = vpop.f32.mrb[0].mxu0
        %v302 = vadd.f32 0.0, %v301
        %v303 = vpop.f32.mrb[0].mxu0
        %304 = vdwg.mxu0
        %vm305 = vcmask 130048
        %306 = vst.msk [vmem:[%s163] sm:$0xff] %vm305, %v299
        %307 = vst.msk [vmem:[%s163 + $0x8] sm:$0xff] %vm305, %v302
        %v308 = vld [vmem:[%s2] sm:$0xf]
        %v309 = vld [vmem:[%s2 + $0x4] sm:$0xf]
        %v312 = vunpack.c.l.b16 %v308
        %v313 = vunpack.c.l.b16 %v309
        %v314 = vpack.c.b16 %v313, %v312
        %v316 = vrot.slane %v248, 2
        %v318 = vsel %vm257, %v314, 0
        %v321 = vsel %vm192, %v316, 0
        %323 = vmatprep.subr.bf16.mxu0 0
        %324 = vmatpush1.bf16.msra.mxu0 %v321
        %325 = vmatprep.subr.bf16.mxu0 0
        %326 = vmatpush1.bf16.msra.mxu0 0
        %327 = vmatprep.subr.bf16.mxu0 0
        %328 = vmatpush1.bf16.msra.mxu0 0
        %329 = vmatprep.subr.bf16.mxu0 0
        %330 = vmatpush1.bf16.msra.mxu0 0
        %331 = vmatprep.subr.bf16.mxu0 0
        %332 = vmatpush1.bf16.msra.mxu0 0
        %333 = vmatprep.subr.bf16.mxu0 0
        %334 = vmatpush1.bf16.msra.mxu0 0
        %335 = vmatprep.subr.bf16.mxu0 0
        %336 = vmatpush1.bf16.msra.mxu0 0
        %337 = vmatprep.subr.bf16.mxu0 0
        %338 = vmatpush1.bf16.msra.mxu0 0
        %339 = vmatprep.subr.bf16.mxu0 0
        %340 = vmatpush1.bf16.msra.mxu0 0
        %341 = vmatprep.subr.bf16.mxu0 0
        %342 = vmatpush1.bf16.msra.mxu0 0
        %343 = vmatprep.subr.bf16.mxu0 0
        %344 = vmatpush1.bf16.msra.mxu0 0
        %345 = vmatprep.subr.bf16.mxu0 0
        %346 = vmatpush1.bf16.msra.mxu0 0
        %347 = vmatprep.subr.bf16.mxu0 0
        %348 = vmatpush1.bf16.msra.mxu0 0
        %349 = vmatprep.subr.bf16.mxu0 0
        %350 = vmatpush1.bf16.msra.mxu0 0
        %351 = vmatprep.subr.bf16.mxu0 0
        %352 = vmatpush1.bf16.msra.mxu0 0
        %353 = vmatprep.subr.bf16.mxu0 0
        %354 = vmatpush1.bf16.msra.mxu0 0
        %355 = vmatprep.mubr.bf16.mxu0 0
        %356 = vmatmul.mubr.bf16.gmra.mrb[0].mxu0 %v318
        %v357 = vpop.f32.mrb[0].mxu0
        %v358 = vadd.f32 0.0, %v357
        %v359 = vpop.f32.mrb[0].mxu0
        %v360 = vpop.f32.mrb[0].mxu0
        %v361 = vadd.f32 0.0, %v360
        %v362 = vpop.f32.mrb[0].mxu0
        %363 = vdwg.mxu0
        %s364 = scalar_lea.vmem %s163, 16 [#allocation2]
        %365 = vst.msk [vmem:[%s364] sm:$0xff] %vm305, %v358
        %366 = vst.msk [vmem:[%s364 + $0x8] sm:$0xff] %vm305, %v361
        %v367 = vld [vmem:[%s2] sm:$0xf]
        %v368 = vld [vmem:[%s2 + $0x4] sm:$0xf]
        %v371 = vunpack.c.l.b16 %v367
        %v372 = vunpack.c.l.b16 %v368
        %v373 = vpack.c.b16 %v372, %v371
        %v374 = vrot.slane %v248, 4
        %v376 = vsel %vm257, %v373, 0
        %v379 = vsel %vm192, %v374, 0
        %381 = vmatprep.subr.bf16.mxu0 0
        %382 = vmatpush1.bf16.msra.mxu0 %v379
        %383 = vmatprep.subr.bf16.mxu0 0
        %384 = vmatpush1.bf16.msra.mxu0 0
        %385 = vmatprep.subr.bf16.mxu0 0
        %386 = vmatpush1.bf16.msra.mxu0 0
        %387 = vmatprep.subr.bf16.mxu0 0
        %388 = vmatpush1.bf16.msra.mxu0 0
        %389 = vmatprep.subr.bf16.mxu0 0
        %390 = vmatpush1.bf16.msra.mxu0 0
        %391 = vmatprep.subr.bf16.mxu0 0
        %392 = vmatpush1.bf16.msra.mxu0 0
        %393 = vmatprep.subr.bf16.mxu0 0
        %394 = vmatpush1.bf16.msra.mxu0 0
        %395 = vmatprep.subr.bf16.mxu0 0
        %396 = vmatpush1.bf16.msra.mxu0 0
        %397 = vmatprep.subr.bf16.mxu0 0
        %398 = vmatpush1.bf16.msra.mxu0 0
        %399 = vmatprep.subr.bf16.mxu0 0
        %400 = vmatpush1.bf16.msra.mxu0 0
        %401 = vmatprep.subr.bf16.mxu0 0
        %402 = vmatpush1.bf16.msra.mxu0 0
        %403 = vmatprep.subr.bf16.mxu0 0
        %404 = vmatpush1.bf16.msra.mxu0 0
        %405 = vmatprep.subr.bf16.mxu0 0
        %406 = vmatpush1.bf16.msra.mxu0 0
        %407 = vmatprep.subr.bf16.mxu0 0
        %408 = vmatpush1.bf16.msra.mxu0 0
        %409 = vmatprep.subr.bf16.mxu0 0
        %410 = vmatpush1.bf16.msra.mxu0 0
        %411 = vmatprep.subr.bf16.mxu0 0
        %412 = vmatpush1.bf16.msra.mxu0 0
        %413 = vmatprep.mubr.bf16.mxu0 0
        %414 = vmatmul.mubr.bf16.gmra.mrb[0].mxu0 %v376
        %v415 = vpop.f32.mrb[0].mxu0
        %v416 = vadd.f32 0.0, %v415
        %v417 = vpop.f32.mrb[0].mxu0
        %v418 = vpop.f32.mrb[0].mxu0
        %v419 = vadd.f32 0.0, %v418
        %v420 = vpop.f32.mrb[0].mxu0
        %421 = vdwg.mxu0
        %s422 = scalar_lea.vmem %s163, 32 [#allocation2]
        %423 = vst.msk [vmem:[%s422] sm:$0xff] %vm305, %v416
        %424 = vst.msk [vmem:[%s422 + $0x8] sm:$0xff] %vm305, %v419
        %v425 = vld [vmem:[%s2] sm:$0xf]
        %v426 = vld [vmem:[%s2 + $0x4] sm:$0xf]
        %v429 = vunpack.c.l.b16 %v425
        %v430 = vunpack.c.l.b16 %v426
        %v431 = vpack.c.b16 %v430, %v429
        %v432 = vrot.slane %v248, 6
        %v434 = vsel %vm257, %v431, 0
        %v437 = vsel %vm192, %v432, 0
        %439 = vmatprep.subr.bf16.mxu0 0
        %440 = vmatpush1.bf16.msra.mxu0 %v437
        %441 = vmatprep.subr.bf16.mxu0 0
        %442 = vmatpush1.bf16.msra.mxu0 0
        %443 = vmatprep.subr.bf16.mxu0 0
        %444 = vmatpush1.bf16.msra.mxu0 0
        %445 = vmatprep.subr.bf16.mxu0 0
        %446 = vmatpush1.bf16.msra.mxu0 0
        %447 = vmatprep.subr.bf16.mxu0 0
        %448 = vmatpush1.bf16.msra.mxu0 0
        %449 = vmatprep.subr.bf16.mxu0 0
        %450 = vmatpush1.bf16.msra.mxu0 0
        %451 = vmatprep.subr.bf16.mxu0 0
        %452 = vmatpush1.bf16.msra.mxu0 0
        %453 = vmatprep.subr.bf16.mxu0 0
        %454 = vmatpush1.bf16.msra.mxu0 0
        %455 = vmatprep.subr.bf16.mxu0 0
        %456 = vmatpush1.bf16.msra.mxu0 0
        %457 = vmatprep.subr.bf16.mxu0 0
        %458 = vmatpush1.bf16.msra.mxu0 0
        %459 = vmatprep.subr.bf16.mxu0 0
        %460 = vmatpush1.bf16.msra.mxu0 0
        %461 = vmatprep.subr.bf16.mxu0 0
        %462 = vmatpush1.bf16.msra.mxu0 0
        %463 = vmatprep.subr.bf16.mxu0 0
        %464 = vmatpush1.bf16.msra.mxu0 0
        %465 = vmatprep.subr.bf16.mxu0 0
        %466 = vmatpush1.bf16.msra.mxu0 0
        %467 = vmatprep.subr.bf16.mxu0 0
        %468 = vmatpush1.bf16.msra.mxu0 0
        %469 = vmatprep.subr.bf16.mxu0 0
        %470 = vmatpush1.bf16.msra.mxu0 0
        %471 = vmatprep.mubr.bf16.mxu0 0
        %472 = vmatmul.mubr.bf16.gmra.mrb[0].mxu0 %v434
        %v473 = vpop.f32.mrb[0].mxu0
        %v474 = vadd.f32 0.0, %v473
        %v475 = vpop.f32.mrb[0].mxu0
        %v476 = vpop.f32.mrb[0].mxu0
        %v477 = vadd.f32 0.0, %v476
        %v478 = vpop.f32.mrb[0].mxu0
        %479 = vdwg.mxu0
        %s480 = scalar_lea.vmem %s163, 48 [#allocation2]
        %481 = vst.msk [vmem:[%s480] sm:$0xff] %vm305, %v474
        %482 = vst.msk [vmem:[%s480 + $0x8] sm:$0xff] %vm305, %v477
        %v483 = vld [vmem:[%s2] sm:$0xf]
        %v484 = vld [vmem:[%s2 + $0x4] sm:$0xf]
        %v487 = vunpack.c.l.b16 %v483
        %v488 = vunpack.c.l.b16 %v484
        %v489 = vpack.c.b16 %v488, %v487
        %v491 = vsel %vm257, %v489, 0
        %v494 = vsel %vm192, %v249, 0
        %496 = vmatprep.subr.bf16.mxu0 0
        %497 = vmatpush1.bf16.msra.mxu0 %v494
        %498 = vmatprep.subr.bf16.mxu0 0
        %499 = vmatpush1.bf16.msra.mxu0 0
        %500 = vmatprep.subr.bf16.mxu0 0
        %501 = vmatpush1.bf16.msra.mxu0 0
        %502 = vmatprep.subr.bf16.mxu0 0
        %503 = vmatpush1.bf16.msra.mxu0 0
        %504 = vmatprep.subr.bf16.mxu0 0
        %505 = vmatpush1.bf16.msra.mxu0 0
        %506 = vmatprep.subr.bf16.mxu0 0
        %507 = vmatpush1.bf16.msra.mxu0 0
        %508 = vmatprep.subr.bf16.mxu0 0
        %509 = vmatpush1.bf16.msra.mxu0 0
        %510 = vmatprep.subr.bf16.mxu0 0
        %511 = vmatpush1.bf16.msra.mxu0 0
        %512 = vmatprep.subr.bf16.mxu0 0
        %513 = vmatpush1.bf16.msra.mxu0 0
        %514 = vmatprep.subr.bf16.mxu0 0
        %515 = vmatpush1.bf16.msra.mxu0 0
        %516 = vmatprep.subr.bf16.mxu0 0
        %517 = vmatpush1.bf16.msra.mxu0 0
        %518 = vmatprep.subr.bf16.mxu0 0
        %519 = vmatpush1.bf16.msra.mxu0 0
        %520 = vmatprep.subr.bf16.mxu0 0
        %521 = vmatpush1.bf16.msra.mxu0 0
        %522 = vmatprep.subr.bf16.mxu0 0
        %523 = vmatpush1.bf16.msra.mxu0 0
        %524 = vmatprep.subr.bf16.mxu0 0
        %525 = vmatpush1.bf16.msra.mxu0 0
        %526 = vmatprep.subr.bf16.mxu0 0
        %527 = vmatpush1.bf16.msra.mxu0 0
        %528 = vmatprep.mubr.bf16.mxu0 0
        %529 = vmatmul.mubr.bf16.gmra.mrb[0].mxu0 %v491
        %v530 = vpop.f32.mrb[0].mxu0
        %v531 = vadd.f32 0.0, %v530
        %v532 = vpop.f32.mrb[0].mxu0
        %v533 = vpop.f32.mrb[0].mxu0
        %v534 = vadd.f32 0.0, %v533
        %v535 = vpop.f32.mrb[0].mxu0
        %536 = vdwg.mxu0
        %s537 = scalar_lea.vmem %s163, 64 [#allocation2]
        %538 = vst.msk [vmem:[%s537] sm:$0xff] %vm305, %v531
        %539 = vst.msk [vmem:[%s537 + $0x8] sm:$0xff] %vm305, %v534
        %v540 = vld [vmem:[%s2] sm:$0xf]
        %v541 = vld [vmem:[%s2 + $0x4] sm:$0xf]
        %v544 = vunpack.c.l.b16 %v540
        %v545 = vunpack.c.l.b16 %v541
        %v546 = vpack.c.b16 %v545, %v544
        %v548 = vrot.slane %v249, 2
        %v550 = vsel %vm257, %v546, 0
        %v553 = vsel %vm192, %v548, 0
        %555 = vmatprep.subr.bf16.mxu0 0
        %556 = vmatpush1.bf16.msra.mxu0 %v553
        %557 = vmatprep.subr.bf16.mxu0 0
        %558 = vmatpush1.bf16.msra.mxu0 0
        %559 = vmatprep.subr.bf16.mxu0 0
        %560 = vmatpush1.bf16.msra.mxu0 0
        %561 = vmatprep.subr.bf16.mxu0 0
        %562 = vmatpush1.bf16.msra.mxu0 0
        %563 = vmatprep.subr.bf16.mxu0 0
        %564 = vmatpush1.bf16.msra.mxu0 0
        %565 = vmatprep.subr.bf16.mxu0 0
        %566 = vmatpush1.bf16.msra.mxu0 0
        %567 = vmatprep.subr.bf16.mxu0 0
        %568 = vmatpush1.bf16.msra.mxu0 0
        %569 = vmatprep.subr.bf16.mxu0 0
        %570 = vmatpush1.bf16.msra.mxu0 0
        %571 = vmatprep.subr.bf16.mxu0 0
        %572 = vmatpush1.bf16.msra.mxu0 0
        %573 = vmatprep.subr.bf16.mxu0 0
        %574 = vmatpush1.bf16.msra.mxu0 0
        %575 = vmatprep.subr.bf16.mxu0 0
        %576 = vmatpush1.bf16.msra.mxu0 0
        %577 = vmatprep.subr.bf16.mxu0 0
        %578 = vmatpush1.bf16.msra.mxu0 0
        %579 = vmatprep.subr.bf16.mxu0 0
        %580 = vmatpush1.bf16.msra.mxu0 0
        %581 = vmatprep.subr.bf16.mxu0 0
        %582 = vmatpush1.bf16.msra.mxu0 0
        %583 = vmatprep.subr.bf16.mxu0 0
        %584 = vmatpush1.bf16.msra.mxu0 0
        %585 = vmatprep.subr.bf16.mxu0 0
        %586 = vmatpush1.bf16.msra.mxu0 0
        %587 = vmatprep.mubr.bf16.mxu0 0
        %588 = vmatmul.mubr.bf16.gmra.mrb[0].mxu0 %v550
        %v589 = vpop.f32.mrb[0].mxu0
        %v590 = vadd.f32 0.0, %v589
        %v591 = vpop.f32.mrb[0].mxu0
        %v592 = vpop.f32.mrb[0].mxu0
        %v593 = vadd.f32 0.0, %v592
        %v594 = vpop.f32.mrb[0].mxu0
        %595 = vdwg.mxu0
        %s596 = scalar_lea.vmem %s163, 80 [#allocation2]
        %597 = vst.msk [vmem:[%s596] sm:$0xff] %vm305, %v590
        %598 = vst.msk [vmem:[%s596 + $0x8] sm:$0xff] %vm305, %v593
        %v599 = vld [vmem:[%s2] sm:$0xf]
        %v600 = vld [vmem:[%s2 + $0x4] sm:$0xf]
        %v603 = vunpack.c.l.b16 %v599
        %v604 = vunpack.c.l.b16 %v600
        %v605 = vpack.c.b16 %v604, %v603
        %v606 = vrot.slane %v249, 4
        %v608 = vsel %vm257, %v605, 0
        %v611 = vsel %vm192, %v606, 0
        %613 = vmatprep.subr.bf16.mxu0 0
        %614 = vmatpush1.bf16.msra.mxu0 %v611
        %615 = vmatprep.subr.bf16.mxu0 0
        %616 = vmatpush1.bf16.msra.mxu0 0
        %617 = vmatprep.subr.bf16.mxu0 0
        %618 = vmatpush1.bf16.msra.mxu0 0
        %619 = vmatprep.subr.bf16.mxu0 0
        %620 = vmatpush1.bf16.msra.mxu0 0
        %621 = vmatprep.subr.bf16.mxu0 0
        %622 = vmatpush1.bf16.msra.mxu0 0
        %623 = vmatprep.subr.bf16.mxu0 0
        %624 = vmatpush1.bf16.msra.mxu0 0
        %625 = vmatprep.subr.bf16.mxu0 0
        %626 = vmatpush1.bf16.msra.mxu0 0
        %627 = vmatprep.subr.bf16.mxu0 0
        %628 = vmatpush1.bf16.msra.mxu0 0
        %629 = vmatprep.subr.bf16.mxu0 0
        %630 = vmatpush1.bf16.msra.mxu0 0
        %631 = vmatprep.subr.bf16.mxu0 0
        %632 = vmatpush1.bf16.msra.mxu0 0
        %633 = vmatprep.subr.bf16.mxu0 0
        %634 = vmatpush1.bf16.msra.mxu0 0
        %635 = vmatprep.subr.bf16.mxu0 0
        %636 = vmatpush1.bf16.msra.mxu0 0
        %637 = vmatprep.subr.bf16.mxu0 0
        %638 = vmatpush1.bf16.msra.mxu0 0
        %639 = vmatprep.subr.bf16.mxu0 0
        %640 = vmatpush1.bf16.msra.mxu0 0
        %641 = vmatprep.subr.bf16.mxu0 0
        %642 = vmatpush1.bf16.msra.mxu0 0
        %643 = vmatprep.subr.bf16.mxu0 0
        %644 = vmatpush1.bf16.msra.mxu0 0
        %645 = vmatprep.mubr.bf16.mxu0 0
        %646 = vmatmul.mubr.bf16.gmra.mrb[0].mxu0 %v608
        %v647 = vpop.f32.mrb[0].mxu0
        %v648 = vadd.f32 0.0, %v647
        %v649 = vpop.f32.mrb[0].mxu0
        %v650 = vpop.f32.mrb[0].mxu0
        %v651 = vadd.f32 0.0, %v650
        %v652 = vpop.f32.mrb[0].mxu0
        %653 = vdwg.mxu0
        %s654 = scalar_lea.vmem %s163, 96 [#allocation2]
        %655 = vst.msk [vmem:[%s654] sm:$0xff] %vm305, %v648
        %656 = vst.msk [vmem:[%s654 + $0x8] sm:$0xff] %vm305, %v651
        %v657 = vld [vmem:[%s2] sm:$0xf]
        %v658 = vld [vmem:[%s2 + $0x4] sm:$0xf]
        %v661 = vunpack.c.l.b16 %v657
        %v662 = vunpack.c.l.b16 %v658
        %v663 = vpack.c.b16 %v662, %v661
        %v664 = vrot.slane %v249, 6
        %v666 = vsel %vm257, %v663, 0
        %v669 = vsel %vm192, %v664, 0
        %671 = vmatprep.subr.bf16.mxu0 0
        %672 = vmatpush1.bf16.msra.mxu0 %v669
        %673 = vmatprep.subr.bf16.mxu0 0
        %674 = vmatpush1.bf16.msra.mxu0 0
        %675 = vmatprep.subr.bf16.mxu0 0
        %676 = vmatpush1.bf16.msra.mxu0 0
        %677 = vmatprep.subr.bf16.mxu0 0
        %678 = vmatpush1.bf16.msra.mxu0 0
        %679 = vmatprep.subr.bf16.mxu0 0
        %680 = vmatpush1.bf16.msra.mxu0 0
        %681 = vmatprep.subr.bf16.mxu0 0
        %682 = vmatpush1.bf16.msra.mxu0 0
        %683 = vmatprep.subr.bf16.mxu0 0
        %684 = vmatpush1.bf16.msra.mxu0 0
        %685 = vmatprep.subr.bf16.mxu0 0
        %686 = vmatpush1.bf16.msra.mxu0 0
        %687 = vmatprep.subr.bf16.mxu0 0
        %688 = vmatpush1.bf16.msra.mxu0 0
        %689 = vmatprep.subr.bf16.mxu0 0
        %690 = vmatpush1.bf16.msra.mxu0 0
        %691 = vmatprep.subr.bf16.mxu0 0
        %692 = vmatpush1.bf16.msra.mxu0 0
        %693 = vmatprep.subr.bf16.mxu0 0
        %694 = vmatpush1.bf16.msra.mxu0 0
        %695 = vmatprep.subr.bf16.mxu0 0
        %696 = vmatpush1.bf16.msra.mxu0 0
        %697 = vmatprep.subr.bf16.mxu0 0
        %698 = vmatpush1.bf16.msra.mxu0 0
        %699 = vmatprep.subr.bf16.mxu0 0
        %700 = vmatpush1.bf16.msra.mxu0 0
        %701 = vmatprep.subr.bf16.mxu0 0
        %702 = vmatpush1.bf16.msra.mxu0 0
        %703 = vmatprep.mubr.bf16.mxu0 0
        %704 = vmatmul.mubr.bf16.gmra.mrb[0].mxu0 %v666
        %v705 = vpop.f32.mrb[0].mxu0
        %v706 = vadd.f32 0.0, %v705
        %v707 = vpop.f32.mrb[0].mxu0
        %v708 = vpop.f32.mrb[0].mxu0
        %v709 = vadd.f32 0.0, %v708
        %v710 = vpop.f32.mrb[0].mxu0
        %711 = vdwg.mxu0
        %s712 = scalar_lea.vmem %s163, 112 [#allocation2]
        %713 = vst.msk [vmem:[%s712] sm:$0xff] %vm305, %v706
        %714 = vst.msk [vmem:[%s712 + $0x8] sm:$0xff] %vm305, %v709
        %s715 = sand.u32 %s93, 1
        %s716 = scalar_lea.sflag [#allocation3], %s715
        %s717 = sand.u32 %s93, 1
        %s718 = smul.addr %s717, 128
        %s719 = scalar_lea.vmem [#allocation2], %s718
        // Predicated region
        $region33: #{segmentation_forward.5} parent=31 // pred_check
          %p720 = pneg %p103
        $region34: #{segmentation_forward.5} parent=31 // pred_check_branch
          %722 = sbr.rel (%p720) target = $region36
        $region35: #{segmentation_forward.5} parent=31 // pred_region
          %s724 = ssub.s32 2048, 2048
          %725 = vsyncadd %s716, %s724
          %s726 = smul.addr %s17, 16
          %s727 = smul.addr %s726, 128
          %s728 = scalar_lea.hbm %s3, %s727
          %s729 = sshll.u32 %s719, 4
          %s730 = int_to_ptr.vmem [resolvable:$true] %s729
          %735 = dma.vmem_to_hbm [thread:$0]  %s730, 2048, %s728, %s716, 128, 128, 8
        $region36: #{segmentation_forward.5} parent=31 // pred_fallthru
          _
      $region32: #{segmentation_forward.5} parent=5 // pred_fallthru
        _
      %p736 = scmp.le.s32.totalorder 2, %s12
      // Predicated region
      $region37: #{segmentation_forward.5} parent=5 // pred_check
        %p737 = pneg %p736
      $region38: #{segmentation_forward.5} parent=5 // pred_check_branch
        %739 = sbr.rel (%p737) target = $region40
      $region39: #{segmentation_forward.5} parent=5 // pred_region
        %s740 = ssub.s32 %s12, 2
        // Predicated region
        $region41: #{segmentation_forward.5} parent=39 // pred_check
          %p741 = pneg %p109
        $region42: #{segmentation_forward.5} parent=39 // pred_check_branch
          %743 = sbr.rel (%p741) target = $region44
        $region43: #{segmentation_forward.5} parent=39 // pred_region
          %s744 = sand.u32 %s94, 1
          %s745 = scalar_lea.sflag [#allocation3], %s744
          %s746 = sand.u32 %s94, 1
          %s747 = smul.addr %s746, 128
          %s748 = scalar_lea.vmem [#allocation2], %s747
          %749 = dma.done %s745, 2048
        $region44: #{segmentation_forward.5} parent=39 // pred_fallthru
          _
      $region40: #{segmentation_forward.5} parent=5 // pred_fallthru
        _
    $region6: #{segmentation_forward.5} parent=1 // loop_footer
      %s16 = sadd.s32 1, %s12
    $region7: #{segmentation_forward.5} parent=1 // loop_footer_branch
      %11 = sbr.rel target = $region3
    $region8: #{segmentation_forward.5} parent=1 // loop_exit
      _
    %750 = vsyncpa [#allocation3], 1
    %s751 = scalar_lea.sflag [#allocation3], 1
    %752 = vsyncpa %s751, 1

</llo_original>
